<compile_context>
chip_gen: v7x
topology: tpu7x:2x2x1
jax: 0.10.0
libtpu: 0.0.40
codegen_flags: <defaults>
</compile_context>

<pallas_src>
import jax
import jax.numpy as jnp
from jax.experimental import pallas as pl
from jax.experimental.pallas import tpu as pltpu

C_OUT = 5
K = 5
PAD = 2
LANES = 128           # lane width of the padded slab
ROW_OFF = 8           # sublane-aligned top halo inside the scratch slab
CH_GROUPS = ((0, 1, 2), (3, 4))   # split accumulators to bound vreg pressure


def conv_sub_kernel(x_ref, w_ref, o_ref, xpad_ref):
    # x_ref:    (H, W)          raw input plane, VMEM
    # w_ref:    (C_OUT*K*K,)    flattened weights ('-x' pre-folded into centre taps), SMEM
    # o_ref:    (C_OUT, H, W)   output, VMEM
    # xpad_ref: (HP, 128)       zero-padded slab scratch, VMEM
    H, W = x_ref.shape

    # Build the padded slab entirely in VMEM: rows [ROW_OFF:ROW_OFF+H), lanes [0:W)
    # hold x, everything else is zero.  Store offsets are sublane/lane aligned.
    xpad_ref[...] = jnp.zeros_like(xpad_ref)
    xpad_ref[ROW_OFF:ROW_OFF + H, 0:W] = x_ref[...]

    for grp in CH_GROUPS:
        accs = {c: None for c in grp}
        for ki in range(K):
            # (H, 128) slab whose row r is padded-x row (r + ki - PAD).
            # Static slice; rows outside the data region land in the zero halo.
            r0 = ROW_OFF - PAD + ki
            rows = xpad_ref[r0:r0 + H, :]
            for kj in range(K):
                dc = kj - PAD
                if dc == 0:
                    shifted = rows
                else:
                    # shifted[:, j] == rows[:, (j + dc) % 128]; the circular wrap lands
                    # in the zero lanes [W:128), i.e. correct zero padding of columns.
                    shifted = pltpu.roll(rows, shift=(-dc) % LANES, axis=1)
                for c in grp:
                    w = w_ref[c * (K * K) + ki * K + kj]
                    term = w * shifted
                    accs[c] = term if accs[c] is None else accs[c] + term
        for c in grp:
            o_ref[c, :, :] = accs[c][:, :W]


def _slab_rows(h):
    return ((ROW_OFF + h + PAD + 7) // 8) * 8


@jax.jit
def conv_minus_x(x_nchw, weight):
    """x_nchw: (1, 1, H, W) f32; weight: (C_OUT, 1, K, K) f32.
    Returns (1, C_OUT, H, W) = conv2d(x, weight, stride=1, padding=2) - x."""
    N, Cin, H, W = x_nchw.shape
    assert N == 1 and Cin == 1
    assert H % 8 == 0                      # sublane-aligned plane
    assert W <= LANES - PAD                # lane wrap must land in zero lanes
    HP = _slab_rows(H)

    # Fold the "- x" into the centre tap of every output channel (fuses into this jit).
    w_flat = weight.astype(jnp.float32).reshape(-1)
    centre = jnp.arange(C_OUT) * (K * K) + PAD * K + PAD
    w_flat = w_flat.at[centre].add(-1.0)

    out = pl.pallas_call(
        conv_sub_kernel,
        out_shape=jax.ShapeDtypeStruct((C_OUT, H, W), jnp.float32),
        grid=(1,),
        in_specs=[
            pl.BlockSpec((H, W), lambda i: (0, 0)),
            pl.BlockSpec(memory_space=pltpu.MemorySpace.SMEM),
        ],
        out_specs=pl.BlockSpec((C_OUT, H, W), lambda i: (0, 0, 0)),
        scratch_shapes=[pltpu.VMEM((HP, LANES), jnp.float32)],
        compiler_params=pltpu.CompilerParams(dimension_semantics=("arbitrary",)),
    )(x_nchw[0, 0].astype(jnp.float32), w_flat)

    return out[None]                       # (1, C_OUT, H, W) — free reshape under jit


if __name__ == "__main__":
    key = jax.random.PRNGKey(0)
    kx, kw = jax.random.split(key)

    # Input matching the PyTorch example: (1, 1, 64, 64)
    x = jax.random.normal(kx, (1, 1, 64, 64), dtype=jnp.float32)

    # Deterministic Conv2d(1, 5, 5x5, bias=False) weights: uniform(-b, b),
    # b = 1/sqrt(fan_in) like PyTorch's default init (fan_in = 1*5*5).
    bound = 1.0 / (1 * K * K) ** 0.5
    weight = jax.random.uniform(kw, (C_OUT, 1, K, K), dtype=jnp.float32,
                                minval=-bound, maxval=bound)

    y = jax.block_until_ready(conv_minus_x(x, weight))

    # Reference check with XLA's conv (NCHW / OIHW).
    ref = jax.lax.conv_general_dilated(
        x, weight, window_strides=(1, 1), padding=((PAD, PAD), (PAD, PAD)),
        dimension_numbers=("NCHW", "OIHW", "NCHW")) - x
    assert y.shape == (1, C_OUT, 64, 64)
    assert jnp.allclose(y, ref, atol=1e-4, rtol=1e-4)

    print("KERNEL_OK")
</pallas_src>

<mosaic_0001>
module attributes {stable_mosaic.version = 11 : i64} {
  func.func @conv_sub_kernel(%arg0: i32, %arg1: memref<64x64xf32, #tpu.memory_space<vmem>>, %arg2: memref<125xf32, #tpu.memory_space<smem>>, %arg3: memref<5x64x64xf32, #tpu.memory_space<vmem>>, %arg4: memref<80x128xf32, #tpu.memory_space<vmem>>) attributes {dimension_semantics = [#tpu.dimension_semantics<arbitrary>], iteration_bounds = array<i64: 1>, scalar_prefetch = 0 : i64, scratch_operands = 1 : i64, tpu.core_type = #tpu.core_type<tc>, window_params = [{pipeline_mode = #tpu.pipeline_mode<synchronous>, transform_indices = @transform_0, window_bounds = array<i64: 64, 64>}, {transform_indices = @transform_1, window_bounds = array<i64: 125>}, {pipeline_mode = #tpu.pipeline_mode<synchronous>, transform_indices = @transform_2, window_bounds = array<i64: 5, 64, 64>}]} {
    %cst = arith.constant 0.000000e+00 : f32
    %0 = vector.broadcast %cst : f32 to vector<80x128xf32>
    %c0 = arith.constant 0 : index
    %c0_0 = arith.constant 0 : index
    %1 = vector.load %arg4[%c0, %c0_0] : memref<80x128xf32, #tpu.memory_space<vmem>>, vector<80x128xf32>
    tpu.vector_store %arg4[%c0, %c0_0], %0 {strides = array<i32>} : memref<80x128xf32, #tpu.memory_space<vmem>>, vector<80x128xf32>,
    %c0_1 = arith.constant 0 : index
    %c0_2 = arith.constant 0 : index
    %2 = vector.load %arg1[%c0_1, %c0_2] : memref<64x64xf32, #tpu.memory_space<vmem>>, vector<64x64xf32>
    %c8 = arith.constant 8 : index
    %c0_3 = arith.constant 0 : index
    %3 = vector.load %arg4[%c8, %c0_3] : memref<80x128xf32, #tpu.memory_space<vmem>>, vector<64x64xf32>
    tpu.vector_store %arg4[%c8, %c0_3], %2 {strides = array<i32>} : memref<80x128xf32, #tpu.memory_space<vmem>>, vector<64x64xf32>,
    %c6 = arith.constant 6 : index
    %c0_4 = arith.constant 0 : index
    %4 = vector.load %arg4[%c6, %c0_4] : memref<80x128xf32, #tpu.memory_space<vmem>>, vector<64x128xf32>
    %c2_i32 = arith.constant 2 : i32
    %5 = tpu.dynamic_rotate %4 by %c2_i32 dim 1 : vector<64x128xf32>, i32 -> vector<64x128xf32>
    %c0_5 = arith.constant 0 : index
    %6 = memref.load %arg2[%c0_5] : memref<125xf32, #tpu.memory_space<smem>>
    %7 = vector.broadcast %6 : f32 to vector<64x128xf32>
    %8 = arith.mulf %7, %5 : vector<64x128xf32>
    %c25 = arith.constant 25 : index
    %9 = memref.load %arg2[%c25] : memref<125xf32, #tpu.memory_space<smem>>
    %10 = vector.broadcast %9 : f32 to vector<64x128xf32>
    %11 = arith.mulf %10, %5 : vector<64x128xf32>
    %c50 = arith.constant 50 : index
    %12 = memref.load %arg2[%c50] : memref<125xf32, #tpu.memory_space<smem>>
    %13 = vector.broadcast %12 : f32 to vector<64x128xf32>
    %14 = arith.mulf %13, %5 : vector<64x128xf32>
    %c1_i32 = arith.constant 1 : i32
    %15 = tpu.dynamic_rotate %4 by %c1_i32 dim 1 : vector<64x128xf32>, i32 -> vector<64x128xf32>
    %c1 = arith.constant 1 : index
    %16 = memref.load %arg2[%c1] : memref<125xf32, #tpu.memory_space<smem>>
    %17 = vector.broadcast %16 : f32 to vector<64x128xf32>
    %18 = arith.mulf %17, %15 : vector<64x128xf32>
    %19 = arith.addf %8, %18 : vector<64x128xf32>
    %c26 = arith.constant 26 : index
    %20 = memref.load %arg2[%c26] : memref<125xf32, #tpu.memory_space<smem>>
    %21 = vector.broadcast %20 : f32 to vector<64x128xf32>
    %22 = arith.mulf %21, %15 : vector<64x128xf32>
    %23 = arith.addf %11, %22 : vector<64x128xf32>
    %c51 = arith.constant 51 : index
    %24 = memref.load %arg2[%c51] : memref<125xf32, #tpu.memory_space<smem>>
    %25 = vector.broadcast %24 : f32 to vector<64x128xf32>
    %26 = arith.mulf %25, %15 : vector<64x128xf32>
    %27 = arith.addf %14, %26 : vector<64x128xf32>
    %c2 = arith.constant 2 : index
    %28 = memref.load %arg2[%c2] : memref<125xf32, #tpu.memory_space<smem>>
    %29 = vector.broadcast %28 : f32 to vector<64x128xf32>
    %30 = arith.mulf %29, %4 : vector<64x128xf32>
    %31 = arith.addf %19, %30 : vector<64x128xf32>
    %c27 = arith.constant 27 : index
    %32 = memref.load %arg2[%c27] : memref<125xf32, #tpu.memory_space<smem>>
    %33 = vector.broadcast %32 : f32 to vector<64x128xf32>
    %34 = arith.mulf %33, %4 : vector<64x128xf32>
    %35 = arith.addf %23, %34 : vector<64x128xf32>
    %c52 = arith.constant 52 : index
    %36 = memref.load %arg2[%c52] : memref<125xf32, #tpu.memory_space<smem>>
    %37 = vector.broadcast %36 : f32 to vector<64x128xf32>
    %38 = arith.mulf %37, %4 : vector<64x128xf32>
    %39 = arith.addf %27, %38 : vector<64x128xf32>
    %c127_i32 = arith.constant 127 : i32
    %40 = tpu.dynamic_rotate %4 by %c127_i32 dim 1 : vector<64x128xf32>, i32 -> vector<64x128xf32>
    %c3 = arith.constant 3 : index
    %41 = memref.load %arg2[%c3] : memref<125xf32, #tpu.memory_space<smem>>
    %42 = vector.broadcast %41 : f32 to vector<64x128xf32>
    %43 = arith.mulf %42, %40 : vector<64x128xf32>
    %44 = arith.addf %31, %43 : vector<64x128xf32>
    %c28 = arith.constant 28 : index
    %45 = memref.load %arg2[%c28] : memref<125xf32, #tpu.memory_space<smem>>
    %46 = vector.broadcast %45 : f32 to vector<64x128xf32>
    %47 = arith.mulf %46, %40 : vector<64x128xf32>
    %48 = arith.addf %35, %47 : vector<64x128xf32>
    %c53 = arith.constant 53 : index
    %49 = memref.load %arg2[%c53] : memref<125xf32, #tpu.memory_space<smem>>
    %50 = vector.broadcast %49 : f32 to vector<64x128xf32>
    %51 = arith.mulf %50, %40 : vector<64x128xf32>
    %52 = arith.addf %39, %51 : vector<64x128xf32>
    %c126_i32 = arith.constant 126 : i32
    %53 = tpu.dynamic_rotate %4 by %c126_i32 dim 1 : vector<64x128xf32>, i32 -> vector<64x128xf32>
    %c4 = arith.constant 4 : index
    %54 = memref.load %arg2[%c4] : memref<125xf32, #tpu.memory_space<smem>>
    %55 = vector.broadcast %54 : f32 to vector<64x128xf32>
    %56 = arith.mulf %55, %53 : vector<64x128xf32>
    %57 = arith.addf %44, %56 : vector<64x128xf32>
    %c29 = arith.constant 29 : index
    %58 = memref.load %arg2[%c29] : memref<125xf32, #tpu.memory_space<smem>>
    %59 = vector.broadcast %58 : f32 to vector<64x128xf32>
    %60 = arith.mulf %59, %53 : vector<64x128xf32>
    %61 = arith.addf %48, %60 : vector<64x128xf32>
    %c54 = arith.constant 54 : index
    %62 = memref.load %arg2[%c54] : memref<125xf32, #tpu.memory_space<smem>>
    %63 = vector.broadcast %62 : f32 to vector<64x128xf32>
    %64 = arith.mulf %63, %53 : vector<64x128xf32>
    %65 = arith.addf %52, %64 : vector<64x128xf32>
    %c7 = arith.constant 7 : index
    %c0_6 = arith.constant 0 : index
    %66 = vector.load %arg4[%c7, %c0_6] : memref<80x128xf32, #tpu.memory_space<vmem>>, vector<64x128xf32>
    %c2_i32_7 = arith.constant 2 : i32
    %67 = tpu.dynamic_rotate %66 by %c2_i32_7 dim 1 : vector<64x128xf32>, i32 -> vector<64x128xf32>
    %c5 = arith.constant 5 : index
    %68 = memref.load %arg2[%c5] : memref<125xf32, #tpu.memory_space<smem>>
    %69 = vector.broadcast %68 : f32 to vector<64x128xf32>
    %70 = arith.mulf %69, %67 : vector<64x128xf32>
    %71 = arith.addf %57, %70 : vector<64x128xf32>
    %c30 = arith.constant 30 : index
    %72 = memref.load %arg2[%c30] : memref<125xf32, #tpu.memory_space<smem>>
    %73 = vector.broadcast %72 : f32 to vector<64x128xf32>
    %74 = arith.mulf %73, %67 : vector<64x128xf32>
    %75 = arith.addf %61, %74 : vector<64x128xf32>
    %c55 = arith.constant 55 : index
    %76 = memref.load %arg2[%c55] : memref<125xf32, #tpu.memory_space<smem>>
    %77 = vector.broadcast %76 : f32 to vector<64x128xf32>
    %78 = arith.mulf %77, %67 : vector<64x128xf32>
    %79 = arith.addf %65, %78 : vector<64x128xf32>
    %c1_i32_8 = arith.constant 1 : i32
    %80 = tpu.dynamic_rotate %66 by %c1_i32_8 dim 1 : vector<64x128xf32>, i32 -> vector<64x128xf32>
    %c6_9 = arith.constant 6 : index
    %81 = memref.load %arg2[%c6_9] : memref<125xf32, #tpu.memory_space<smem>>
    %82 = vector.broadcast %81 : f32 to vector<64x128xf32>
    %83 = arith.mulf %82, %80 : vector<64x128xf32>
    %84 = arith.addf %71, %83 : vector<64x128xf32>
    %c31 = arith.constant 31 : index
    %85 = memref.load %arg2[%c31] : memref<125xf32, #tpu.memory_space<smem>>
    %86 = vector.broadcast %85 : f32 to vector<64x128xf32>
    %87 = arith.mulf %86, %80 : vector<64x128xf32>
    %88 = arith.addf %75, %87 : vector<64x128xf32>
    %c56 = arith.constant 56 : index
    %89 = memref.load %arg2[%c56] : memref<125xf32, #tpu.memory_space<smem>>
    %90 = vector.broadcast %89 : f32 to vector<64x128xf32>
    %91 = arith.mulf %90, %80 : vector<64x128xf32>
    %92 = arith.addf %79, %91 : vector<64x128xf32>
    %c7_10 = arith.constant 7 : index
    %93 = memref.load %arg2[%c7_10] : memref<125xf32, #tpu.memory_space<smem>>
    %94 = vector.broadcast %93 : f32 to vector<64x128xf32>
    %95 = arith.mulf %94, %66 : vector<64x128xf32>
    %96 = arith.addf %84, %95 : vector<64x128xf32>
    %c32 = arith.constant 32 : index
    %97 = memref.load %arg2[%c32] : memref<125xf32, #tpu.memory_space<smem>>
    %98 = vector.broadcast %97 : f32 to vector<64x128xf32>
    %99 = arith.mulf %98, %66 : vector<64x128xf32>
    %100 = arith.addf %88, %99 : vector<64x128xf32>
    %c57 = arith.constant 57 : index
    %101 = memref.load %arg2[%c57] : memref<125xf32, #tpu.memory_space<smem>>
    %102 = vector.broadcast %101 : f32 to vector<64x128xf32>
    %103 = arith.mulf %102, %66 : vector<64x128xf32>
    %104 = arith.addf %92, %103 : vector<64x128xf32>
    %c127_i32_11 = arith.constant 127 : i32
    %105 = tpu.dynamic_rotate %66 by %c127_i32_11 dim 1 : vector<64x128xf32>, i32 -> vector<64x128xf32>
    %c8_12 = arith.constant 8 : index
    %106 = memref.load %arg2[%c8_12] : memref<125xf32, #tpu.memory_space<smem>>
    %107 = vector.broadcast %106 : f32 to vector<64x128xf32>
    %108 = arith.mulf %107, %105 : vector<64x128xf32>
    %109 = arith.addf %96, %108 : vector<64x128xf32>
    %c33 = arith.constant 33 : index
    %110 = memref.load %arg2[%c33] : memref<125xf32, #tpu.memory_space<smem>>
    %111 = vector.broadcast %110 : f32 to vector<64x128xf32>
    %112 = arith.mulf %111, %105 : vector<64x128xf32>
    %113 = arith.addf %100, %112 : vector<64x128xf32>
    %c58 = arith.constant 58 : index
    %114 = memref.load %arg2[%c58] : memref<125xf32, #tpu.memory_space<smem>>
    %115 = vector.broadcast %114 : f32 to vector<64x128xf32>
    %116 = arith.mulf %115, %105 : vector<64x128xf32>
    %117 = arith.addf %104, %116 : vector<64x128xf32>
    %c126_i32_13 = arith.constant 126 : i32
    %118 = tpu.dynamic_rotate %66 by %c126_i32_13 dim 1 : vector<64x128xf32>, i32 -> vector<64x128xf32>
    %c9 = arith.constant 9 : index
    %119 = memref.load %arg2[%c9] : memref<125xf32, #tpu.memory_space<smem>>
    %120 = vector.broadcast %119 : f32 to vector<64x128xf32>
    %121 = arith.mulf %120, %118 : vector<64x128xf32>
    %122 = arith.addf %109, %121 : vector<64x128xf32>
    %c34 = arith.constant 34 : index
    %123 = memref.load %arg2[%c34] : memref<125xf32, #tpu.memory_space<smem>>
    %124 = vector.broadcast %123 : f32 to vector<64x128xf32>
    %125 = arith.mulf %124, %118 : vector<64x128xf32>
    %126 = arith.addf %113, %125 : vector<64x128xf32>
    %c59 = arith.constant 59 : index
    %127 = memref.load %arg2[%c59] : memref<125xf32, #tpu.memory_space<smem>>
    %128 = vector.broadcast %127 : f32 to vector<64x128xf32>
    %129 = arith.mulf %128, %118 : vector<64x128xf32>
    %130 = arith.addf %117, %129 : vector<64x128xf32>
    %c8_14 = arith.constant 8 : index
    %c0_15 = arith.constant 0 : index
    %131 = vector.load %arg4[%c8_14, %c0_15] : memref<80x128xf32, #tpu.memory_space<vmem>>, vector<64x128xf32>
    %c2_i32_16 = arith.constant 2 : i32
    %132 = tpu.dynamic_rotate %131 by %c2_i32_16 dim 1 : vector<64x128xf32>, i32 -> vector<64x128xf32>
    %c10 = arith.constant 10 : index
    %133 = memref.load %arg2[%c10] : memref<125xf32, #tpu.memory_space<smem>>
    %134 = vector.broadcast %133 : f32 to vector<64x128xf32>
    %135 = arith.mulf %134, %132 : vector<64x128xf32>
    %136 = arith.addf %122, %135 : vector<64x128xf32>
    %c35 = arith.constant 35 : index
    %137 = memref.load %arg2[%c35] : memref<125xf32, #tpu.memory_space<smem>>
    %138 = vector.broadcast %137 : f32 to vector<64x128xf32>
    %139 = arith.mulf %138, %132 : vector<64x128xf32>
    %140 = arith.addf %126, %139 : vector<64x128xf32>
    %c60 = arith.constant 60 : index
    %141 = memref.load %arg2[%c60] : memref<125xf32, #tpu.memory_space<smem>>
    %142 = vector.broadcast %141 : f32 to vector<64x128xf32>
    %143 = arith.mulf %142, %132 : vector<64x128xf32>
    %144 = arith.addf %130, %143 : vector<64x128xf32>
    %c1_i32_17 = arith.constant 1 : i32
    %145 = tpu.dynamic_rotate %131 by %c1_i32_17 dim 1 : vector<64x128xf32>, i32 -> vector<64x128xf32>
    %c11 = arith.constant 11 : index
    %146 = memref.load %arg2[%c11] : memref<125xf32, #tpu.memory_space<smem>>
    %147 = vector.broadcast %146 : f32 to vector<64x128xf32>
    %148 = arith.mulf %147, %145 : vector<64x128xf32>
    %149 = arith.addf %136, %148 : vector<64x128xf32>
    %c36 = arith.constant 36 : index
    %150 = memref.load %arg2[%c36] : memref<125xf32, #tpu.memory_space<smem>>
    %151 = vector.broadcast %150 : f32 to vector<64x128xf32>
    %152 = arith.mulf %151, %145 : vector<64x128xf32>
    %153 = arith.addf %140, %152 : vector<64x128xf32>
    %c61 = arith.constant 61 : index
    %154 = memref.load %arg2[%c61] : memref<125xf32, #tpu.memory_space<smem>>
    %155 = vector.broadcast %154 : f32 to vector<64x128xf32>
    %156 = arith.mulf %155, %145 : vector<64x128xf32>
    %157 = arith.addf %144, %156 : vector<64x128xf32>
    %c12 = arith.constant 12 : index
    %158 = memref.load %arg2[%c12] : memref<125xf32, #tpu.memory_space<smem>>
    %159 = vector.broadcast %158 : f32 to vector<64x128xf32>
    %160 = arith.mulf %159, %131 : vector<64x128xf32>
    %161 = arith.addf %149, %160 : vector<64x128xf32>
    %c37 = arith.constant 37 : index
    %162 = memref.load %arg2[%c37] : memref<125xf32, #tpu.memory_space<smem>>
    %163 = vector.broadcast %162 : f32 to vector<64x128xf32>
    %164 = arith.mulf %163, %131 : vector<64x128xf32>
    %165 = arith.addf %153, %164 : vector<64x128xf32>
    %c62 = arith.constant 62 : index
    %166 = memref.load %arg2[%c62] : memref<125xf32, #tpu.memory_space<smem>>
    %167 = vector.broadcast %166 : f32 to vector<64x128xf32>
    %168 = arith.mulf %167, %131 : vector<64x128xf32>
    %169 = arith.addf %157, %168 : vector<64x128xf32>
    %c127_i32_18 = arith.constant 127 : i32
    %170 = tpu.dynamic_rotate %131 by %c127_i32_18 dim 1 : vector<64x128xf32>, i32 -> vector<64x128xf32>
    %c13 = arith.constant 13 : index
    %171 = memref.load %arg2[%c13] : memref<125xf32, #tpu.memory_space<smem>>
    %172 = vector.broadcast %171 : f32 to vector<64x128xf32>
    %173 = arith.mulf %172, %170 : vector<64x128xf32>
    %174 = arith.addf %161, %173 : vector<64x128xf32>
    %c38 = arith.constant 38 : index
    %175 = memref.load %arg2[%c38] : memref<125xf32, #tpu.memory_space<smem>>
    %176 = vector.broadcast %175 : f32 to vector<64x128xf32>
    %177 = arith.mulf %176, %170 : vector<64x128xf32>
    %178 = arith.addf %165, %177 : vector<64x128xf32>
    %c63 = arith.constant 63 : index
    %179 = memref.load %arg2[%c63] : memref<125xf32, #tpu.memory_space<smem>>
    %180 = vector.broadcast %179 : f32 to vector<64x128xf32>
    %181 = arith.mulf %180, %170 : vector<64x128xf32>
    %182 = arith.addf %169, %181 : vector<64x128xf32>
    %c126_i32_19 = arith.constant 126 : i32
    %183 = tpu.dynamic_rotate %131 by %c126_i32_19 dim 1 : vector<64x128xf32>, i32 -> vector<64x128xf32>
    %c14 = arith.constant 14 : index
    %184 = memref.load %arg2[%c14] : memref<125xf32, #tpu.memory_space<smem>>
    %185 = vector.broadcast %184 : f32 to vector<64x128xf32>
    %186 = arith.mulf %185, %183 : vector<64x128xf32>
    %187 = arith.addf %174, %186 : vector<64x128xf32>
    %c39 = arith.constant 39 : index
    %188 = memref.load %arg2[%c39] : memref<125xf32, #tpu.memory_space<smem>>
    %189 = vector.broadcast %188 : f32 to vector<64x128xf32>
    %190 = arith.mulf %189, %183 : vector<64x128xf32>
    %191 = arith.addf %178, %190 : vector<64x128xf32>
    %c64 = arith.constant 64 : index
    %192 = memref.load %arg2[%c64] : memref<125xf32, #tpu.memory_space<smem>>
    %193 = vector.broadcast %192 : f32 to vector<64x128xf32>
    %194 = arith.mulf %193, %183 : vector<64x128xf32>
    %195 = arith.addf %182, %194 : vector<64x128xf32>
    %c9_20 = arith.constant 9 : index
    %c0_21 = arith.constant 0 : index
    %196 = vector.load %arg4[%c9_20, %c0_21] : memref<80x128xf32, #tpu.memory_space<vmem>>, vector<64x128xf32>
    %c2_i32_22 = arith.constant 2 : i32
    %197 = tpu.dynamic_rotate %196 by %c2_i32_22 dim 1 : vector<64x128xf32>, i32 -> vector<64x128xf32>
    %c15 = arith.constant 15 : index
    %198 = memref.load %arg2[%c15] : memref<125xf32, #tpu.memory_space<smem>>
    %199 = vector.broadcast %198 : f32 to vector<64x128xf32>
    %200 = arith.mulf %199, %197 : vector<64x128xf32>
    %201 = arith.addf %187, %200 : vector<64x128xf32>
    %c40 = arith.constant 40 : index
    %202 = memref.load %arg2[%c40] : memref<125xf32, #tpu.memory_space<smem>>
    %203 = vector.broadcast %202 : f32 to vector<64x128xf32>
    %204 = arith.mulf %203, %197 : vector<64x128xf32>
    %205 = arith.addf %191, %204 : vector<64x128xf32>
    %c65 = arith.constant 65 : index
    %206 = memref.load %arg2[%c65] : memref<125xf32, #tpu.memory_space<smem>>
    %207 = vector.broadcast %206 : f32 to vector<64x128xf32>
    %208 = arith.mulf %207, %197 : vector<64x128xf32>
    %209 = arith.addf %195, %208 : vector<64x128xf32>
    %c1_i32_23 = arith.constant 1 : i32
    %210 = tpu.dynamic_rotate %196 by %c1_i32_23 dim 1 : vector<64x128xf32>, i32 -> vector<64x128xf32>
    %c16 = arith.constant 16 : index
    %211 = memref.load %arg2[%c16] : memref<125xf32, #tpu.memory_space<smem>>
    %212 = vector.broadcast %211 : f32 to vector<64x128xf32>
    %213 = arith.mulf %212, %210 : vector<64x128xf32>
    %214 = arith.addf %201, %213 : vector<64x128xf32>
    %c41 = arith.constant 41 : index
    %215 = memref.load %arg2[%c41] : memref<125xf32, #tpu.memory_space<smem>>
    %216 = vector.broadcast %215 : f32 to vector<64x128xf32>
    %217 = arith.mulf %216, %210 : vector<64x128xf32>
    %218 = arith.addf %205, %217 : vector<64x128xf32>
    %c66 = arith.constant 66 : index
    %219 = memref.load %arg2[%c66] : memref<125xf32, #tpu.memory_space<smem>>
    %220 = vector.broadcast %219 : f32 to vector<64x128xf32>
    %221 = arith.mulf %220, %210 : vector<64x128xf32>
    %222 = arith.addf %209, %221 : vector<64x128xf32>
    %c17 = arith.constant 17 : index
    %223 = memref.load %arg2[%c17] : memref<125xf32, #tpu.memory_space<smem>>
    %224 = vector.broadcast %223 : f32 to vector<64x128xf32>
    %225 = arith.mulf %224, %196 : vector<64x128xf32>
    %226 = arith.addf %214, %225 : vector<64x128xf32>
    %c42 = arith.constant 42 : index
    %227 = memref.load %arg2[%c42] : memref<125xf32, #tpu.memory_space<smem>>
    %228 = vector.broadcast %227 : f32 to vector<64x128xf32>
    %229 = arith.mulf %228, %196 : vector<64x128xf32>
    %230 = arith.addf %218, %229 : vector<64x128xf32>
    %c67 = arith.constant 67 : index
    %231 = memref.load %arg2[%c67] : memref<125xf32, #tpu.memory_space<smem>>
    %232 = vector.broadcast %231 : f32 to vector<64x128xf32>
    %233 = arith.mulf %232, %196 : vector<64x128xf32>
    %234 = arith.addf %222, %233 : vector<64x128xf32>
    %c127_i32_24 = arith.constant 127 : i32
    %235 = tpu.dynamic_rotate %196 by %c127_i32_24 dim 1 : vector<64x128xf32>, i32 -> vector<64x128xf32>
    %c18 = arith.constant 18 : index
    %236 = memref.load %arg2[%c18] : memref<125xf32, #tpu.memory_space<smem>>
    %237 = vector.broadcast %236 : f32 to vector<64x128xf32>
    %238 = arith.mulf %237, %235 : vector<64x128xf32>
    %239 = arith.addf %226, %238 : vector<64x128xf32>
    %c43 = arith.constant 43 : index
    %240 = memref.load %arg2[%c43] : memref<125xf32, #tpu.memory_space<smem>>
    %241 = vector.broadcast %240 : f32 to vector<64x128xf32>
    %242 = arith.mulf %241, %235 : vector<64x128xf32>
    %243 = arith.addf %230, %242 : vector<64x128xf32>
    %c68 = arith.constant 68 : index
    %244 = memref.load %arg2[%c68] : memref<125xf32, #tpu.memory_space<smem>>
    %245 = vector.broadcast %244 : f32 to vector<64x128xf32>
    %246 = arith.mulf %245, %235 : vector<64x128xf32>
    %247 = arith.addf %234, %246 : vector<64x128xf32>
    %c126_i32_25 = arith.constant 126 : i32
    %248 = tpu.dynamic_rotate %196 by %c126_i32_25 dim 1 : vector<64x128xf32>, i32 -> vector<64x128xf32>
    %c19 = arith.constant 19 : index
    %249 = memref.load %arg2[%c19] : memref<125xf32, #tpu.memory_space<smem>>
    %250 = vector.broadcast %249 : f32 to vector<64x128xf32>
    %251 = arith.mulf %250, %248 : vector<64x128xf32>
    %252 = arith.addf %239, %251 : vector<64x128xf32>
    %c44 = arith.constant 44 : index
    %253 = memref.load %arg2[%c44] : memref<125xf32, #tpu.memory_space<smem>>
    %254 = vector.broadcast %253 : f32 to vector<64x128xf32>
    %255 = arith.mulf %254, %248 : vector<64x128xf32>
    %256 = arith.addf %243, %255 : vector<64x128xf32>
    %c69 = arith.constant 69 : index
    %257 = memref.load %arg2[%c69] : memref<125xf32, #tpu.memory_space<smem>>
    %258 = vector.broadcast %257 : f32 to vector<64x128xf32>
    %259 = arith.mulf %258, %248 : vector<64x128xf32>
    %260 = arith.addf %247, %259 : vector<64x128xf32>
    %c10_26 = arith.constant 10 : index
    %c0_27 = arith.constant 0 : index
    %261 = vector.load %arg4[%c10_26, %c0_27] : memref<80x128xf32, #tpu.memory_space<vmem>>, vector<64x128xf32>
    %c2_i32_28 = arith.constant 2 : i32
    %262 = tpu.dynamic_rotate %261 by %c2_i32_28 dim 1 : vector<64x128xf32>, i32 -> vector<64x128xf32>
    %c20 = arith.constant 20 : index
    %263 = memref.load %arg2[%c20] : memref<125xf32, #tpu.memory_space<smem>>
    %264 = vector.broadcast %263 : f32 to vector<64x128xf32>
    %265 = arith.mulf %264, %262 : vector<64x128xf32>
    %266 = arith.addf %252, %265 : vector<64x128xf32>
    %c45 = arith.constant 45 : index
    %267 = memref.load %arg2[%c45] : memref<125xf32, #tpu.memory_space<smem>>
    %268 = vector.broadcast %267 : f32 to vector<64x128xf32>
    %269 = arith.mulf %268, %262 : vector<64x128xf32>
    %270 = arith.addf %256, %269 : vector<64x128xf32>
    %c70 = arith.constant 70 : index
    %271 = memref.load %arg2[%c70] : memref<125xf32, #tpu.memory_space<smem>>
    %272 = vector.broadcast %271 : f32 to vector<64x128xf32>
    %273 = arith.mulf %272, %262 : vector<64x128xf32>
    %274 = arith.addf %260, %273 : vector<64x128xf32>
    %c1_i32_29 = arith.constant 1 : i32
    %275 = tpu.dynamic_rotate %261 by %c1_i32_29 dim 1 : vector<64x128xf32>, i32 -> vector<64x128xf32>
    %c21 = arith.constant 21 : index
    %276 = memref.load %arg2[%c21] : memref<125xf32, #tpu.memory_space<smem>>
    %277 = vector.broadcast %276 : f32 to vector<64x128xf32>
    %278 = arith.mulf %277, %275 : vector<64x128xf32>
    %279 = arith.addf %266, %278 : vector<64x128xf32>
    %c46 = arith.constant 46 : index
    %280 = memref.load %arg2[%c46] : memref<125xf32, #tpu.memory_space<smem>>
    %281 = vector.broadcast %280 : f32 to vector<64x128xf32>
    %282 = arith.mulf %281, %275 : vector<64x128xf32>
    %283 = arith.addf %270, %282 : vector<64x128xf32>
    %c71 = arith.constant 71 : index
    %284 = memref.load %arg2[%c71] : memref<125xf32, #tpu.memory_space<smem>>
    %285 = vector.broadcast %284 : f32 to vector<64x128xf32>
    %286 = arith.mulf %285, %275 : vector<64x128xf32>
    %287 = arith.addf %274, %286 : vector<64x128xf32>
    %c22 = arith.constant 22 : index
    %288 = memref.load %arg2[%c22] : memref<125xf32, #tpu.memory_space<smem>>
    %289 = vector.broadcast %288 : f32 to vector<64x128xf32>
    %290 = arith.mulf %289, %261 : vector<64x128xf32>
    %291 = arith.addf %279, %290 : vector<64x128xf32>
    %c47 = arith.constant 47 : index
    %292 = memref.load %arg2[%c47] : memref<125xf32, #tpu.memory_space<smem>>
    %293 = vector.broadcast %292 : f32 to vector<64x128xf32>
    %294 = arith.mulf %293, %261 : vector<64x128xf32>
    %295 = arith.addf %283, %294 : vector<64x128xf32>
    %c72 = arith.constant 72 : index
    %296 = memref.load %arg2[%c72] : memref<125xf32, #tpu.memory_space<smem>>
    %297 = vector.broadcast %296 : f32 to vector<64x128xf32>
    %298 = arith.mulf %297, %261 : vector<64x128xf32>
    %299 = arith.addf %287, %298 : vector<64x128xf32>
    %c127_i32_30 = arith.constant 127 : i32
    %300 = tpu.dynamic_rotate %261 by %c127_i32_30 dim 1 : vector<64x128xf32>, i32 -> vector<64x128xf32>
    %c23 = arith.constant 23 : index
    %301 = memref.load %arg2[%c23] : memref<125xf32, #tpu.memory_space<smem>>
    %302 = vector.broadcast %301 : f32 to vector<64x128xf32>
    %303 = arith.mulf %302, %300 : vector<64x128xf32>
    %304 = arith.addf %291, %303 : vector<64x128xf32>
    %c48 = arith.constant 48 : index
    %305 = memref.load %arg2[%c48] : memref<125xf32, #tpu.memory_space<smem>>
    %306 = vector.broadcast %305 : f32 to vector<64x128xf32>
    %307 = arith.mulf %306, %300 : vector<64x128xf32>
    %308 = arith.addf %295, %307 : vector<64x128xf32>
    %c73 = arith.constant 73 : index
    %309 = memref.load %arg2[%c73] : memref<125xf32, #tpu.memory_space<smem>>
    %310 = vector.broadcast %309 : f32 to vector<64x128xf32>
    %311 = arith.mulf %310, %300 : vector<64x128xf32>
    %312 = arith.addf %299, %311 : vector<64x128xf32>
    %c126_i32_31 = arith.constant 126 : i32
    %313 = tpu.dynamic_rotate %261 by %c126_i32_31 dim 1 : vector<64x128xf32>, i32 -> vector<64x128xf32>
    %c24 = arith.constant 24 : index
    %314 = memref.load %arg2[%c24] : memref<125xf32, #tpu.memory_space<smem>>
    %315 = vector.broadcast %314 : f32 to vector<64x128xf32>
    %316 = arith.mulf %315, %313 : vector<64x128xf32>
    %317 = arith.addf %304, %316 : vector<64x128xf32>
    %c49 = arith.constant 49 : index
    %318 = memref.load %arg2[%c49] : memref<125xf32, #tpu.memory_space<smem>>
    %319 = vector.broadcast %318 : f32 to vector<64x128xf32>
    %320 = arith.mulf %319, %313 : vector<64x128xf32>
    %321 = arith.addf %308, %320 : vector<64x128xf32>
    %c74 = arith.constant 74 : index
    %322 = memref.load %arg2[%c74] : memref<125xf32, #tpu.memory_space<smem>>
    %323 = vector.broadcast %322 : f32 to vector<64x128xf32>
    %324 = arith.mulf %323, %313 : vector<64x128xf32>
    %325 = arith.addf %312, %324 : vector<64x128xf32>
    %326 = vector.extract_strided_slice %317 {offsets = [0, 0], sizes = [64, 64], strides = [1, 1]} : vector<64x128xf32> to vector<64x64xf32>
    %c0_32 = arith.constant 0 : index
    %c0_33 = arith.constant 0 : index
    %c0_34 = arith.constant 0 : index
    %327 = vector.load %arg3[%c0_32, %c0_33, %c0_34] : memref<5x64x64xf32, #tpu.memory_space<vmem>>, vector<1x64x64xf32>
    %328 = vector.shape_cast %327 : vector<1x64x64xf32> to vector<64x64xf32>
    %329 = vector.shape_cast %326 : vector<64x64xf32> to vector<1x64x64xf32>
    tpu.vector_store %arg3[%c0_32, %c0_33, %c0_34], %329 {strides = array<i32>} : memref<5x64x64xf32, #tpu.memory_space<vmem>>, vector<1x64x64xf32>,
    %330 = vector.extract_strided_slice %321 {offsets = [0, 0], sizes = [64, 64], strides = [1, 1]} : vector<64x128xf32> to vector<64x64xf32>
    %c1_35 = arith.constant 1 : index
    %c0_36 = arith.constant 0 : index
    %c0_37 = arith.constant 0 : index
    %331 = vector.load %arg3[%c1_35, %c0_36, %c0_37] : memref<5x64x64xf32, #tpu.memory_space<vmem>>, vector<1x64x64xf32>
    %332 = vector.shape_cast %331 : vector<1x64x64xf32> to vector<64x64xf32>
    %333 = vector.shape_cast %330 : vector<64x64xf32> to vector<1x64x64xf32>
    tpu.vector_store %arg3[%c1_35, %c0_36, %c0_37], %333 {strides = array<i32>} : memref<5x64x64xf32, #tpu.memory_space<vmem>>, vector<1x64x64xf32>,
    %334 = vector.extract_strided_slice %325 {offsets = [0, 0], sizes = [64, 64], strides = [1, 1]} : vector<64x128xf32> to vector<64x64xf32>
    %c2_38 = arith.constant 2 : index
    %c0_39 = arith.constant 0 : index
    %c0_40 = arith.constant 0 : index
    %335 = vector.load %arg3[%c2_38, %c0_39, %c0_40] : memref<5x64x64xf32, #tpu.memory_space<vmem>>, vector<1x64x64xf32>
    %336 = vector.shape_cast %335 : vector<1x64x64xf32> to vector<64x64xf32>
    %337 = vector.shape_cast %334 : vector<64x64xf32> to vector<1x64x64xf32>
    tpu.vector_store %arg3[%c2_38, %c0_39, %c0_40], %337 {strides = array<i32>} : memref<5x64x64xf32, #tpu.memory_space<vmem>>, vector<1x64x64xf32>,
    %c6_41 = arith.constant 6 : index
    %c0_42 = arith.constant 0 : index
    %338 = vector.load %arg4[%c6_41, %c0_42] : memref<80x128xf32, #tpu.memory_space<vmem>>, vector<64x128xf32>
    %c2_i32_43 = arith.constant 2 : i32
    %339 = tpu.dynamic_rotate %338 by %c2_i32_43 dim 1 : vector<64x128xf32>, i32 -> vector<64x128xf32>
    %c75 = arith.constant 75 : index
    %340 = memref.load %arg2[%c75] : memref<125xf32, #tpu.memory_space<smem>>
    %341 = vector.broadcast %340 : f32 to vector<64x128xf32>
    %342 = arith.mulf %341, %339 : vector<64x128xf32>
    %c100 = arith.constant 100 : index
    %343 = memref.load %arg2[%c100] : memref<125xf32, #tpu.memory_space<smem>>
    %344 = vector.broadcast %343 : f32 to vector<64x128xf32>
    %345 = arith.mulf %344, %339 : vector<64x128xf32>
    %c1_i32_44 = arith.constant 1 : i32
    %346 = tpu.dynamic_rotate %338 by %c1_i32_44 dim 1 : vector<64x128xf32>, i32 -> vector<64x128xf32>
    %c76 = arith.constant 76 : index
    %347 = memref.load %arg2[%c76] : memref<125xf32, #tpu.memory_space<smem>>
    %348 = vector.broadcast %347 : f32 to vector<64x128xf32>
    %349 = arith.mulf %348, %346 : vector<64x128xf32>
    %350 = arith.addf %342, %349 : vector<64x128xf32>
    %c101 = arith.constant 101 : index
    %351 = memref.load %arg2[%c101] : memref<125xf32, #tpu.memory_space<smem>>
    %352 = vector.broadcast %351 : f32 to vector<64x128xf32>
    %353 = arith.mulf %352, %346 : vector<64x128xf32>
    %354 = arith.addf %345, %353 : vector<64x128xf32>
    %c77 = arith.constant 77 : index
    %355 = memref.load %arg2[%c77] : memref<125xf32, #tpu.memory_space<smem>>
    %356 = vector.broadcast %355 : f32 to vector<64x128xf32>
    %357 = arith.mulf %356, %338 : vector<64x128xf32>
    %358 = arith.addf %350, %357 : vector<64x128xf32>
    %c102 = arith.constant 102 : index
    %359 = memref.load %arg2[%c102] : memref<125xf32, #tpu.memory_space<smem>>
    %360 = vector.broadcast %359 : f32 to vector<64x128xf32>
    %361 = arith.mulf %360, %338 : vector<64x128xf32>
    %362 = arith.addf %354, %361 : vector<64x128xf32>
    %c127_i32_45 = arith.constant 127 : i32
    %363 = tpu.dynamic_rotate %338 by %c127_i32_45 dim 1 : vector<64x128xf32>, i32 -> vector<64x128xf32>
    %c78 = arith.constant 78 : index
    %364 = memref.load %arg2[%c78] : memref<125xf32, #tpu.memory_space<smem>>
    %365 = vector.broadcast %364 : f32 to vector<64x128xf32>
    %366 = arith.mulf %365, %363 : vector<64x128xf32>
    %367 = arith.addf %358, %366 : vector<64x128xf32>
    %c103 = arith.constant 103 : index
    %368 = memref.load %arg2[%c103] : memref<125xf32, #tpu.memory_space<smem>>
    %369 = vector.broadcast %368 : f32 to vector<64x128xf32>
    %370 = arith.mulf %369, %363 : vector<64x128xf32>
    %371 = arith.addf %362, %370 : vector<64x128xf32>
    %c126_i32_46 = arith.constant 126 : i32
    %372 = tpu.dynamic_rotate %338 by %c126_i32_46 dim 1 : vector<64x128xf32>, i32 -> vector<64x128xf32>
    %c79 = arith.constant 79 : index
    %373 = memref.load %arg2[%c79] : memref<125xf32, #tpu.memory_space<smem>>
    %374 = vector.broadcast %373 : f32 to vector<64x128xf32>
    %375 = arith.mulf %374, %372 : vector<64x128xf32>
    %376 = arith.addf %367, %375 : vector<64x128xf32>
    %c104 = arith.constant 104 : index
    %377 = memref.load %arg2[%c104] : memref<125xf32, #tpu.memory_space<smem>>
    %378 = vector.broadcast %377 : f32 to vector<64x128xf32>
    %379 = arith.mulf %378, %372 : vector<64x128xf32>
    %380 = arith.addf %371, %379 : vector<64x128xf32>
    %c7_47 = arith.constant 7 : index
    %c0_48 = arith.constant 0 : index
    %381 = vector.load %arg4[%c7_47, %c0_48] : memref<80x128xf32, #tpu.memory_space<vmem>>, vector<64x128xf32>
    %c2_i32_49 = arith.constant 2 : i32
    %382 = tpu.dynamic_rotate %381 by %c2_i32_49 dim 1 : vector<64x128xf32>, i32 -> vector<64x128xf32>
    %c80 = arith.constant 80 : index
    %383 = memref.load %arg2[%c80] : memref<125xf32, #tpu.memory_space<smem>>
    %384 = vector.broadcast %383 : f32 to vector<64x128xf32>
    %385 = arith.mulf %384, %382 : vector<64x128xf32>
    %386 = arith.addf %376, %385 : vector<64x128xf32>
    %c105 = arith.constant 105 : index
    %387 = memref.load %arg2[%c105] : memref<125xf32, #tpu.memory_space<smem>>
    %388 = vector.broadcast %387 : f32 to vector<64x128xf32>
    %389 = arith.mulf %388, %382 : vector<64x128xf32>
    %390 = arith.addf %380, %389 : vector<64x128xf32>
    %c1_i32_50 = arith.constant 1 : i32
    %391 = tpu.dynamic_rotate %381 by %c1_i32_50 dim 1 : vector<64x128xf32>, i32 -> vector<64x128xf32>
    %c81 = arith.constant 81 : index
    %392 = memref.load %arg2[%c81] : memref<125xf32, #tpu.memory_space<smem>>
    %393 = vector.broadcast %392 : f32 to vector<64x128xf32>
    %394 = arith.mulf %393, %391 : vector<64x128xf32>
    %395 = arith.addf %386, %394 : vector<64x128xf32>
    %c106 = arith.constant 106 : index
    %396 = memref.load %arg2[%c106] : memref<125xf32, #tpu.memory_space<smem>>
    %397 = vector.broadcast %396 : f32 to vector<64x128xf32>
    %398 = arith.mulf %397, %391 : vector<64x128xf32>
    %399 = arith.addf %390, %398 : vector<64x128xf32>
    %c82 = arith.constant 82 : index
    %400 = memref.load %arg2[%c82] : memref<125xf32, #tpu.memory_space<smem>>
    %401 = vector.broadcast %400 : f32 to vector<64x128xf32>
    %402 = arith.mulf %401, %381 : vector<64x128xf32>
    %403 = arith.addf %395, %402 : vector<64x128xf32>
    %c107 = arith.constant 107 : index
    %404 = memref.load %arg2[%c107] : memref<125xf32, #tpu.memory_space<smem>>
    %405 = vector.broadcast %404 : f32 to vector<64x128xf32>
    %406 = arith.mulf %405, %381 : vector<64x128xf32>
    %407 = arith.addf %399, %406 : vector<64x128xf32>
    %c127_i32_51 = arith.constant 127 : i32
    %408 = tpu.dynamic_rotate %381 by %c127_i32_51 dim 1 : vector<64x128xf32>, i32 -> vector<64x128xf32>
    %c83 = arith.constant 83 : index
    %409 = memref.load %arg2[%c83] : memref<125xf32, #tpu.memory_space<smem>>
    %410 = vector.broadcast %409 : f32 to vector<64x128xf32>
    %411 = arith.mulf %410, %408 : vector<64x128xf32>
    %412 = arith.addf %403, %411 : vector<64x128xf32>
    %c108 = arith.constant 108 : index
    %413 = memref.load %arg2[%c108] : memref<125xf32, #tpu.memory_space<smem>>
    %414 = vector.broadcast %413 : f32 to vector<64x128xf32>
    %415 = arith.mulf %414, %408 : vector<64x128xf32>
    %416 = arith.addf %407, %415 : vector<64x128xf32>
    %c126_i32_52 = arith.constant 126 : i32
    %417 = tpu.dynamic_rotate %381 by %c126_i32_52 dim 1 : vector<64x128xf32>, i32 -> vector<64x128xf32>
    %c84 = arith.constant 84 : index
    %418 = memref.load %arg2[%c84] : memref<125xf32, #tpu.memory_space<smem>>
    %419 = vector.broadcast %418 : f32 to vector<64x128xf32>
    %420 = arith.mulf %419, %417 : vector<64x128xf32>
    %421 = arith.addf %412, %420 : vector<64x128xf32>
    %c109 = arith.constant 109 : index
    %422 = memref.load %arg2[%c109] : memref<125xf32, #tpu.memory_space<smem>>
    %423 = vector.broadcast %422 : f32 to vector<64x128xf32>
    %424 = arith.mulf %423, %417 : vector<64x128xf32>
    %425 = arith.addf %416, %424 : vector<64x128xf32>
    %c8_53 = arith.constant 8 : index
    %c0_54 = arith.constant 0 : index
    %426 = vector.load %arg4[%c8_53, %c0_54] : memref<80x128xf32, #tpu.memory_space<vmem>>, vector<64x128xf32>
    %c2_i32_55 = arith.constant 2 : i32
    %427 = tpu.dynamic_rotate %426 by %c2_i32_55 dim 1 : vector<64x128xf32>, i32 -> vector<64x128xf32>
    %c85 = arith.constant 85 : index
    %428 = memref.load %arg2[%c85] : memref<125xf32, #tpu.memory_space<smem>>
    %429 = vector.broadcast %428 : f32 to vector<64x128xf32>
    %430 = arith.mulf %429, %427 : vector<64x128xf32>
    %431 = arith.addf %421, %430 : vector<64x128xf32>
    %c110 = arith.constant 110 : index
    %432 = memref.load %arg2[%c110] : memref<125xf32, #tpu.memory_space<smem>>
    %433 = vector.broadcast %432 : f32 to vector<64x128xf32>
    %434 = arith.mulf %433, %427 : vector<64x128xf32>
    %435 = arith.addf %425, %434 : vector<64x128xf32>
    %c1_i32_56 = arith.constant 1 : i32
    %436 = tpu.dynamic_rotate %426 by %c1_i32_56 dim 1 : vector<64x128xf32>, i32 -> vector<64x128xf32>
    %c86 = arith.constant 86 : index
    %437 = memref.load %arg2[%c86] : memref<125xf32, #tpu.memory_space<smem>>
    %438 = vector.broadcast %437 : f32 to vector<64x128xf32>
    %439 = arith.mulf %438, %436 : vector<64x128xf32>
    %440 = arith.addf %431, %439 : vector<64x128xf32>
    %c111 = arith.constant 111 : index
    %441 = memref.load %arg2[%c111] : memref<125xf32, #tpu.memory_space<smem>>
    %442 = vector.broadcast %441 : f32 to vector<64x128xf32>
    %443 = arith.mulf %442, %436 : vector<64x128xf32>
    %444 = arith.addf %435, %443 : vector<64x128xf32>
    %c87 = arith.constant 87 : index
    %445 = memref.load %arg2[%c87] : memref<125xf32, #tpu.memory_space<smem>>
    %446 = vector.broadcast %445 : f32 to vector<64x128xf32>
    %447 = arith.mulf %446, %426 : vector<64x128xf32>
    %448 = arith.addf %440, %447 : vector<64x128xf32>
    %c112 = arith.constant 112 : index
    %449 = memref.load %arg2[%c112] : memref<125xf32, #tpu.memory_space<smem>>
    %450 = vector.broadcast %449 : f32 to vector<64x128xf32>
    %451 = arith.mulf %450, %426 : vector<64x128xf32>
    %452 = arith.addf %444, %451 : vector<64x128xf32>
    %c127_i32_57 = arith.constant 127 : i32
    %453 = tpu.dynamic_rotate %426 by %c127_i32_57 dim 1 : vector<64x128xf32>, i32 -> vector<64x128xf32>
    %c88 = arith.constant 88 : index
    %454 = memref.load %arg2[%c88] : memref<125xf32, #tpu.memory_space<smem>>
    %455 = vector.broadcast %454 : f32 to vector<64x128xf32>
    %456 = arith.mulf %455, %453 : vector<64x128xf32>
    %457 = arith.addf %448, %456 : vector<64x128xf32>
    %c113 = arith.constant 113 : index
    %458 = memref.load %arg2[%c113] : memref<125xf32, #tpu.memory_space<smem>>
    %459 = vector.broadcast %458 : f32 to vector<64x128xf32>
    %460 = arith.mulf %459, %453 : vector<64x128xf32>
    %461 = arith.addf %452, %460 : vector<64x128xf32>
    %c126_i32_58 = arith.constant 126 : i32
    %462 = tpu.dynamic_rotate %426 by %c126_i32_58 dim 1 : vector<64x128xf32>, i32 -> vector<64x128xf32>
    %c89 = arith.constant 89 : index
    %463 = memref.load %arg2[%c89] : memref<125xf32, #tpu.memory_space<smem>>
    %464 = vector.broadcast %463 : f32 to vector<64x128xf32>
    %465 = arith.mulf %464, %462 : vector<64x128xf32>
    %466 = arith.addf %457, %465 : vector<64x128xf32>
    %c114 = arith.constant 114 : index
    %467 = memref.load %arg2[%c114] : memref<125xf32, #tpu.memory_space<smem>>
    %468 = vector.broadcast %467 : f32 to vector<64x128xf32>
    %469 = arith.mulf %468, %462 : vector<64x128xf32>
    %470 = arith.addf %461, %469 : vector<64x128xf32>
    %c9_59 = arith.constant 9 : index
    %c0_60 = arith.constant 0 : index
    %471 = vector.load %arg4[%c9_59, %c0_60] : memref<80x128xf32, #tpu.memory_space<vmem>>, vector<64x128xf32>
    %c2_i32_61 = arith.constant 2 : i32
    %472 = tpu.dynamic_rotate %471 by %c2_i32_61 dim 1 : vector<64x128xf32>, i32 -> vector<64x128xf32>
    %c90 = arith.constant 90 : index
    %473 = memref.load %arg2[%c90] : memref<125xf32, #tpu.memory_space<smem>>
    %474 = vector.broadcast %473 : f32 to vector<64x128xf32>
    %475 = arith.mulf %474, %472 : vector<64x128xf32>
    %476 = arith.addf %466, %475 : vector<64x128xf32>
    %c115 = arith.constant 115 : index
    %477 = memref.load %arg2[%c115] : memref<125xf32, #tpu.memory_space<smem>>
    %478 = vector.broadcast %477 : f32 to vector<64x128xf32>
    %479 = arith.mulf %478, %472 : vector<64x128xf32>
    %480 = arith.addf %470, %479 : vector<64x128xf32>
    %c1_i32_62 = arith.constant 1 : i32
    %481 = tpu.dynamic_rotate %471 by %c1_i32_62 dim 1 : vector<64x128xf32>, i32 -> vector<64x128xf32>
    %c91 = arith.constant 91 : index
    %482 = memref.load %arg2[%c91] : memref<125xf32, #tpu.memory_space<smem>>
    %483 = vector.broadcast %482 : f32 to vector<64x128xf32>
    %484 = arith.mulf %483, %481 : vector<64x128xf32>
    %485 = arith.addf %476, %484 : vector<64x128xf32>
    %c116 = arith.constant 116 : index
    %486 = memref.load %arg2[%c116] : memref<125xf32, #tpu.memory_space<smem>>
    %487 = vector.broadcast %486 : f32 to vector<64x128xf32>
    %488 = arith.mulf %487, %481 : vector<64x128xf32>
    %489 = arith.addf %480, %488 : vector<64x128xf32>
    %c92 = arith.constant 92 : index
    %490 = memref.load %arg2[%c92] : memref<125xf32, #tpu.memory_space<smem>>
    %491 = vector.broadcast %490 : f32 to vector<64x128xf32>
    %492 = arith.mulf %491, %471 : vector<64x128xf32>
    %493 = arith.addf %485, %492 : vector<64x128xf32>
    %c117 = arith.constant 117 : index
    %494 = memref.load %arg2[%c117] : memref<125xf32, #tpu.memory_space<smem>>
    %495 = vector.broadcast %494 : f32 to vector<64x128xf32>
    %496 = arith.mulf %495, %471 : vector<64x128xf32>
    %497 = arith.addf %489, %496 : vector<64x128xf32>
    %c127_i32_63 = arith.constant 127 : i32
    %498 = tpu.dynamic_rotate %471 by %c127_i32_63 dim 1 : vector<64x128xf32>, i32 -> vector<64x128xf32>
    %c93 = arith.constant 93 : index
    %499 = memref.load %arg2[%c93] : memref<125xf32, #tpu.memory_space<smem>>
    %500 = vector.broadcast %499 : f32 to vector<64x128xf32>
    %501 = arith.mulf %500, %498 : vector<64x128xf32>
    %502 = arith.addf %493, %501 : vector<64x128xf32>
    %c118 = arith.constant 118 : index
    %503 = memref.load %arg2[%c118] : memref<125xf32, #tpu.memory_space<smem>>
    %504 = vector.broadcast %503 : f32 to vector<64x128xf32>
    %505 = arith.mulf %504, %498 : vector<64x128xf32>
    %506 = arith.addf %497, %505 : vector<64x128xf32>
    %c126_i32_64 = arith.constant 126 : i32
    %507 = tpu.dynamic_rotate %471 by %c126_i32_64 dim 1 : vector<64x128xf32>, i32 -> vector<64x128xf32>
    %c94 = arith.constant 94 : index
    %508 = memref.load %arg2[%c94] : memref<125xf32, #tpu.memory_space<smem>>
    %509 = vector.broadcast %508 : f32 to vector<64x128xf32>
    %510 = arith.mulf %509, %507 : vector<64x128xf32>
    %511 = arith.addf %502, %510 : vector<64x128xf32>
    %c119 = arith.constant 119 : index
    %512 = memref.load %arg2[%c119] : memref<125xf32, #tpu.memory_space<smem>>
    %513 = vector.broadcast %512 : f32 to vector<64x128xf32>
    %514 = arith.mulf %513, %507 : vector<64x128xf32>
    %515 = arith.addf %506, %514 : vector<64x128xf32>
    %c10_65 = arith.constant 10 : index
    %c0_66 = arith.constant 0 : index
    %516 = vector.load %arg4[%c10_65, %c0_66] : memref<80x128xf32, #tpu.memory_space<vmem>>, vector<64x128xf32>
    %c2_i32_67 = arith.constant 2 : i32
    %517 = tpu.dynamic_rotate %516 by %c2_i32_67 dim 1 : vector<64x128xf32>, i32 -> vector<64x128xf32>
    %c95 = arith.constant 95 : index
    %518 = memref.load %arg2[%c95] : memref<125xf32, #tpu.memory_space<smem>>
    %519 = vector.broadcast %518 : f32 to vector<64x128xf32>
    %520 = arith.mulf %519, %517 : vector<64x128xf32>
    %521 = arith.addf %511, %520 : vector<64x128xf32>
    %c120 = arith.constant 120 : index
    %522 = memref.load %arg2[%c120] : memref<125xf32, #tpu.memory_space<smem>>
    %523 = vector.broadcast %522 : f32 to vector<64x128xf32>
    %524 = arith.mulf %523, %517 : vector<64x128xf32>
    %525 = arith.addf %515, %524 : vector<64x128xf32>
    %c1_i32_68 = arith.constant 1 : i32
    %526 = tpu.dynamic_rotate %516 by %c1_i32_68 dim 1 : vector<64x128xf32>, i32 -> vector<64x128xf32>
    %c96 = arith.constant 96 : index
    %527 = memref.load %arg2[%c96] : memref<125xf32, #tpu.memory_space<smem>>
    %528 = vector.broadcast %527 : f32 to vector<64x128xf32>
    %529 = arith.mulf %528, %526 : vector<64x128xf32>
    %530 = arith.addf %521, %529 : vector<64x128xf32>
    %c121 = arith.constant 121 : index
    %531 = memref.load %arg2[%c121] : memref<125xf32, #tpu.memory_space<smem>>
    %532 = vector.broadcast %531 : f32 to vector<64x128xf32>
    %533 = arith.mulf %532, %526 : vector<64x128xf32>
    %534 = arith.addf %525, %533 : vector<64x128xf32>
    %c97 = arith.constant 97 : index
    %535 = memref.load %arg2[%c97] : memref<125xf32, #tpu.memory_space<smem>>
    %536 = vector.broadcast %535 : f32 to vector<64x128xf32>
    %537 = arith.mulf %536, %516 : vector<64x128xf32>
    %538 = arith.addf %530, %537 : vector<64x128xf32>
    %c122 = arith.constant 122 : index
    %539 = memref.load %arg2[%c122] : memref<125xf32, #tpu.memory_space<smem>>
    %540 = vector.broadcast %539 : f32 to vector<64x128xf32>
    %541 = arith.mulf %540, %516 : vector<64x128xf32>
    %542 = arith.addf %534, %541 : vector<64x128xf32>
    %c127_i32_69 = arith.constant 127 : i32
    %543 = tpu.dynamic_rotate %516 by %c127_i32_69 dim 1 : vector<64x128xf32>, i32 -> vector<64x128xf32>
    %c98 = arith.constant 98 : index
    %544 = memref.load %arg2[%c98] : memref<125xf32, #tpu.memory_space<smem>>
    %545 = vector.broadcast %544 : f32 to vector<64x128xf32>
    %546 = arith.mulf %545, %543 : vector<64x128xf32>
    %547 = arith.addf %538, %546 : vector<64x128xf32>
    %c123 = arith.constant 123 : index
    %548 = memref.load %arg2[%c123] : memref<125xf32, #tpu.memory_space<smem>>
    %549 = vector.broadcast %548 : f32 to vector<64x128xf32>
    %550 = arith.mulf %549, %543 : vector<64x128xf32>
    %551 = arith.addf %542, %550 : vector<64x128xf32>
    %c126_i32_70 = arith.constant 126 : i32
    %552 = tpu.dynamic_rotate %516 by %c126_i32_70 dim 1 : vector<64x128xf32>, i32 -> vector<64x128xf32>
    %c99 = arith.constant 99 : index
    %553 = memref.load %arg2[%c99] : memref<125xf32, #tpu.memory_space<smem>>
    %554 = vector.broadcast %553 : f32 to vector<64x128xf32>
    %555 = arith.mulf %554, %552 : vector<64x128xf32>
    %556 = arith.addf %547, %555 : vector<64x128xf32>
    %c124 = arith.constant 124 : index
    %557 = memref.load %arg2[%c124] : memref<125xf32, #tpu.memory_space<smem>>
    %558 = vector.broadcast %557 : f32 to vector<64x128xf32>
    %559 = arith.mulf %558, %552 : vector<64x128xf32>
    %560 = arith.addf %551, %559 : vector<64x128xf32>
    %561 = vector.extract_strided_slice %556 {offsets = [0, 0], sizes = [64, 64], strides = [1, 1]} : vector<64x128xf32> to vector<64x64xf32>
    %c3_71 = arith.constant 3 : index
    %c0_72 = arith.constant 0 : index
    %c0_73 = arith.constant 0 : index
    %562 = vector.load %arg3[%c3_71, %c0_72, %c0_73] : memref<5x64x64xf32, #tpu.memory_space<vmem>>, vector<1x64x64xf32>
    %563 = vector.shape_cast %562 : vector<1x64x64xf32> to vector<64x64xf32>
    %564 = vector.shape_cast %561 : vector<64x64xf32> to vector<1x64x64xf32>
    tpu.vector_store %arg3[%c3_71, %c0_72, %c0_73], %564 {strides = array<i32>} : memref<5x64x64xf32, #tpu.memory_space<vmem>>, vector<1x64x64xf32>,
    %565 = vector.extract_strided_slice %560 {offsets = [0, 0], sizes = [64, 64], strides = [1, 1]} : vector<64x128xf32> to vector<64x64xf32>
    %c4_74 = arith.constant 4 : index
    %c0_75 = arith.constant 0 : index
    %c0_76 = arith.constant 0 : index
    %566 = vector.load %arg3[%c4_74, %c0_75, %c0_76] : memref<5x64x64xf32, #tpu.memory_space<vmem>>, vector<1x64x64xf32>
    %567 = vector.shape_cast %566 : vector<1x64x64xf32> to vector<64x64xf32>
    %568 = vector.shape_cast %565 : vector<64x64xf32> to vector<1x64x64xf32>
    tpu.vector_store %arg3[%c4_74, %c0_75, %c0_76], %568 {strides = array<i32>} : memref<5x64x64xf32, #tpu.memory_space<vmem>>, vector<1x64x64xf32>,
    return
  }
  func.func @transform_0(%arg0: i32) -> (i32, i32) {
    %c0_i32 = arith.constant 0 : i32
    %c0_i32_0 = arith.constant 0 : i32
    %c0_i32_1 = arith.constant 0 : i32
    return %c0_i32, %c0_i32_0 : i32, i32
  }
  func.func @transform_1(%arg0: i32) -> i32 {
    %c0_i32 = arith.constant 0 : i32
    %c0_i32_0 = arith.constant 0 : i32
    return %c0_i32 : i32
  }
  func.func @transform_2(%arg0: i32) -> (i32, i32, i32) {
    %c0_i32 = arith.constant 0 : i32
    %c0_i32_0 = arith.constant 0 : i32
    %c0_i32_1 = arith.constant 0 : i32
    %c0_i32_2 = arith.constant 0 : i32
    return %c0_i32, %c0_i32_0, %c0_i32_1 : i32, i32, i32
  }
}

</mosaic_0001>

<llo_original>
// kernel: conv_minus_x.1
$region0: #{conv_minus_x.1}
  #allocation0 [shape = 'u32[]', space=smem, size = 0x4, offset = 0x4, fixed_abs, tag = 'smem constant byte address 0x4 - core index']
  #allocation1 [shape = 'u32[144,128]{1,0:T(1,128)}', space=vmem, size = 0x12000, scoped, tag = 'internal scratch']
  #allocation2 [shape = 'f32[80,128]{1,0:T(8,128)}', space=vmem, size = 0xa000, scoped, tag = 'scratch operand']
  %s0 = inlined_call_operand.vmem [shape: f32[64,64], index: 0, kind: input, shape index: {}]
  %s1 = inlined_call_operand.vmem [shape: f32[125], index: 1, kind: input, shape index: {}]
  %s2 = inlined_call_operand.hbm [shape: f32[5,64,64], index: 2, kind: output, shape index: {}]
  %s3 = sld [smem:[#allocation0]]
  $region22: #{conv_minus_x.1} parent=0
    _
  %s5 = ssub.s32 1, %s3
  %s6 = scalar_select 0, %s5, %s3
  $region1: #{conv_minus_x.1} parent=0
    #allocation3 [shape = 'u8[512]{0}', space=smem, size = 0x200, scoped, tag = 'input window, operand 1, single buffered']
    #allocation4 [shape = 's32[1]{0}', space=sflag, size = 0x4, scoped, tag = 'scoped memory for conv_minus_x.1']
    #allocation5 [shape = 's32[1]{0}', space=sflag, size = 0x4, scoped, tag = 'scoped memory for conv_minus_x.1']
    #allocation6 [shape = 'u8[163840]{0}', space=vmem, size = 0x28000, scoped, tag = 'output window, operand 0, single buffered']
    %7 = vsyncpa [#allocation5], 0
    %8 = vsyncpa [#allocation4], 0
    // Predicated region
    $region2: #{conv_minus_x.1} parent=1 // pred_check
      _
    $region3: #{conv_minus_x.1} parent=1 // pred_check_branch
      %10 = sbr.rel (0) target = $region5
    $region4: #{conv_minus_x.1} parent=1 // pred_region
      _
    $region5: #{conv_minus_x.1} parent=1 // pred_fallthru
      _
    // Predicated region
    $region6: #{conv_minus_x.1} parent=1 // pred_check
      _
    $region7: #{conv_minus_x.1} parent=1 // pred_check_branch
      %12 = sbr.rel (0) target = $region9
    $region8: #{conv_minus_x.1} parent=1 // pred_region
      %s14 = ssub.s32 16, 16
      %15 = vsyncadd [#allocation5], %s14
      %s17 = sshll.u32 %s1, 4
      %s18 = int_to_ptr.vmem [resolvable:$true] %s17
      %20 = dma.vmem_to_smem %s18, 16, [#allocation3], [#allocation5]
    $region9: #{conv_minus_x.1} parent=1 // pred_fallthru
      _
    // Predicated region
    $region10: #{conv_minus_x.1} parent=1 // pred_check
      _
    $region11: #{conv_minus_x.1} parent=1 // pred_check_branch
      %22 = sbr.rel (0) target = $region13
    $region12: #{conv_minus_x.1} parent=1 // pred_region
      %23 = dma.done [#allocation5], 16
    $region13: #{conv_minus_x.1} parent=1 // pred_fallthru
      _
    %24 = sfence
    %25 = vst [vmem:[#allocation2] sm:$0xff] 0.0
    %26 = vst [vmem:[#allocation2 + $0x8] sm:$0xff] 0.0
    %27 = vst [vmem:[#allocation2 + $0x10] sm:$0xff] 0.0
    %28 = vst [vmem:[#allocation2 + $0x18] sm:$0xff] 0.0
    %29 = vst [vmem:[#allocation2 + $0x20] sm:$0xff] 0.0
    %30 = vst [vmem:[#allocation2 + $0x28] sm:$0xff] 0.0
    %31 = vst [vmem:[#allocation2 + $0x30] sm:$0xff] 0.0
    %32 = vst [vmem:[#allocation2 + $0x38] sm:$0xff] 0.0
    %33 = vst [vmem:[#allocation2 + $0x40] sm:$0xff] 0.0
    %34 = vst [vmem:[#allocation2 + $0x48] sm:$0xff] 0.0
    %v35 = vld [vmem:[%s0] sm:$0xff]
    %v36 = vld [vmem:[%s0 + $0x8] sm:$0xff]
    %v37 = vld [vmem:[%s0 + $0x10] sm:$0xff]
    %v38 = vld [vmem:[%s0 + $0x18] sm:$0xff]
    %v39 = vld [vmem:[%s0 + $0x20] sm:$0xff]
    %v40 = vld [vmem:[%s0 + $0x28] sm:$0xff]
    %v41 = vld [vmem:[%s0 + $0x30] sm:$0xff]
    %v42 = vld [vmem:[%s0 + $0x38] sm:$0xff]
    %vm43 = vcmask 523264
    %44 = vst.msk [vmem:[#allocation2 + $0x8] sm:$0xff] %vm43, %v35
    %45 = vst.msk [vmem:[#allocation2 + $0x10] sm:$0xff] %vm43, %v36
    %46 = vst.msk [vmem:[#allocation2 + $0x18] sm:$0xff] %vm43, %v37
    %47 = vst.msk [vmem:[#allocation2 + $0x20] sm:$0xff] %vm43, %v38
    %48 = vst.msk [vmem:[#allocation2 + $0x28] sm:$0xff] %vm43, %v39
    %49 = vst.msk [vmem:[#allocation2 + $0x30] sm:$0xff] %vm43, %v40
    %50 = vst.msk [vmem:[#allocation2 + $0x38] sm:$0xff] %vm43, %v41
    %51 = vst.msk [vmem:[#allocation2 + $0x40] sm:$0xff] %vm43, %v42
    %v52 = vld [vmem:[#allocation2 + $0x6] sm:$0xff]
    %v53 = vld [vmem:[#allocation2 + $0xe] sm:$0xff]
    %v54 = vld [vmem:[#allocation2 + $0x16] sm:$0xff]
    %v55 = vld [vmem:[#allocation2 + $0x1e] sm:$0xff]
    %v56 = vld [vmem:[#allocation2 + $0x26] sm:$0xff]
    %v57 = vld [vmem:[#allocation2 + $0x2e] sm:$0xff]
    %v58 = vld [vmem:[#allocation2 + $0x36] sm:$0xff]
    %v59 = vld [vmem:[#allocation2 + $0x3e] sm:$0xff]
    %60 = vrot.lane.b32.xlu0 %v52, 2
    %v61 = vpop.permute.xlu0 %60
    %62 = vrot.lane.b32.xlu0 %v53, 2
    %v63 = vpop.permute.xlu0 %62
    %64 = vrot.lane.b32.xlu0 %v54, 2
    %v65 = vpop.permute.xlu0 %64
    %66 = vrot.lane.b32.xlu0 %v55, 2
    %v67 = vpop.permute.xlu0 %66
    %68 = vrot.lane.b32.xlu0 %v56, 2
    %v69 = vpop.permute.xlu0 %68
    %70 = vrot.lane.b32.xlu0 %v57, 2
    %v71 = vpop.permute.xlu0 %70
    %72 = vrot.lane.b32.xlu0 %v58, 2
    %v73 = vpop.permute.xlu0 %72
    %74 = vrot.lane.b32.xlu0 %v59, 2
    %v75 = vpop.permute.xlu0 %74
    %s76 = sld [smem:[#allocation3]]
    %v77 = vstv %s76
    %v78 = vmul.f32 %v77, %v61
    %v79 = vmul.f32 %v77, %v63
    %v80 = vmul.f32 %v77, %v65
    %v81 = vmul.f32 %v77, %v67
    %v82 = vmul.f32 %v77, %v69
    %v83 = vmul.f32 %v77, %v71
    %v84 = vmul.f32 %v77, %v73
    %v85 = vmul.f32 %v77, %v75
    %s86 = sld [smem:[#allocation3 + $0x19]]
    %v87 = vstv %s86
    %v88 = vmul.f32 %v87, %v61
    %v89 = vmul.f32 %v87, %v63
    %v90 = vmul.f32 %v87, %v65
    %v91 = vmul.f32 %v87, %v67
    %v92 = vmul.f32 %v87, %v69
    %v93 = vmul.f32 %v87, %v71
    %v94 = vmul.f32 %v87, %v73
    %v95 = vmul.f32 %v87, %v75
    %s96 = sld [smem:[#allocation3 + $0x32]]
    %v97 = vstv %s96
    %v98 = vmul.f32 %v97, %v61
    %v99 = vmul.f32 %v97, %v63
    %v100 = vmul.f32 %v97, %v65
    %v101 = vmul.f32 %v97, %v67
    %v102 = vmul.f32 %v97, %v69
    %v103 = vmul.f32 %v97, %v71
    %v104 = vmul.f32 %v97, %v73
    %v105 = vmul.f32 %v97, %v75
    %106 = vrot.lane.b32.xlu0 %v52, 1
    %v107 = vpop.permute.xlu0 %106
    %108 = vrot.lane.b32.xlu0 %v53, 1
    %v109 = vpop.permute.xlu0 %108
    %110 = vrot.lane.b32.xlu0 %v54, 1
    %v111 = vpop.permute.xlu0 %110
    %112 = vrot.lane.b32.xlu0 %v55, 1
    %v113 = vpop.permute.xlu0 %112
    %114 = vrot.lane.b32.xlu0 %v56, 1
    %v115 = vpop.permute.xlu0 %114
    %116 = vrot.lane.b32.xlu0 %v57, 1
    %v117 = vpop.permute.xlu0 %116
    %118 = vrot.lane.b32.xlu0 %v58, 1
    %v119 = vpop.permute.xlu0 %118
    %120 = vrot.lane.b32.xlu0 %v59, 1
    %v121 = vpop.permute.xlu0 %120
    %s122 = sld [smem:[#allocation3 + $0x1]]
    %v123 = vstv %s122
    %v124 = vmul.f32 %v123, %v107
    %v125 = vmul.f32 %v123, %v109
    %v126 = vmul.f32 %v123, %v111
    %v127 = vmul.f32 %v123, %v113
    %v128 = vmul.f32 %v123, %v115
    %v129 = vmul.f32 %v123, %v117
    %v130 = vmul.f32 %v123, %v119
    %v131 = vmul.f32 %v123, %v121
    %v132 = vadd.f32 %v78, %v124
    %v133 = vadd.f32 %v79, %v125
    %v134 = vadd.f32 %v80, %v126
    %v135 = vadd.f32 %v81, %v127
    %v136 = vadd.f32 %v82, %v128
    %v137 = vadd.f32 %v83, %v129
    %v138 = vadd.f32 %v84, %v130
    %v139 = vadd.f32 %v85, %v131
    %s140 = sld [smem:[#allocation3 + $0x1a]]
    %v141 = vstv %s140
    %v142 = vmul.f32 %v141, %v107
    %v143 = vmul.f32 %v141, %v109
    %v144 = vmul.f32 %v141, %v111
    %v145 = vmul.f32 %v141, %v113
    %v146 = vmul.f32 %v141, %v115
    %v147 = vmul.f32 %v141, %v117
    %v148 = vmul.f32 %v141, %v119
    %v149 = vmul.f32 %v141, %v121
    %v150 = vadd.f32 %v88, %v142
    %v151 = vadd.f32 %v89, %v143
    %v152 = vadd.f32 %v90, %v144
    %v153 = vadd.f32 %v91, %v145
    %v154 = vadd.f32 %v92, %v146
    %v155 = vadd.f32 %v93, %v147
    %v156 = vadd.f32 %v94, %v148
    %v157 = vadd.f32 %v95, %v149
    %s158 = sld [smem:[#allocation3 + $0x33]]
    %v159 = vstv %s158
    %v160 = vmul.f32 %v159, %v107
    %v161 = vmul.f32 %v159, %v109
    %v162 = vmul.f32 %v159, %v111
    %v163 = vmul.f32 %v159, %v113
    %v164 = vmul.f32 %v159, %v115
    %v165 = vmul.f32 %v159, %v117
    %v166 = vmul.f32 %v159, %v119
    %v167 = vmul.f32 %v159, %v121
    %v168 = vadd.f32 %v98, %v160
    %v169 = vadd.f32 %v99, %v161
    %v170 = vadd.f32 %v100, %v162
    %v171 = vadd.f32 %v101, %v163
    %v172 = vadd.f32 %v102, %v164
    %v173 = vadd.f32 %v103, %v165
    %v174 = vadd.f32 %v104, %v166
    %v175 = vadd.f32 %v105, %v167
    %s176 = sld [smem:[#allocation3 + $0x2]]
    %v177 = vstv %s176
    %v178 = vmul.f32 %v177, %v52
    %v179 = vmul.f32 %v177, %v53
    %v180 = vmul.f32 %v177, %v54
    %v181 = vmul.f32 %v177, %v55
    %v182 = vmul.f32 %v177, %v56
    %v183 = vmul.f32 %v177, %v57
    %v184 = vmul.f32 %v177, %v58
    %v185 = vmul.f32 %v177, %v59
    %v186 = vadd.f32 %v132, %v178
    %v187 = vadd.f32 %v133, %v179
    %v188 = vadd.f32 %v134, %v180
    %v189 = vadd.f32 %v135, %v181
    %v190 = vadd.f32 %v136, %v182
    %v191 = vadd.f32 %v137, %v183
    %v192 = vadd.f32 %v138, %v184
    %v193 = vadd.f32 %v139, %v185
    %s194 = sld [smem:[#allocation3 + $0x1b]]
    %v195 = vstv %s194
    %v196 = vmul.f32 %v195, %v52
    %v197 = vmul.f32 %v195, %v53
    %v198 = vmul.f32 %v195, %v54
    %v199 = vmul.f32 %v195, %v55
    %v200 = vmul.f32 %v195, %v56
    %v201 = vmul.f32 %v195, %v57
    %v202 = vmul.f32 %v195, %v58
    %v203 = vmul.f32 %v195, %v59
    %v204 = vadd.f32 %v150, %v196
    %v205 = vadd.f32 %v151, %v197
    %v206 = vadd.f32 %v152, %v198
    %v207 = vadd.f32 %v153, %v199
    %v208 = vadd.f32 %v154, %v200
    %v209 = vadd.f32 %v155, %v201
    %v210 = vadd.f32 %v156, %v202
    %v211 = vadd.f32 %v157, %v203
    %s212 = sld [smem:[#allocation3 + $0x34]]
    %v213 = vstv %s212
    %v214 = vmul.f32 %v213, %v52
    %v215 = vmul.f32 %v213, %v53
    %v216 = vmul.f32 %v213, %v54
    %v217 = vmul.f32 %v213, %v55
    %v218 = vmul.f32 %v213, %v56
    %v219 = vmul.f32 %v213, %v57
    %v220 = vmul.f32 %v213, %v58
    %v221 = vmul.f32 %v213, %v59
    %v222 = vadd.f32 %v168, %v214
    %v223 = vadd.f32 %v169, %v215
    %v224 = vadd.f32 %v170, %v216
    %v225 = vadd.f32 %v171, %v217
    %v226 = vadd.f32 %v172, %v218
    %v227 = vadd.f32 %v173, %v219
    %v228 = vadd.f32 %v174, %v220
    %v229 = vadd.f32 %v175, %v221
    %230 = vrot.lane.b32.xlu0 %v52, 127
    %v231 = vpop.permute.xlu0 %230
    %232 = vrot.lane.b32.xlu0 %v53, 127
    %v233 = vpop.permute.xlu0 %232
    %234 = vrot.lane.b32.xlu0 %v54, 127
    %v235 = vpop.permute.xlu0 %234
    %236 = vrot.lane.b32.xlu0 %v55, 127
    %v237 = vpop.permute.xlu0 %236
    %238 = vrot.lane.b32.xlu0 %v56, 127
    %v239 = vpop.permute.xlu0 %238
    %240 = vrot.lane.b32.xlu0 %v57, 127
    %v241 = vpop.permute.xlu0 %240
    %242 = vrot.lane.b32.xlu0 %v58, 127
    %v243 = vpop.permute.xlu0 %242
    %244 = vrot.lane.b32.xlu0 %v59, 127
    %v245 = vpop.permute.xlu0 %244
    %s246 = sld [smem:[#allocation3 + $0x3]]
    %v247 = vstv %s246
    %v248 = vmul.f32 %v247, %v231
    %v249 = vmul.f32 %v247, %v233
    %v250 = vmul.f32 %v247, %v235
    %v251 = vmul.f32 %v247, %v237
    %v252 = vmul.f32 %v247, %v239
    %v253 = vmul.f32 %v247, %v241
    %v254 = vmul.f32 %v247, %v243
    %v255 = vmul.f32 %v247, %v245
    %v256 = vadd.f32 %v186, %v248
    %v257 = vadd.f32 %v187, %v249
    %v258 = vadd.f32 %v188, %v250
    %v259 = vadd.f32 %v189, %v251
    %v260 = vadd.f32 %v190, %v252
    %v261 = vadd.f32 %v191, %v253
    %v262 = vadd.f32 %v192, %v254
    %v263 = vadd.f32 %v193, %v255
    %s264 = sld [smem:[#allocation3 + $0x1c]]
    %v265 = vstv %s264
    %v266 = vmul.f32 %v265, %v231
    %v267 = vmul.f32 %v265, %v233
    %v268 = vmul.f32 %v265, %v235
    %v269 = vmul.f32 %v265, %v237
    %v270 = vmul.f32 %v265, %v239
    %v271 = vmul.f32 %v265, %v241
    %v272 = vmul.f32 %v265, %v243
    %v273 = vmul.f32 %v265, %v245
    %v274 = vadd.f32 %v204, %v266
    %v275 = vadd.f32 %v205, %v267
    %v276 = vadd.f32 %v206, %v268
    %v277 = vadd.f32 %v207, %v269
    %v278 = vadd.f32 %v208, %v270
    %v279 = vadd.f32 %v209, %v271
    %v280 = vadd.f32 %v210, %v272
    %v281 = vadd.f32 %v211, %v273
    %s282 = sld [smem:[#allocation3 + $0x35]]
    %v283 = vstv %s282
    %v284 = vmul.f32 %v283, %v231
    %v285 = vmul.f32 %v283, %v233
    %v286 = vmul.f32 %v283, %v235
    %v287 = vmul.f32 %v283, %v237
    %v288 = vmul.f32 %v283, %v239
    %v289 = vmul.f32 %v283, %v241
    %v290 = vmul.f32 %v283, %v243
    %v291 = vmul.f32 %v283, %v245
    %v292 = vadd.f32 %v222, %v284
    %v293 = vadd.f32 %v223, %v285
    %v294 = vadd.f32 %v224, %v286
    %v295 = vadd.f32 %v225, %v287
    %v296 = vadd.f32 %v226, %v288
    %v297 = vadd.f32 %v227, %v289
    %v298 = vadd.f32 %v228, %v290
    %v299 = vadd.f32 %v229, %v291
    %300 = vrot.lane.b32.xlu0 %v52, 126
    %v301 = vpop.permute.xlu0 %300
    %302 = vrot.lane.b32.xlu0 %v53, 126
    %v303 = vpop.permute.xlu0 %302
    %304 = vrot.lane.b32.xlu0 %v54, 126
    %v305 = vpop.permute.xlu0 %304
    %306 = vrot.lane.b32.xlu0 %v55, 126
    %v307 = vpop.permute.xlu0 %306
    %308 = vrot.lane.b32.xlu0 %v56, 126
    %v309 = vpop.permute.xlu0 %308
    %310 = vrot.lane.b32.xlu0 %v57, 126
    %v311 = vpop.permute.xlu0 %310
    %312 = vrot.lane.b32.xlu0 %v58, 126
    %v313 = vpop.permute.xlu0 %312
    %314 = vrot.lane.b32.xlu0 %v59, 126
    %v315 = vpop.permute.xlu0 %314
    %s316 = sld [smem:[#allocation3 + $0x4]]
    %v317 = vstv %s316
    %v318 = vmul.f32 %v317, %v301
    %v319 = vmul.f32 %v317, %v303
    %v320 = vmul.f32 %v317, %v305
    %v321 = vmul.f32 %v317, %v307
    %v322 = vmul.f32 %v317, %v309
    %v323 = vmul.f32 %v317, %v311
    %v324 = vmul.f32 %v317, %v313
    %v325 = vmul.f32 %v317, %v315
    %v326 = vadd.f32 %v256, %v318
    %v327 = vadd.f32 %v257, %v319
    %v328 = vadd.f32 %v258, %v320
    %v329 = vadd.f32 %v259, %v321
    %v330 = vadd.f32 %v260, %v322
    %v331 = vadd.f32 %v261, %v323
    %v332 = vadd.f32 %v262, %v324
    %v333 = vadd.f32 %v263, %v325
    %s334 = sld [smem:[#allocation3 + $0x1d]]
    %v335 = vstv %s334
    %v336 = vmul.f32 %v335, %v301
    %v337 = vmul.f32 %v335, %v303
    %v338 = vmul.f32 %v335, %v305
    %v339 = vmul.f32 %v335, %v307
    %v340 = vmul.f32 %v335, %v309
    %v341 = vmul.f32 %v335, %v311
    %v342 = vmul.f32 %v335, %v313
    %v343 = vmul.f32 %v335, %v315
    %v344 = vadd.f32 %v274, %v336
    %v345 = vadd.f32 %v275, %v337
    %v346 = vadd.f32 %v276, %v338
    %v347 = vadd.f32 %v277, %v339
    %v348 = vadd.f32 %v278, %v340
    %v349 = vadd.f32 %v279, %v341
    %v350 = vadd.f32 %v280, %v342
    %v351 = vadd.f32 %v281, %v343
    %s352 = sld [smem:[#allocation3 + $0x36]]
    %v353 = vstv %s352
    %v354 = vmul.f32 %v353, %v301
    %v355 = vmul.f32 %v353, %v303
    %v356 = vmul.f32 %v353, %v305
    %v357 = vmul.f32 %v353, %v307
    %v358 = vmul.f32 %v353, %v309
    %v359 = vmul.f32 %v353, %v311
    %v360 = vmul.f32 %v353, %v313
    %v361 = vmul.f32 %v353, %v315
    %v362 = vadd.f32 %v292, %v354
    %v363 = vadd.f32 %v293, %v355
    %v364 = vadd.f32 %v294, %v356
    %v365 = vadd.f32 %v295, %v357
    %v366 = vadd.f32 %v296, %v358
    %v367 = vadd.f32 %v297, %v359
    %v368 = vadd.f32 %v298, %v360
    %v369 = vadd.f32 %v299, %v361
    %v370 = vld [vmem:[#allocation2 + $0x7] sm:$0xff]
    %v371 = vld [vmem:[#allocation2 + $0xf] sm:$0xff]
    %v372 = vld [vmem:[#allocation2 + $0x17] sm:$0xff]
    %v373 = vld [vmem:[#allocation2 + $0x1f] sm:$0xff]
    %v374 = vld [vmem:[#allocation2 + $0x27] sm:$0xff]
    %v375 = vld [vmem:[#allocation2 + $0x2f] sm:$0xff]
    %v376 = vld [vmem:[#allocation2 + $0x37] sm:$0xff]
    %v377 = vld [vmem:[#allocation2 + $0x3f] sm:$0xff]
    %378 = vrot.lane.b32.xlu0 %v370, 2
    %v379 = vpop.permute.xlu0 %378
    %380 = vrot.lane.b32.xlu0 %v371, 2
    %v381 = vpop.permute.xlu0 %380
    %382 = vrot.lane.b32.xlu0 %v372, 2
    %v383 = vpop.permute.xlu0 %382
    %384 = vrot.lane.b32.xlu0 %v373, 2
    %v385 = vpop.permute.xlu0 %384
    %386 = vrot.lane.b32.xlu0 %v374, 2
    %v387 = vpop.permute.xlu0 %386
    %388 = vrot.lane.b32.xlu0 %v375, 2
    %v389 = vpop.permute.xlu0 %388
    %390 = vrot.lane.b32.xlu0 %v376, 2
    %v391 = vpop.permute.xlu0 %390
    %392 = vrot.lane.b32.xlu0 %v377, 2
    %v393 = vpop.permute.xlu0 %392
    %s394 = sld [smem:[#allocation3 + $0x5]]
    %v395 = vstv %s394
    %v396 = vmul.f32 %v395, %v379
    %v397 = vmul.f32 %v395, %v381
    %v398 = vmul.f32 %v395, %v383
    %v399 = vmul.f32 %v395, %v385
    %v400 = vmul.f32 %v395, %v387
    %v401 = vmul.f32 %v395, %v389
    %v402 = vmul.f32 %v395, %v391
    %v403 = vmul.f32 %v395, %v393
    %v404 = vadd.f32 %v326, %v396
    %v405 = vadd.f32 %v327, %v397
    %v406 = vadd.f32 %v328, %v398
    %v407 = vadd.f32 %v329, %v399
    %v408 = vadd.f32 %v330, %v400
    %v409 = vadd.f32 %v331, %v401
    %v410 = vadd.f32 %v332, %v402
    %v411 = vadd.f32 %v333, %v403
    %s412 = sld [smem:[#allocation3 + $0x1e]]
    %v413 = vstv %s412
    %v414 = vmul.f32 %v413, %v379
    %v415 = vmul.f32 %v413, %v381
    %v416 = vmul.f32 %v413, %v383
    %v417 = vmul.f32 %v413, %v385
    %v418 = vmul.f32 %v413, %v387
    %v419 = vmul.f32 %v413, %v389
    %v420 = vmul.f32 %v413, %v391
    %v421 = vmul.f32 %v413, %v393
    %v422 = vadd.f32 %v344, %v414
    %v423 = vadd.f32 %v345, %v415
    %v424 = vadd.f32 %v346, %v416
    %v425 = vadd.f32 %v347, %v417
    %v426 = vadd.f32 %v348, %v418
    %v427 = vadd.f32 %v349, %v419
    %v428 = vadd.f32 %v350, %v420
    %v429 = vadd.f32 %v351, %v421
    %s430 = sld [smem:[#allocation3 + $0x37]]
    %v431 = vstv %s430
    %v432 = vmul.f32 %v431, %v379
    %v433 = vmul.f32 %v431, %v381
    %v434 = vmul.f32 %v431, %v383
    %v435 = vmul.f32 %v431, %v385
    %v436 = vmul.f32 %v431, %v387
    %v437 = vmul.f32 %v431, %v389
    %v438 = vmul.f32 %v431, %v391
    %v439 = vmul.f32 %v431, %v393
    %v440 = vadd.f32 %v362, %v432
    %v441 = vadd.f32 %v363, %v433
    %v442 = vadd.f32 %v364, %v434
    %v443 = vadd.f32 %v365, %v435
    %v444 = vadd.f32 %v366, %v436
    %v445 = vadd.f32 %v367, %v437
    %v446 = vadd.f32 %v368, %v438
    %v447 = vadd.f32 %v369, %v439
    %448 = vrot.lane.b32.xlu0 %v370, 1
    %v449 = vpop.permute.xlu0 %448
    %450 = vrot.lane.b32.xlu0 %v371, 1
    %v451 = vpop.permute.xlu0 %450
    %452 = vrot.lane.b32.xlu0 %v372, 1
    %v453 = vpop.permute.xlu0 %452
    %454 = vrot.lane.b32.xlu0 %v373, 1
    %v455 = vpop.permute.xlu0 %454
    %456 = vrot.lane.b32.xlu0 %v374, 1
    %v457 = vpop.permute.xlu0 %456
    %458 = vrot.lane.b32.xlu0 %v375, 1
    %v459 = vpop.permute.xlu0 %458
    %460 = vrot.lane.b32.xlu0 %v376, 1
    %v461 = vpop.permute.xlu0 %460
    %462 = vrot.lane.b32.xlu0 %v377, 1
    %v463 = vpop.permute.xlu0 %462
    %s464 = sld [smem:[#allocation3 + $0x6]]
    %v465 = vstv %s464
    %v466 = vmul.f32 %v465, %v449
    %v467 = vmul.f32 %v465, %v451
    %v468 = vmul.f32 %v465, %v453
    %v469 = vmul.f32 %v465, %v455
    %v470 = vmul.f32 %v465, %v457
    %v471 = vmul.f32 %v465, %v459
    %v472 = vmul.f32 %v465, %v461
    %v473 = vmul.f32 %v465, %v463
    %v474 = vadd.f32 %v404, %v466
    %v475 = vadd.f32 %v405, %v467
    %v476 = vadd.f32 %v406, %v468
    %v477 = vadd.f32 %v407, %v469
    %v478 = vadd.f32 %v408, %v470
    %v479 = vadd.f32 %v409, %v471
    %v480 = vadd.f32 %v410, %v472
    %v481 = vadd.f32 %v411, %v473
    %s482 = sld [smem:[#allocation3 + $0x1f]]
    %v483 = vstv %s482
    %v484 = vmul.f32 %v483, %v449
    %v485 = vmul.f32 %v483, %v451
    %v486 = vmul.f32 %v483, %v453
    %v487 = vmul.f32 %v483, %v455
    %v488 = vmul.f32 %v483, %v457
    %v489 = vmul.f32 %v483, %v459
    %v490 = vmul.f32 %v483, %v461
    %v491 = vmul.f32 %v483, %v463
    %v492 = vadd.f32 %v422, %v484
    %v493 = vadd.f32 %v423, %v485
    %v494 = vadd.f32 %v424, %v486
    %v495 = vadd.f32 %v425, %v487
    %v496 = vadd.f32 %v426, %v488
    %v497 = vadd.f32 %v427, %v489
    %v498 = vadd.f32 %v428, %v490
    %v499 = vadd.f32 %v429, %v491
    %s500 = sld [smem:[#allocation3 + $0x38]]
    %v501 = vstv %s500
    %v502 = vmul.f32 %v501, %v449
    %v503 = vmul.f32 %v501, %v451
    %v504 = vmul.f32 %v501, %v453
    %v505 = vmul.f32 %v501, %v455
    %v506 = vmul.f32 %v501, %v457
    %v507 = vmul.f32 %v501, %v459
    %v508 = vmul.f32 %v501, %v461
    %v509 = vmul.f32 %v501, %v463
    %v510 = vadd.f32 %v440, %v502
    %v511 = vadd.f32 %v441, %v503
    %v512 = vadd.f32 %v442, %v504
    %v513 = vadd.f32 %v443, %v505
    %v514 = vadd.f32 %v444, %v506
    %v515 = vadd.f32 %v445, %v507
    %v516 = vadd.f32 %v446, %v508
    %v517 = vadd.f32 %v447, %v509
    %s518 = sld [smem:[#allocation3 + $0x7]]
    %v519 = vstv %s518
    %v520 = vmul.f32 %v519, %v370
    %v521 = vmul.f32 %v519, %v371
    %v522 = vmul.f32 %v519, %v372
    %v523 = vmul.f32 %v519, %v373
    %v524 = vmul.f32 %v519, %v374
    %v525 = vmul.f32 %v519, %v375
    %v526 = vmul.f32 %v519, %v376
    %v527 = vmul.f32 %v519, %v377
    %v528 = vadd.f32 %v474, %v520
    %v529 = vadd.f32 %v475, %v521
    %v530 = vadd.f32 %v476, %v522
    %v531 = vadd.f32 %v477, %v523
    %v532 = vadd.f32 %v478, %v524
    %v533 = vadd.f32 %v479, %v525
    %v534 = vadd.f32 %v480, %v526
    %v535 = vadd.f32 %v481, %v527
    %s536 = sld [smem:[#allocation3 + $0x20]]
    %v537 = vstv %s536
    %v538 = vmul.f32 %v537, %v370
    %v539 = vmul.f32 %v537, %v371
    %v540 = vmul.f32 %v537, %v372
    %v541 = vmul.f32 %v537, %v373
    %v542 = vmul.f32 %v537, %v374
    %v543 = vmul.f32 %v537, %v375
    %v544 = vmul.f32 %v537, %v376
    %v545 = vmul.f32 %v537, %v377
    %v546 = vadd.f32 %v492, %v538
    %v547 = vadd.f32 %v493, %v539
    %v548 = vadd.f32 %v494, %v540
    %v549 = vadd.f32 %v495, %v541
    %v550 = vadd.f32 %v496, %v542
    %v551 = vadd.f32 %v497, %v543
    %v552 = vadd.f32 %v498, %v544
    %v553 = vadd.f32 %v499, %v545
    %s554 = sld [smem:[#allocation3 + $0x39]]
    %v555 = vstv %s554
    %v556 = vmul.f32 %v555, %v370
    %v557 = vmul.f32 %v555, %v371
    %v558 = vmul.f32 %v555, %v372
    %v559 = vmul.f32 %v555, %v373
    %v560 = vmul.f32 %v555, %v374
    %v561 = vmul.f32 %v555, %v375
    %v562 = vmul.f32 %v555, %v376
    %v563 = vmul.f32 %v555, %v377
    %v564 = vadd.f32 %v510, %v556
    %v565 = vadd.f32 %v511, %v557
    %v566 = vadd.f32 %v512, %v558
    %v567 = vadd.f32 %v513, %v559
    %v568 = vadd.f32 %v514, %v560
    %v569 = vadd.f32 %v515, %v561
    %v570 = vadd.f32 %v516, %v562
    %v571 = vadd.f32 %v517, %v563
    %572 = vrot.lane.b32.xlu0 %v370, 127
    %v573 = vpop.permute.xlu0 %572
    %574 = vrot.lane.b32.xlu0 %v371, 127
    %v575 = vpop.permute.xlu0 %574
    %576 = vrot.lane.b32.xlu0 %v372, 127
    %v577 = vpop.permute.xlu0 %576
    %578 = vrot.lane.b32.xlu0 %v373, 127
    %v579 = vpop.permute.xlu0 %578
    %580 = vrot.lane.b32.xlu0 %v374, 127
    %v581 = vpop.permute.xlu0 %580
    %582 = vrot.lane.b32.xlu0 %v375, 127
    %v583 = vpop.permute.xlu0 %582
    %584 = vrot.lane.b32.xlu0 %v376, 127
    %v585 = vpop.permute.xlu0 %584
    %586 = vrot.lane.b32.xlu0 %v377, 127
    %v587 = vpop.permute.xlu0 %586
    %s588 = sld [smem:[#allocation3 + $0x8]]
    %v589 = vstv %s588
    %v590 = vmul.f32 %v589, %v573
    %v591 = vmul.f32 %v589, %v575
    %v592 = vmul.f32 %v589, %v577
    %v593 = vmul.f32 %v589, %v579
    %v594 = vmul.f32 %v589, %v581
    %v595 = vmul.f32 %v589, %v583
    %v596 = vmul.f32 %v589, %v585
    %v597 = vmul.f32 %v589, %v587
    %v598 = vadd.f32 %v528, %v590
    %v599 = vadd.f32 %v529, %v591
    %v600 = vadd.f32 %v530, %v592
    %v601 = vadd.f32 %v531, %v593
    %v602 = vadd.f32 %v532, %v594
    %v603 = vadd.f32 %v533, %v595
    %v604 = vadd.f32 %v534, %v596
    %v605 = vadd.f32 %v535, %v597
    %s606 = sld [smem:[#allocation3 + $0x21]]
    %v607 = vstv %s606
    %v608 = vmul.f32 %v607, %v573
    %v609 = vmul.f32 %v607, %v575
    %v610 = vmul.f32 %v607, %v577
    %v611 = vmul.f32 %v607, %v579
    %v612 = vmul.f32 %v607, %v581
    %v613 = vmul.f32 %v607, %v583
    %v614 = vmul.f32 %v607, %v585
    %v615 = vmul.f32 %v607, %v587
    %v616 = vadd.f32 %v546, %v608
    %v617 = vadd.f32 %v547, %v609
    %v618 = vadd.f32 %v548, %v610
    %v619 = vadd.f32 %v549, %v611
    %v620 = vadd.f32 %v550, %v612
    %v621 = vadd.f32 %v551, %v613
    %v622 = vadd.f32 %v552, %v614
    %v623 = vadd.f32 %v553, %v615
    %s624 = sld [smem:[#allocation3 + $0x3a]]
    %v625 = vstv %s624
    %v626 = vmul.f32 %v625, %v573
    %v627 = vmul.f32 %v625, %v575
    %v628 = vmul.f32 %v625, %v577
    %v629 = vmul.f32 %v625, %v579
    %v630 = vmul.f32 %v625, %v581
    %v631 = vmul.f32 %v625, %v583
    %v632 = vmul.f32 %v625, %v585
    %v633 = vmul.f32 %v625, %v587
    %v634 = vadd.f32 %v564, %v626
    %v635 = vadd.f32 %v565, %v627
    %v636 = vadd.f32 %v566, %v628
    %v637 = vadd.f32 %v567, %v629
    %v638 = vadd.f32 %v568, %v630
    %v639 = vadd.f32 %v569, %v631
    %v640 = vadd.f32 %v570, %v632
    %v641 = vadd.f32 %v571, %v633
    %642 = vrot.lane.b32.xlu0 %v370, 126
    %v643 = vpop.permute.xlu0 %642
    %644 = vrot.lane.b32.xlu0 %v371, 126
    %v645 = vpop.permute.xlu0 %644
    %646 = vrot.lane.b32.xlu0 %v372, 126
    %v647 = vpop.permute.xlu0 %646
    %648 = vrot.lane.b32.xlu0 %v373, 126
    %v649 = vpop.permute.xlu0 %648
    %650 = vrot.lane.b32.xlu0 %v374, 126
    %v651 = vpop.permute.xlu0 %650
    %652 = vrot.lane.b32.xlu0 %v375, 126
    %v653 = vpop.permute.xlu0 %652
    %654 = vrot.lane.b32.xlu0 %v376, 126
    %v655 = vpop.permute.xlu0 %654
    %656 = vrot.lane.b32.xlu0 %v377, 126
    %v657 = vpop.permute.xlu0 %656
    %s658 = sld [smem:[#allocation3 + $0x9]]
    %v659 = vstv %s658
    %v660 = vmul.f32 %v659, %v643
    %v661 = vmul.f32 %v659, %v645
    %v662 = vmul.f32 %v659, %v647
    %v663 = vmul.f32 %v659, %v649
    %v664 = vmul.f32 %v659, %v651
    %v665 = vmul.f32 %v659, %v653
    %v666 = vmul.f32 %v659, %v655
    %v667 = vmul.f32 %v659, %v657
    %v668 = vadd.f32 %v598, %v660
    %v669 = vadd.f32 %v599, %v661
    %v670 = vadd.f32 %v600, %v662
    %v671 = vadd.f32 %v601, %v663
    %v672 = vadd.f32 %v602, %v664
    %v673 = vadd.f32 %v603, %v665
    %v674 = vadd.f32 %v604, %v666
    %v675 = vadd.f32 %v605, %v667
    %s676 = sld [smem:[#allocation3 + $0x22]]
    %v677 = vstv %s676
    %v678 = vmul.f32 %v677, %v643
    %v679 = vmul.f32 %v677, %v645
    %v680 = vmul.f32 %v677, %v647
    %v681 = vmul.f32 %v677, %v649
    %v682 = vmul.f32 %v677, %v651
    %v683 = vmul.f32 %v677, %v653
    %v684 = vmul.f32 %v677, %v655
    %v685 = vmul.f32 %v677, %v657
    %v686 = vadd.f32 %v616, %v678
    %v687 = vadd.f32 %v617, %v679
    %v688 = vadd.f32 %v618, %v680
    %v689 = vadd.f32 %v619, %v681
    %v690 = vadd.f32 %v620, %v682
    %v691 = vadd.f32 %v621, %v683
    %v692 = vadd.f32 %v622, %v684
    %v693 = vadd.f32 %v623, %v685
    %s694 = sld [smem:[#allocation3 + $0x3b]]
    %v695 = vstv %s694
    %v696 = vmul.f32 %v695, %v643
    %v697 = vmul.f32 %v695, %v645
    %v698 = vmul.f32 %v695, %v647
    %v699 = vmul.f32 %v695, %v649
    %v700 = vmul.f32 %v695, %v651
    %v701 = vmul.f32 %v695, %v653
    %v702 = vmul.f32 %v695, %v655
    %v703 = vmul.f32 %v695, %v657
    %v704 = vadd.f32 %v634, %v696
    %v705 = vadd.f32 %v635, %v697
    %v706 = vadd.f32 %v636, %v698
    %v707 = vadd.f32 %v637, %v699
    %v708 = vadd.f32 %v638, %v700
    %v709 = vadd.f32 %v639, %v701
    %v710 = vadd.f32 %v640, %v702
    %v711 = vadd.f32 %v641, %v703
    %v712 = vld [vmem:[#allocation2 + $0x8] sm:$0xff]
    %v713 = vld [vmem:[#allocation2 + $0x10] sm:$0xff]
    %v714 = vld [vmem:[#allocation2 + $0x18] sm:$0xff]
    %v715 = vld [vmem:[#allocation2 + $0x20] sm:$0xff]
    %v716 = vld [vmem:[#allocation2 + $0x28] sm:$0xff]
    %v717 = vld [vmem:[#allocation2 + $0x30] sm:$0xff]
    %v718 = vld [vmem:[#allocation2 + $0x38] sm:$0xff]
    %v719 = vld [vmem:[#allocation2 + $0x40] sm:$0xff]
    %720 = vrot.lane.b32.xlu0 %v712, 2
    %v721 = vpop.permute.xlu0 %720
    %722 = vrot.lane.b32.xlu0 %v713, 2
    %v723 = vpop.permute.xlu0 %722
    %724 = vrot.lane.b32.xlu0 %v714, 2
    %v725 = vpop.permute.xlu0 %724
    %726 = vrot.lane.b32.xlu0 %v715, 2
    %v727 = vpop.permute.xlu0 %726
    %728 = vrot.lane.b32.xlu0 %v716, 2
    %v729 = vpop.permute.xlu0 %728
    %730 = vrot.lane.b32.xlu0 %v717, 2
    %v731 = vpop.permute.xlu0 %730
    %732 = vrot.lane.b32.xlu0 %v718, 2
    %v733 = vpop.permute.xlu0 %732
    %734 = vrot.lane.b32.xlu0 %v719, 2
    %v735 = vpop.permute.xlu0 %734
    %s736 = sld [smem:[#allocation3 + $0xa]]
    %v737 = vstv %s736
    %v738 = vmul.f32 %v737, %v721
    %v739 = vmul.f32 %v737, %v723
    %v740 = vmul.f32 %v737, %v725
    %v741 = vmul.f32 %v737, %v727
    %v742 = vmul.f32 %v737, %v729
    %v743 = vmul.f32 %v737, %v731
    %v744 = vmul.f32 %v737, %v733
    %v745 = vmul.f32 %v737, %v735
    %v746 = vadd.f32 %v668, %v738
    %v747 = vadd.f32 %v669, %v739
    %v748 = vadd.f32 %v670, %v740
    %v749 = vadd.f32 %v671, %v741
    %v750 = vadd.f32 %v672, %v742
    %v751 = vadd.f32 %v673, %v743
    %v752 = vadd.f32 %v674, %v744
    %v753 = vadd.f32 %v675, %v745
    %s754 = sld [smem:[#allocation3 + $0x23]]
    %v755 = vstv %s754
    %v756 = vmul.f32 %v755, %v721
    %v757 = vmul.f32 %v755, %v723
    %v758 = vmul.f32 %v755, %v725
    %v759 = vmul.f32 %v755, %v727
    %v760 = vmul.f32 %v755, %v729
    %v761 = vmul.f32 %v755, %v731
    %v762 = vmul.f32 %v755, %v733
    %v763 = vmul.f32 %v755, %v735
    %v764 = vadd.f32 %v686, %v756
    %v765 = vadd.f32 %v687, %v757
    %v766 = vadd.f32 %v688, %v758
    %v767 = vadd.f32 %v689, %v759
    %v768 = vadd.f32 %v690, %v760
    %v769 = vadd.f32 %v691, %v761
    %v770 = vadd.f32 %v692, %v762
    %v771 = vadd.f32 %v693, %v763
    %s772 = sld [smem:[#allocation3 + $0x3c]]
    %v773 = vstv %s772
    %v774 = vmul.f32 %v773, %v721
    %v775 = vmul.f32 %v773, %v723
    %v776 = vmul.f32 %v773, %v725
    %v777 = vmul.f32 %v773, %v727
    %v778 = vmul.f32 %v773, %v729
    %v779 = vmul.f32 %v773, %v731
    %v780 = vmul.f32 %v773, %v733
    %v781 = vmul.f32 %v773, %v735
    %v782 = vadd.f32 %v704, %v774
    %v783 = vadd.f32 %v705, %v775
    %v784 = vadd.f32 %v706, %v776
    %v785 = vadd.f32 %v707, %v777
    %v786 = vadd.f32 %v708, %v778
    %v787 = vadd.f32 %v709, %v779
    %v788 = vadd.f32 %v710, %v780
    %v789 = vadd.f32 %v711, %v781
    %790 = vrot.lane.b32.xlu0 %v712, 1
    %v791 = vpop.permute.xlu0 %790
    %792 = vrot.lane.b32.xlu0 %v713, 1
    %v793 = vpop.permute.xlu0 %792
    %794 = vrot.lane.b32.xlu0 %v714, 1
    %v795 = vpop.permute.xlu0 %794
    %796 = vrot.lane.b32.xlu0 %v715, 1
    %v797 = vpop.permute.xlu0 %796
    %798 = vrot.lane.b32.xlu0 %v716, 1
    %v799 = vpop.permute.xlu0 %798
    %800 = vrot.lane.b32.xlu0 %v717, 1
    %v801 = vpop.permute.xlu0 %800
    %802 = vrot.lane.b32.xlu0 %v718, 1
    %v803 = vpop.permute.xlu0 %802
    %804 = vrot.lane.b32.xlu0 %v719, 1
    %v805 = vpop.permute.xlu0 %804
    %s806 = sld [smem:[#allocation3 + $0xb]]
    %v807 = vstv %s806
    %v808 = vmul.f32 %v807, %v791
    %v809 = vmul.f32 %v807, %v793
    %v810 = vmul.f32 %v807, %v795
    %v811 = vmul.f32 %v807, %v797
    %v812 = vmul.f32 %v807, %v799
    %v813 = vmul.f32 %v807, %v801
    %v814 = vmul.f32 %v807, %v803
    %v815 = vmul.f32 %v807, %v805
    %v816 = vadd.f32 %v746, %v808
    %v817 = vadd.f32 %v747, %v809
    %v818 = vadd.f32 %v748, %v810
    %v819 = vadd.f32 %v749, %v811
    %v820 = vadd.f32 %v750, %v812
    %v821 = vadd.f32 %v751, %v813
    %v822 = vadd.f32 %v752, %v814
    %v823 = vadd.f32 %v753, %v815
    %s824 = sld [smem:[#allocation3 + $0x24]]
    %v825 = vstv %s824
    %v826 = vmul.f32 %v825, %v791
    %v827 = vmul.f32 %v825, %v793
    %v828 = vmul.f32 %v825, %v795
    %v829 = vmul.f32 %v825, %v797
    %v830 = vmul.f32 %v825, %v799
    %v831 = vmul.f32 %v825, %v801
    %v832 = vmul.f32 %v825, %v803
    %v833 = vmul.f32 %v825, %v805
    %v834 = vadd.f32 %v764, %v826
    %v835 = vadd.f32 %v765, %v827
    %v836 = vadd.f32 %v766, %v828
    %v837 = vadd.f32 %v767, %v829
    %v838 = vadd.f32 %v768, %v830
    %v839 = vadd.f32 %v769, %v831
    %v840 = vadd.f32 %v770, %v832
    %v841 = vadd.f32 %v771, %v833
    %s842 = sld [smem:[#allocation3 + $0x3d]]
    %v843 = vstv %s842
    %v844 = vmul.f32 %v843, %v791
    %v845 = vmul.f32 %v843, %v793
    %v846 = vmul.f32 %v843, %v795
    %v847 = vmul.f32 %v843, %v797
    %v848 = vmul.f32 %v843, %v799
    %v849 = vmul.f32 %v843, %v801
    %v850 = vmul.f32 %v843, %v803
    %v851 = vmul.f32 %v843, %v805
    %v852 = vadd.f32 %v782, %v844
    %v853 = vadd.f32 %v783, %v845
    %v854 = vadd.f32 %v784, %v846
    %v855 = vadd.f32 %v785, %v847
    %v856 = vadd.f32 %v786, %v848
    %v857 = vadd.f32 %v787, %v849
    %v858 = vadd.f32 %v788, %v850
    %v859 = vadd.f32 %v789, %v851
    %s860 = sld [smem:[#allocation3 + $0xc]]
    %v861 = vstv %s860
    %v862 = vmul.f32 %v861, %v712
    %v863 = vmul.f32 %v861, %v713
    %v864 = vmul.f32 %v861, %v714
    %v865 = vmul.f32 %v861, %v715
    %v866 = vmul.f32 %v861, %v716
    %v867 = vmul.f32 %v861, %v717
    %v868 = vmul.f32 %v861, %v718
    %v869 = vmul.f32 %v861, %v719
    %v870 = vadd.f32 %v816, %v862
    %v871 = vadd.f32 %v817, %v863
    %v872 = vadd.f32 %v818, %v864
    %v873 = vadd.f32 %v819, %v865
    %v874 = vadd.f32 %v820, %v866
    %v875 = vadd.f32 %v821, %v867
    %v876 = vadd.f32 %v822, %v868
    %v877 = vadd.f32 %v823, %v869
    %s878 = sld [smem:[#allocation3 + $0x25]]
    %v879 = vstv %s878
    %v880 = vmul.f32 %v879, %v712
    %v881 = vmul.f32 %v879, %v713
    %v882 = vmul.f32 %v879, %v714
    %v883 = vmul.f32 %v879, %v715
    %v884 = vmul.f32 %v879, %v716
    %v885 = vmul.f32 %v879, %v717
    %v886 = vmul.f32 %v879, %v718
    %v887 = vmul.f32 %v879, %v719
    %v888 = vadd.f32 %v834, %v880
    %v889 = vadd.f32 %v835, %v881
    %v890 = vadd.f32 %v836, %v882
    %v891 = vadd.f32 %v837, %v883
    %v892 = vadd.f32 %v838, %v884
    %v893 = vadd.f32 %v839, %v885
    %v894 = vadd.f32 %v840, %v886
    %v895 = vadd.f32 %v841, %v887
    %s896 = sld [smem:[#allocation3 + $0x3e]]
    %v897 = vstv %s896
    %v898 = vmul.f32 %v897, %v712
    %v899 = vmul.f32 %v897, %v713
    %v900 = vmul.f32 %v897, %v714
    %v901 = vmul.f32 %v897, %v715
    %v902 = vmul.f32 %v897, %v716
    %v903 = vmul.f32 %v897, %v717
    %v904 = vmul.f32 %v897, %v718
    %v905 = vmul.f32 %v897, %v719
    %v906 = vadd.f32 %v852, %v898
    %v907 = vadd.f32 %v853, %v899
    %v908 = vadd.f32 %v854, %v900
    %v909 = vadd.f32 %v855, %v901
    %v910 = vadd.f32 %v856, %v902
    %v911 = vadd.f32 %v857, %v903
    %v912 = vadd.f32 %v858, %v904
    %v913 = vadd.f32 %v859, %v905
    %914 = vrot.lane.b32.xlu0 %v712, 127
    %v915 = vpop.permute.xlu0 %914
    %916 = vrot.lane.b32.xlu0 %v713, 127
    %v917 = vpop.permute.xlu0 %916
    %918 = vrot.lane.b32.xlu0 %v714, 127
    %v919 = vpop.permute.xlu0 %918
    %920 = vrot.lane.b32.xlu0 %v715, 127
    %v921 = vpop.permute.xlu0 %920
    %922 = vrot.lane.b32.xlu0 %v716, 127
    %v923 = vpop.permute.xlu0 %922
    %924 = vrot.lane.b32.xlu0 %v717, 127
    %v925 = vpop.permute.xlu0 %924
    %926 = vrot.lane.b32.xlu0 %v718, 127
    %v927 = vpop.permute.xlu0 %926
    %928 = vrot.lane.b32.xlu0 %v719, 127
    %v929 = vpop.permute.xlu0 %928
    %s930 = sld [smem:[#allocation3 + $0xd]]
    %v931 = vstv %s930
    %v932 = vmul.f32 %v931, %v915
    %v933 = vmul.f32 %v931, %v917
    %v934 = vmul.f32 %v931, %v919
    %v935 = vmul.f32 %v931, %v921
    %v936 = vmul.f32 %v931, %v923
    %v937 = vmul.f32 %v931, %v925
    %v938 = vmul.f32 %v931, %v927
    %v939 = vmul.f32 %v931, %v929
    %v940 = vadd.f32 %v870, %v932
    %v941 = vadd.f32 %v871, %v933
    %v942 = vadd.f32 %v872, %v934
    %v943 = vadd.f32 %v873, %v935
    %v944 = vadd.f32 %v874, %v936
    %v945 = vadd.f32 %v875, %v937
    %v946 = vadd.f32 %v876, %v938
    %v947 = vadd.f32 %v877, %v939
    %s948 = sld [smem:[#allocation3 + $0x26]]
    %v949 = vstv %s948
    %v950 = vmul.f32 %v949, %v915
    %v951 = vmul.f32 %v949, %v917
    %v952 = vmul.f32 %v949, %v919
    %v953 = vmul.f32 %v949, %v921
    %v954 = vmul.f32 %v949, %v923
    %v955 = vmul.f32 %v949, %v925
    %v956 = vmul.f32 %v949, %v927
    %v957 = vmul.f32 %v949, %v929
    %v958 = vadd.f32 %v888, %v950
    %v959 = vadd.f32 %v889, %v951
    %v960 = vadd.f32 %v890, %v952
    %v961 = vadd.f32 %v891, %v953
    %v962 = vadd.f32 %v892, %v954
    %v963 = vadd.f32 %v893, %v955
    %v964 = vadd.f32 %v894, %v956
    %v965 = vadd.f32 %v895, %v957
    %s966 = sld [smem:[#allocation3 + $0x3f]]
    %v967 = vstv %s966
    %v968 = vmul.f32 %v967, %v915
    %v969 = vmul.f32 %v967, %v917
    %v970 = vmul.f32 %v967, %v919
    %v971 = vmul.f32 %v967, %v921
    %v972 = vmul.f32 %v967, %v923
    %v973 = vmul.f32 %v967, %v925
    %v974 = vmul.f32 %v967, %v927
    %v975 = vmul.f32 %v967, %v929
    %v976 = vadd.f32 %v906, %v968
    %v977 = vadd.f32 %v907, %v969
    %v978 = vadd.f32 %v908, %v970
    %v979 = vadd.f32 %v909, %v971
    %v980 = vadd.f32 %v910, %v972
    %v981 = vadd.f32 %v911, %v973
    %v982 = vadd.f32 %v912, %v974
    %v983 = vadd.f32 %v913, %v975
    %984 = vrot.lane.b32.xlu0 %v712, 126
    %v985 = vpop.permute.xlu0 %984
    %986 = vrot.lane.b32.xlu0 %v713, 126
    %v987 = vpop.permute.xlu0 %986
    %988 = vrot.lane.b32.xlu0 %v714, 126
    %v989 = vpop.permute.xlu0 %988
    %990 = vrot.lane.b32.xlu0 %v715, 126
    %v991 = vpop.permute.xlu0 %990
    %992 = vrot.lane.b32.xlu0 %v716, 126
    %v993 = vpop.permute.xlu0 %992
    %994 = vrot.lane.b32.xlu0 %v717, 126
    %v995 = vpop.permute.xlu0 %994
    %996 = vrot.lane.b32.xlu0 %v718, 126
    %v997 = vpop.permute.xlu0 %996
    %998 = vrot.lane.b32.xlu0 %v719, 126
    %v999 = vpop.permute.xlu0 %998
    %s1000 = sld [smem:[#allocation3 + $0xe]]
    %v1001 = vstv %s1000
    %v1002 = vmul.f32 %v1001, %v985
    %v1003 = vmul.f32 %v1001, %v987
    %v1004 = vmul.f32 %v1001, %v989
    %v1005 = vmul.f32 %v1001, %v991
    %v1006 = vmul.f32 %v1001, %v993
    %v1007 = vmul.f32 %v1001, %v995
    %v1008 = vmul.f32 %v1001, %v997
    %v1009 = vmul.f32 %v1001, %v999
    %v1010 = vadd.f32 %v940, %v1002
    %v1011 = vadd.f32 %v941, %v1003
    %v1012 = vadd.f32 %v942, %v1004
    %v1013 = vadd.f32 %v943, %v1005
    %v1014 = vadd.f32 %v944, %v1006
    %v1015 = vadd.f32 %v945, %v1007
    %v1016 = vadd.f32 %v946, %v1008
    %v1017 = vadd.f32 %v947, %v1009
    %s1018 = sld [smem:[#allocation3 + $0x27]]
    %v1019 = vstv %s1018
    %v1020 = vmul.f32 %v1019, %v985
    %v1021 = vmul.f32 %v1019, %v987
    %v1022 = vmul.f32 %v1019, %v989
    %v1023 = vmul.f32 %v1019, %v991
    %v1024 = vmul.f32 %v1019, %v993
    %v1025 = vmul.f32 %v1019, %v995
    %v1026 = vmul.f32 %v1019, %v997
    %v1027 = vmul.f32 %v1019, %v999
    %v1028 = vadd.f32 %v958, %v1020
    %v1029 = vadd.f32 %v959, %v1021
    %v1030 = vadd.f32 %v960, %v1022
    %v1031 = vadd.f32 %v961, %v1023
    %v1032 = vadd.f32 %v962, %v1024
    %v1033 = vadd.f32 %v963, %v1025
    %v1034 = vadd.f32 %v964, %v1026
    %v1035 = vadd.f32 %v965, %v1027
    %s1036 = sld [smem:[#allocation3 + $0x40]]
    %v1037 = vstv %s1036
    %v1038 = vmul.f32 %v1037, %v985
    %v1039 = vmul.f32 %v1037, %v987
    %v1040 = vmul.f32 %v1037, %v989
    %v1041 = vmul.f32 %v1037, %v991
    %v1042 = vmul.f32 %v1037, %v993
    %v1043 = vmul.f32 %v1037, %v995
    %v1044 = vmul.f32 %v1037, %v997
    %v1045 = vmul.f32 %v1037, %v999
    %v1046 = vadd.f32 %v976, %v1038
    %v1047 = vadd.f32 %v977, %v1039
    %v1048 = vadd.f32 %v978, %v1040
    %v1049 = vadd.f32 %v979, %v1041
    %v1050 = vadd.f32 %v980, %v1042
    %v1051 = vadd.f32 %v981, %v1043
    %v1052 = vadd.f32 %v982, %v1044
    %v1053 = vadd.f32 %v983, %v1045
    %v1054 = vld [vmem:[#allocation2 + $0x9] sm:$0xff]
    %v1055 = vld [vmem:[#allocation2 + $0x11] sm:$0xff]
    %v1056 = vld [vmem:[#allocation2 + $0x19] sm:$0xff]
    %v1057 = vld [vmem:[#allocation2 + $0x21] sm:$0xff]
    %v1058 = vld [vmem:[#allocation2 + $0x29] sm:$0xff]
    %v1059 = vld [vmem:[#allocation2 + $0x31] sm:$0xff]
    %v1060 = vld [vmem:[#allocation2 + $0x39] sm:$0xff]
    %v1061 = vld [vmem:[#allocation2 + $0x41] sm:$0xff]
    %1062 = vrot.lane.b32.xlu0 %v1054, 2
    %v1063 = vpop.permute.xlu0 %1062
    %1064 = vrot.lane.b32.xlu0 %v1055, 2
    %v1065 = vpop.permute.xlu0 %1064
    %1066 = vrot.lane.b32.xlu0 %v1056, 2
    %v1067 = vpop.permute.xlu0 %1066
    %1068 = vrot.lane.b32.xlu0 %v1057, 2
    %v1069 = vpop.permute.xlu0 %1068
    %1070 = vrot.lane.b32.xlu0 %v1058, 2
    %v1071 = vpop.permute.xlu0 %1070
    %1072 = vrot.lane.b32.xlu0 %v1059, 2
    %v1073 = vpop.permute.xlu0 %1072
    %1074 = vrot.lane.b32.xlu0 %v1060, 2
    %v1075 = vpop.permute.xlu0 %1074
    %1076 = vrot.lane.b32.xlu0 %v1061, 2
    %v1077 = vpop.permute.xlu0 %1076
    %s1078 = sld [smem:[#allocation3 + $0xf]]
    %v1079 = vstv %s1078
    %v1080 = vmul.f32 %v1079, %v1063
    %v1081 = vmul.f32 %v1079, %v1065
    %v1082 = vmul.f32 %v1079, %v1067
    %v1083 = vmul.f32 %v1079, %v1069
    %v1084 = vmul.f32 %v1079, %v1071
    %v1085 = vmul.f32 %v1079, %v1073
    %v1086 = vmul.f32 %v1079, %v1075
    %v1087 = vmul.f32 %v1079, %v1077
    %v1088 = vadd.f32 %v1010, %v1080
    %v1089 = vadd.f32 %v1011, %v1081
    %v1090 = vadd.f32 %v1012, %v1082
    %v1091 = vadd.f32 %v1013, %v1083
    %v1092 = vadd.f32 %v1014, %v1084
    %v1093 = vadd.f32 %v1015, %v1085
    %v1094 = vadd.f32 %v1016, %v1086
    %v1095 = vadd.f32 %v1017, %v1087
    %s1096 = sld [smem:[#allocation3 + $0x28]]
    %v1097 = vstv %s1096
    %v1098 = vmul.f32 %v1097, %v1063
    %v1099 = vmul.f32 %v1097, %v1065
    %v1100 = vmul.f32 %v1097, %v1067
    %v1101 = vmul.f32 %v1097, %v1069
    %v1102 = vmul.f32 %v1097, %v1071
    %v1103 = vmul.f32 %v1097, %v1073
    %v1104 = vmul.f32 %v1097, %v1075
    %v1105 = vmul.f32 %v1097, %v1077
    %v1106 = vadd.f32 %v1028, %v1098
    %v1107 = vadd.f32 %v1029, %v1099
    %v1108 = vadd.f32 %v1030, %v1100
    %v1109 = vadd.f32 %v1031, %v1101
    %v1110 = vadd.f32 %v1032, %v1102
    %v1111 = vadd.f32 %v1033, %v1103
    %v1112 = vadd.f32 %v1034, %v1104
    %v1113 = vadd.f32 %v1035, %v1105
    %s1114 = sld [smem:[#allocation3 + $0x41]]
    %v1115 = vstv %s1114
    %v1116 = vmul.f32 %v1115, %v1063
    %v1117 = vmul.f32 %v1115, %v1065
    %v1118 = vmul.f32 %v1115, %v1067
    %v1119 = vmul.f32 %v1115, %v1069
    %v1120 = vmul.f32 %v1115, %v1071
    %v1121 = vmul.f32 %v1115, %v1073
    %v1122 = vmul.f32 %v1115, %v1075
    %v1123 = vmul.f32 %v1115, %v1077
    %v1124 = vadd.f32 %v1046, %v1116
    %v1125 = vadd.f32 %v1047, %v1117
    %v1126 = vadd.f32 %v1048, %v1118
    %v1127 = vadd.f32 %v1049, %v1119
    %v1128 = vadd.f32 %v1050, %v1120
    %v1129 = vadd.f32 %v1051, %v1121
    %v1130 = vadd.f32 %v1052, %v1122
    %v1131 = vadd.f32 %v1053, %v1123
    %1132 = vrot.lane.b32.xlu0 %v1054, 1
    %v1133 = vpop.permute.xlu0 %1132
    %1134 = vrot.lane.b32.xlu0 %v1055, 1
    %v1135 = vpop.permute.xlu0 %1134
    %1136 = vrot.lane.b32.xlu0 %v1056, 1
    %v1137 = vpop.permute.xlu0 %1136
    %1138 = vrot.lane.b32.xlu0 %v1057, 1
    %v1139 = vpop.permute.xlu0 %1138
    %1140 = vrot.lane.b32.xlu0 %v1058, 1
    %v1141 = vpop.permute.xlu0 %1140
    %1142 = vrot.lane.b32.xlu0 %v1059, 1
    %v1143 = vpop.permute.xlu0 %1142
    %1144 = vrot.lane.b32.xlu0 %v1060, 1
    %v1145 = vpop.permute.xlu0 %1144
    %1146 = vrot.lane.b32.xlu0 %v1061, 1
    %v1147 = vpop.permute.xlu0 %1146
    %s1148 = sld [smem:[#allocation3 + $0x10]]
    %v1149 = vstv %s1148
    %v1150 = vmul.f32 %v1149, %v1133
    %v1151 = vmul.f32 %v1149, %v1135
    %v1152 = vmul.f32 %v1149, %v1137
    %v1153 = vmul.f32 %v1149, %v1139
    %v1154 = vmul.f32 %v1149, %v1141
    %v1155 = vmul.f32 %v1149, %v1143
    %v1156 = vmul.f32 %v1149, %v1145
    %v1157 = vmul.f32 %v1149, %v1147
    %v1158 = vadd.f32 %v1088, %v1150
    %v1159 = vadd.f32 %v1089, %v1151
    %v1160 = vadd.f32 %v1090, %v1152
    %v1161 = vadd.f32 %v1091, %v1153
    %v1162 = vadd.f32 %v1092, %v1154
    %v1163 = vadd.f32 %v1093, %v1155
    %v1164 = vadd.f32 %v1094, %v1156
    %v1165 = vadd.f32 %v1095, %v1157
    %s1166 = sld [smem:[#allocation3 + $0x29]]
    %v1167 = vstv %s1166
    %v1168 = vmul.f32 %v1167, %v1133
    %v1169 = vmul.f32 %v1167, %v1135
    %v1170 = vmul.f32 %v1167, %v1137
    %v1171 = vmul.f32 %v1167, %v1139
    %v1172 = vmul.f32 %v1167, %v1141
    %v1173 = vmul.f32 %v1167, %v1143
    %v1174 = vmul.f32 %v1167, %v1145
    %v1175 = vmul.f32 %v1167, %v1147
    %v1176 = vadd.f32 %v1106, %v1168
    %v1177 = vadd.f32 %v1107, %v1169
    %v1178 = vadd.f32 %v1108, %v1170
    %v1179 = vadd.f32 %v1109, %v1171
    %v1180 = vadd.f32 %v1110, %v1172
    %v1181 = vadd.f32 %v1111, %v1173
    %v1182 = vadd.f32 %v1112, %v1174
    %v1183 = vadd.f32 %v1113, %v1175
    %s1184 = sld [smem:[#allocation3 + $0x42]]
    %v1185 = vstv %s1184
    %v1186 = vmul.f32 %v1185, %v1133
    %v1187 = vmul.f32 %v1185, %v1135
    %v1188 = vmul.f32 %v1185, %v1137
    %v1189 = vmul.f32 %v1185, %v1139
    %v1190 = vmul.f32 %v1185, %v1141
    %v1191 = vmul.f32 %v1185, %v1143
    %v1192 = vmul.f32 %v1185, %v1145
    %v1193 = vmul.f32 %v1185, %v1147
    %v1194 = vadd.f32 %v1124, %v1186
    %v1195 = vadd.f32 %v1125, %v1187
    %v1196 = vadd.f32 %v1126, %v1188
    %v1197 = vadd.f32 %v1127, %v1189
    %v1198 = vadd.f32 %v1128, %v1190
    %v1199 = vadd.f32 %v1129, %v1191
    %v1200 = vadd.f32 %v1130, %v1192
    %v1201 = vadd.f32 %v1131, %v1193
    %s1202 = sld [smem:[#allocation3 + $0x11]]
    %v1203 = vstv %s1202
    %v1204 = vmul.f32 %v1203, %v1054
    %v1205 = vmul.f32 %v1203, %v1055
    %v1206 = vmul.f32 %v1203, %v1056
    %v1207 = vmul.f32 %v1203, %v1057
    %v1208 = vmul.f32 %v1203, %v1058
    %v1209 = vmul.f32 %v1203, %v1059
    %v1210 = vmul.f32 %v1203, %v1060
    %v1211 = vmul.f32 %v1203, %v1061
    %v1212 = vadd.f32 %v1158, %v1204
    %v1213 = vadd.f32 %v1159, %v1205
    %v1214 = vadd.f32 %v1160, %v1206
    %v1215 = vadd.f32 %v1161, %v1207
    %v1216 = vadd.f32 %v1162, %v1208
    %v1217 = vadd.f32 %v1163, %v1209
    %v1218 = vadd.f32 %v1164, %v1210
    %v1219 = vadd.f32 %v1165, %v1211
    %s1220 = sld [smem:[#allocation3 + $0x2a]]
    %v1221 = vstv %s1220
    %v1222 = vmul.f32 %v1221, %v1054
    %v1223 = vmul.f32 %v1221, %v1055
    %v1224 = vmul.f32 %v1221, %v1056
    %v1225 = vmul.f32 %v1221, %v1057
    %v1226 = vmul.f32 %v1221, %v1058
    %v1227 = vmul.f32 %v1221, %v1059
    %v1228 = vmul.f32 %v1221, %v1060
    %v1229 = vmul.f32 %v1221, %v1061
    %v1230 = vadd.f32 %v1176, %v1222
    %v1231 = vadd.f32 %v1177, %v1223
    %v1232 = vadd.f32 %v1178, %v1224
    %v1233 = vadd.f32 %v1179, %v1225
    %v1234 = vadd.f32 %v1180, %v1226
    %v1235 = vadd.f32 %v1181, %v1227
    %v1236 = vadd.f32 %v1182, %v1228
    %v1237 = vadd.f32 %v1183, %v1229
    %s1238 = sld [smem:[#allocation3 + $0x43]]
    %v1239 = vstv %s1238
    %v1240 = vmul.f32 %v1239, %v1054
    %v1241 = vmul.f32 %v1239, %v1055
    %v1242 = vmul.f32 %v1239, %v1056
    %v1243 = vmul.f32 %v1239, %v1057
    %v1244 = vmul.f32 %v1239, %v1058
    %v1245 = vmul.f32 %v1239, %v1059
    %v1246 = vmul.f32 %v1239, %v1060
    %v1247 = vmul.f32 %v1239, %v1061
    %v1248 = vadd.f32 %v1194, %v1240
    %v1249 = vadd.f32 %v1195, %v1241
    %v1250 = vadd.f32 %v1196, %v1242
    %v1251 = vadd.f32 %v1197, %v1243
    %v1252 = vadd.f32 %v1198, %v1244
    %v1253 = vadd.f32 %v1199, %v1245
    %v1254 = vadd.f32 %v1200, %v1246
    %v1255 = vadd.f32 %v1201, %v1247
    %1256 = vrot.lane.b32.xlu0 %v1054, 127
    %v1257 = vpop.permute.xlu0 %1256
    %1258 = vrot.lane.b32.xlu0 %v1055, 127
    %v1259 = vpop.permute.xlu0 %1258
    %1260 = vrot.lane.b32.xlu0 %v1056, 127
    %v1261 = vpop.permute.xlu0 %1260
    %1262 = vrot.lane.b32.xlu0 %v1057, 127
    %v1263 = vpop.permute.xlu0 %1262
    %1264 = vrot.lane.b32.xlu0 %v1058, 127
    %v1265 = vpop.permute.xlu0 %1264
    %1266 = vrot.lane.b32.xlu0 %v1059, 127
    %v1267 = vpop.permute.xlu0 %1266
    %1268 = vrot.lane.b32.xlu0 %v1060, 127
    %v1269 = vpop.permute.xlu0 %1268
    %1270 = vrot.lane.b32.xlu0 %v1061, 127
    %v1271 = vpop.permute.xlu0 %1270
    %s1272 = sld [smem:[#allocation3 + $0x12]]
    %v1273 = vstv %s1272
    %v1274 = vmul.f32 %v1273, %v1257
    %v1275 = vmul.f32 %v1273, %v1259
    %v1276 = vmul.f32 %v1273, %v1261
    %v1277 = vmul.f32 %v1273, %v1263
    %v1278 = vmul.f32 %v1273, %v1265
    %v1279 = vmul.f32 %v1273, %v1267
    %v1280 = vmul.f32 %v1273, %v1269
    %v1281 = vmul.f32 %v1273, %v1271
    %v1282 = vadd.f32 %v1212, %v1274
    %v1283 = vadd.f32 %v1213, %v1275
    %v1284 = vadd.f32 %v1214, %v1276
    %v1285 = vadd.f32 %v1215, %v1277
    %v1286 = vadd.f32 %v1216, %v1278
    %v1287 = vadd.f32 %v1217, %v1279
    %v1288 = vadd.f32 %v1218, %v1280
    %v1289 = vadd.f32 %v1219, %v1281
    %s1290 = sld [smem:[#allocation3 + $0x2b]]
    %v1291 = vstv %s1290
    %v1292 = vmul.f32 %v1291, %v1257
    %v1293 = vmul.f32 %v1291, %v1259
    %v1294 = vmul.f32 %v1291, %v1261
    %v1295 = vmul.f32 %v1291, %v1263
    %v1296 = vmul.f32 %v1291, %v1265
    %v1297 = vmul.f32 %v1291, %v1267
    %v1298 = vmul.f32 %v1291, %v1269
    %v1299 = vmul.f32 %v1291, %v1271
    %v1300 = vadd.f32 %v1230, %v1292
    %v1301 = vadd.f32 %v1231, %v1293
    %v1302 = vadd.f32 %v1232, %v1294
    %v1303 = vadd.f32 %v1233, %v1295
    %v1304 = vadd.f32 %v1234, %v1296
    %v1305 = vadd.f32 %v1235, %v1297
    %v1306 = vadd.f32 %v1236, %v1298
    %v1307 = vadd.f32 %v1237, %v1299
    %s1308 = sld [smem:[#allocation3 + $0x44]]
    %v1309 = vstv %s1308
    %v1310 = vmul.f32 %v1309, %v1257
    %v1311 = vmul.f32 %v1309, %v1259
    %v1312 = vmul.f32 %v1309, %v1261
    %v1313 = vmul.f32 %v1309, %v1263
    %v1314 = vmul.f32 %v1309, %v1265
    %v1315 = vmul.f32 %v1309, %v1267
    %v1316 = vmul.f32 %v1309, %v1269
    %v1317 = vmul.f32 %v1309, %v1271
    %v1318 = vadd.f32 %v1248, %v1310
    %v1319 = vadd.f32 %v1249, %v1311
    %v1320 = vadd.f32 %v1250, %v1312
    %v1321 = vadd.f32 %v1251, %v1313
    %v1322 = vadd.f32 %v1252, %v1314
    %v1323 = vadd.f32 %v1253, %v1315
    %v1324 = vadd.f32 %v1254, %v1316
    %v1325 = vadd.f32 %v1255, %v1317
    %1326 = vrot.lane.b32.xlu0 %v1054, 126
    %v1327 = vpop.permute.xlu0 %1326
    %1328 = vrot.lane.b32.xlu0 %v1055, 126
    %v1329 = vpop.permute.xlu0 %1328
    %1330 = vrot.lane.b32.xlu0 %v1056, 126
    %v1331 = vpop.permute.xlu0 %1330
    %1332 = vrot.lane.b32.xlu0 %v1057, 126
    %v1333 = vpop.permute.xlu0 %1332
    %1334 = vrot.lane.b32.xlu0 %v1058, 126
    %v1335 = vpop.permute.xlu0 %1334
    %1336 = vrot.lane.b32.xlu0 %v1059, 126
    %v1337 = vpop.permute.xlu0 %1336
    %1338 = vrot.lane.b32.xlu0 %v1060, 126
    %v1339 = vpop.permute.xlu0 %1338
    %1340 = vrot.lane.b32.xlu0 %v1061, 126
    %v1341 = vpop.permute.xlu0 %1340
    %s1342 = sld [smem:[#allocation3 + $0x13]]
    %v1343 = vstv %s1342
    %v1344 = vmul.f32 %v1343, %v1327
    %v1345 = vmul.f32 %v1343, %v1329
    %v1346 = vmul.f32 %v1343, %v1331
    %v1347 = vmul.f32 %v1343, %v1333
    %v1348 = vmul.f32 %v1343, %v1335
    %v1349 = vmul.f32 %v1343, %v1337
    %v1350 = vmul.f32 %v1343, %v1339
    %v1351 = vmul.f32 %v1343, %v1341
    %v1352 = vadd.f32 %v1282, %v1344
    %v1353 = vadd.f32 %v1283, %v1345
    %v1354 = vadd.f32 %v1284, %v1346
    %v1355 = vadd.f32 %v1285, %v1347
    %v1356 = vadd.f32 %v1286, %v1348
    %v1357 = vadd.f32 %v1287, %v1349
    %v1358 = vadd.f32 %v1288, %v1350
    %v1359 = vadd.f32 %v1289, %v1351
    %s1360 = sld [smem:[#allocation3 + $0x2c]]
    %v1361 = vstv %s1360
    %v1362 = vmul.f32 %v1361, %v1327
    %v1363 = vmul.f32 %v1361, %v1329
    %v1364 = vmul.f32 %v1361, %v1331
    %v1365 = vmul.f32 %v1361, %v1333
    %v1366 = vmul.f32 %v1361, %v1335
    %v1367 = vmul.f32 %v1361, %v1337
    %v1368 = vmul.f32 %v1361, %v1339
    %v1369 = vmul.f32 %v1361, %v1341
    %v1370 = vadd.f32 %v1300, %v1362
    %v1371 = vadd.f32 %v1301, %v1363
    %v1372 = vadd.f32 %v1302, %v1364
    %v1373 = vadd.f32 %v1303, %v1365
    %v1374 = vadd.f32 %v1304, %v1366
    %v1375 = vadd.f32 %v1305, %v1367
    %v1376 = vadd.f32 %v1306, %v1368
    %v1377 = vadd.f32 %v1307, %v1369
    %s1378 = sld [smem:[#allocation3 + $0x45]]
    %v1379 = vstv %s1378
    %v1380 = vmul.f32 %v1379, %v1327
    %v1381 = vmul.f32 %v1379, %v1329
    %v1382 = vmul.f32 %v1379, %v1331
    %v1383 = vmul.f32 %v1379, %v1333
    %v1384 = vmul.f32 %v1379, %v1335
    %v1385 = vmul.f32 %v1379, %v1337
    %v1386 = vmul.f32 %v1379, %v1339
    %v1387 = vmul.f32 %v1379, %v1341
    %v1388 = vadd.f32 %v1318, %v1380
    %v1389 = vadd.f32 %v1319, %v1381
    %v1390 = vadd.f32 %v1320, %v1382
    %v1391 = vadd.f32 %v1321, %v1383
    %v1392 = vadd.f32 %v1322, %v1384
    %v1393 = vadd.f32 %v1323, %v1385
    %v1394 = vadd.f32 %v1324, %v1386
    %v1395 = vadd.f32 %v1325, %v1387
    %v1396 = vld [vmem:[#allocation2 + $0xa] sm:$0xff]
    %v1397 = vld [vmem:[#allocation2 + $0x12] sm:$0xff]
    %v1398 = vld [vmem:[#allocation2 + $0x1a] sm:$0xff]
    %v1399 = vld [vmem:[#allocation2 + $0x22] sm:$0xff]
    %v1400 = vld [vmem:[#allocation2 + $0x2a] sm:$0xff]
    %v1401 = vld [vmem:[#allocation2 + $0x32] sm:$0xff]
    %v1402 = vld [vmem:[#allocation2 + $0x3a] sm:$0xff]
    %v1403 = vld [vmem:[#allocation2 + $0x42] sm:$0xff]
    %1404 = vrot.lane.b32.xlu0 %v1396, 2
    %v1405 = vpop.permute.xlu0 %1404
    %1406 = vrot.lane.b32.xlu0 %v1397, 2
    %v1407 = vpop.permute.xlu0 %1406
    %1408 = vrot.lane.b32.xlu0 %v1398, 2
    %v1409 = vpop.permute.xlu0 %1408
    %1410 = vrot.lane.b32.xlu0 %v1399, 2
    %v1411 = vpop.permute.xlu0 %1410
    %1412 = vrot.lane.b32.xlu0 %v1400, 2
    %v1413 = vpop.permute.xlu0 %1412
    %1414 = vrot.lane.b32.xlu0 %v1401, 2
    %v1415 = vpop.permute.xlu0 %1414
    %1416 = vrot.lane.b32.xlu0 %v1402, 2
    %v1417 = vpop.permute.xlu0 %1416
    %1418 = vrot.lane.b32.xlu0 %v1403, 2
    %v1419 = vpop.permute.xlu0 %1418
    %s1420 = sld [smem:[#allocation3 + $0x14]]
    %v1421 = vstv %s1420
    %v1422 = vmul.f32 %v1421, %v1405
    %v1423 = vmul.f32 %v1421, %v1407
    %v1424 = vmul.f32 %v1421, %v1409
    %v1425 = vmul.f32 %v1421, %v1411
    %v1426 = vmul.f32 %v1421, %v1413
    %v1427 = vmul.f32 %v1421, %v1415
    %v1428 = vmul.f32 %v1421, %v1417
    %v1429 = vmul.f32 %v1421, %v1419
    %v1430 = vadd.f32 %v1352, %v1422
    %v1431 = vadd.f32 %v1353, %v1423
    %v1432 = vadd.f32 %v1354, %v1424
    %v1433 = vadd.f32 %v1355, %v1425
    %v1434 = vadd.f32 %v1356, %v1426
    %v1435 = vadd.f32 %v1357, %v1427
    %v1436 = vadd.f32 %v1358, %v1428
    %v1437 = vadd.f32 %v1359, %v1429
    %s1438 = sld [smem:[#allocation3 + $0x2d]]
    %v1439 = vstv %s1438
    %v1440 = vmul.f32 %v1439, %v1405
    %v1441 = vmul.f32 %v1439, %v1407
    %v1442 = vmul.f32 %v1439, %v1409
    %v1443 = vmul.f32 %v1439, %v1411
    %v1444 = vmul.f32 %v1439, %v1413
    %v1445 = vmul.f32 %v1439, %v1415
    %v1446 = vmul.f32 %v1439, %v1417
    %v1447 = vmul.f32 %v1439, %v1419
    %v1448 = vadd.f32 %v1370, %v1440
    %v1449 = vadd.f32 %v1371, %v1441
    %v1450 = vadd.f32 %v1372, %v1442
    %v1451 = vadd.f32 %v1373, %v1443
    %v1452 = vadd.f32 %v1374, %v1444
    %v1453 = vadd.f32 %v1375, %v1445
    %v1454 = vadd.f32 %v1376, %v1446
    %v1455 = vadd.f32 %v1377, %v1447
    %s1456 = sld [smem:[#allocation3 + $0x46]]
    %v1457 = vstv %s1456
    %v1458 = vmul.f32 %v1457, %v1405
    %v1459 = vmul.f32 %v1457, %v1407
    %v1460 = vmul.f32 %v1457, %v1409
    %v1461 = vmul.f32 %v1457, %v1411
    %v1462 = vmul.f32 %v1457, %v1413
    %v1463 = vmul.f32 %v1457, %v1415
    %v1464 = vmul.f32 %v1457, %v1417
    %v1465 = vmul.f32 %v1457, %v1419
    %v1466 = vadd.f32 %v1388, %v1458
    %v1467 = vadd.f32 %v1389, %v1459
    %v1468 = vadd.f32 %v1390, %v1460
    %v1469 = vadd.f32 %v1391, %v1461
    %v1470 = vadd.f32 %v1392, %v1462
    %v1471 = vadd.f32 %v1393, %v1463
    %v1472 = vadd.f32 %v1394, %v1464
    %v1473 = vadd.f32 %v1395, %v1465
    %1474 = vrot.lane.b32.xlu0 %v1396, 1
    %v1475 = vpop.permute.xlu0 %1474
    %1476 = vrot.lane.b32.xlu0 %v1397, 1
    %v1477 = vpop.permute.xlu0 %1476
    %1478 = vrot.lane.b32.xlu0 %v1398, 1
    %v1479 = vpop.permute.xlu0 %1478
    %1480 = vrot.lane.b32.xlu0 %v1399, 1
    %v1481 = vpop.permute.xlu0 %1480
    %1482 = vrot.lane.b32.xlu0 %v1400, 1
    %v1483 = vpop.permute.xlu0 %1482
    %1484 = vrot.lane.b32.xlu0 %v1401, 1
    %v1485 = vpop.permute.xlu0 %1484
    %1486 = vrot.lane.b32.xlu0 %v1402, 1
    %v1487 = vpop.permute.xlu0 %1486
    %1488 = vrot.lane.b32.xlu0 %v1403, 1
    %v1489 = vpop.permute.xlu0 %1488
    %s1490 = sld [smem:[#allocation3 + $0x15]]
    %v1491 = vstv %s1490
    %v1492 = vmul.f32 %v1491, %v1475
    %v1493 = vmul.f32 %v1491, %v1477
    %v1494 = vmul.f32 %v1491, %v1479
    %v1495 = vmul.f32 %v1491, %v1481
    %v1496 = vmul.f32 %v1491, %v1483
    %v1497 = vmul.f32 %v1491, %v1485
    %v1498 = vmul.f32 %v1491, %v1487
    %v1499 = vmul.f32 %v1491, %v1489
    %v1500 = vadd.f32 %v1430, %v1492
    %v1501 = vadd.f32 %v1431, %v1493
    %v1502 = vadd.f32 %v1432, %v1494
    %v1503 = vadd.f32 %v1433, %v1495
    %v1504 = vadd.f32 %v1434, %v1496
    %v1505 = vadd.f32 %v1435, %v1497
    %v1506 = vadd.f32 %v1436, %v1498
    %v1507 = vadd.f32 %v1437, %v1499
    %s1508 = sld [smem:[#allocation3 + $0x2e]]
    %v1509 = vstv %s1508
    %v1510 = vmul.f32 %v1509, %v1475
    %v1511 = vmul.f32 %v1509, %v1477
    %v1512 = vmul.f32 %v1509, %v1479
    %v1513 = vmul.f32 %v1509, %v1481
    %v1514 = vmul.f32 %v1509, %v1483
    %v1515 = vmul.f32 %v1509, %v1485
    %v1516 = vmul.f32 %v1509, %v1487
    %v1517 = vmul.f32 %v1509, %v1489
    %v1518 = vadd.f32 %v1448, %v1510
    %v1519 = vadd.f32 %v1449, %v1511
    %v1520 = vadd.f32 %v1450, %v1512
    %v1521 = vadd.f32 %v1451, %v1513
    %v1522 = vadd.f32 %v1452, %v1514
    %v1523 = vadd.f32 %v1453, %v1515
    %v1524 = vadd.f32 %v1454, %v1516
    %v1525 = vadd.f32 %v1455, %v1517
    %s1526 = sld [smem:[#allocation3 + $0x47]]
    %v1527 = vstv %s1526
    %v1528 = vmul.f32 %v1527, %v1475
    %v1529 = vmul.f32 %v1527, %v1477
    %v1530 = vmul.f32 %v1527, %v1479
    %v1531 = vmul.f32 %v1527, %v1481
    %v1532 = vmul.f32 %v1527, %v1483
    %v1533 = vmul.f32 %v1527, %v1485
    %v1534 = vmul.f32 %v1527, %v1487
    %v1535 = vmul.f32 %v1527, %v1489
    %v1536 = vadd.f32 %v1466, %v1528
    %v1537 = vadd.f32 %v1467, %v1529
    %v1538 = vadd.f32 %v1468, %v1530
    %v1539 = vadd.f32 %v1469, %v1531
    %v1540 = vadd.f32 %v1470, %v1532
    %v1541 = vadd.f32 %v1471, %v1533
    %v1542 = vadd.f32 %v1472, %v1534
    %v1543 = vadd.f32 %v1473, %v1535
    %s1544 = sld [smem:[#allocation3 + $0x16]]
    %v1545 = vstv %s1544
    %v1546 = vmul.f32 %v1545, %v1396
    %v1547 = vmul.f32 %v1545, %v1397
    %v1548 = vmul.f32 %v1545, %v1398
    %v1549 = vmul.f32 %v1545, %v1399
    %v1550 = vmul.f32 %v1545, %v1400
    %v1551 = vmul.f32 %v1545, %v1401
    %v1552 = vmul.f32 %v1545, %v1402
    %v1553 = vmul.f32 %v1545, %v1403
    %v1554 = vadd.f32 %v1500, %v1546
    %v1555 = vadd.f32 %v1501, %v1547
    %v1556 = vadd.f32 %v1502, %v1548
    %v1557 = vadd.f32 %v1503, %v1549
    %v1558 = vadd.f32 %v1504, %v1550
    %v1559 = vadd.f32 %v1505, %v1551
    %v1560 = vadd.f32 %v1506, %v1552
    %v1561 = vadd.f32 %v1507, %v1553
    %s1562 = sld [smem:[#allocation3 + $0x2f]]
    %v1563 = vstv %s1562
    %v1564 = vmul.f32 %v1563, %v1396
    %v1565 = vmul.f32 %v1563, %v1397
    %v1566 = vmul.f32 %v1563, %v1398
    %v1567 = vmul.f32 %v1563, %v1399
    %v1568 = vmul.f32 %v1563, %v1400
    %v1569 = vmul.f32 %v1563, %v1401
    %v1570 = vmul.f32 %v1563, %v1402
    %v1571 = vmul.f32 %v1563, %v1403
    %v1572 = vadd.f32 %v1518, %v1564
    %v1573 = vadd.f32 %v1519, %v1565
    %v1574 = vadd.f32 %v1520, %v1566
    %v1575 = vadd.f32 %v1521, %v1567
    %v1576 = vadd.f32 %v1522, %v1568
    %v1577 = vadd.f32 %v1523, %v1569
    %v1578 = vadd.f32 %v1524, %v1570
    %v1579 = vadd.f32 %v1525, %v1571
    %s1580 = sld [smem:[#allocation3 + $0x48]]
    %v1581 = vstv %s1580
    %v1582 = vmul.f32 %v1581, %v1396
    %v1583 = vmul.f32 %v1581, %v1397
    %v1584 = vmul.f32 %v1581, %v1398
    %v1585 = vmul.f32 %v1581, %v1399
    %v1586 = vmul.f32 %v1581, %v1400
    %v1587 = vmul.f32 %v1581, %v1401
    %v1588 = vmul.f32 %v1581, %v1402
    %v1589 = vmul.f32 %v1581, %v1403
    %v1590 = vadd.f32 %v1536, %v1582
    %v1591 = vadd.f32 %v1537, %v1583
    %v1592 = vadd.f32 %v1538, %v1584
    %v1593 = vadd.f32 %v1539, %v1585
    %v1594 = vadd.f32 %v1540, %v1586
    %v1595 = vadd.f32 %v1541, %v1587
    %v1596 = vadd.f32 %v1542, %v1588
    %v1597 = vadd.f32 %v1543, %v1589
    %1598 = vrot.lane.b32.xlu0 %v1396, 127
    %v1599 = vpop.permute.xlu0 %1598
    %1600 = vrot.lane.b32.xlu0 %v1397, 127
    %v1601 = vpop.permute.xlu0 %1600
    %1602 = vrot.lane.b32.xlu0 %v1398, 127
    %v1603 = vpop.permute.xlu0 %1602
    %1604 = vrot.lane.b32.xlu0 %v1399, 127
    %v1605 = vpop.permute.xlu0 %1604
    %1606 = vrot.lane.b32.xlu0 %v1400, 127
    %v1607 = vpop.permute.xlu0 %1606
    %1608 = vrot.lane.b32.xlu0 %v1401, 127
    %v1609 = vpop.permute.xlu0 %1608
    %1610 = vrot.lane.b32.xlu0 %v1402, 127
    %v1611 = vpop.permute.xlu0 %1610
    %1612 = vrot.lane.b32.xlu0 %v1403, 127
    %v1613 = vpop.permute.xlu0 %1612
    %s1614 = sld [smem:[#allocation3 + $0x17]]
    %v1615 = vstv %s1614
    %v1616 = vmul.f32 %v1615, %v1599
    %v1617 = vmul.f32 %v1615, %v1601
    %v1618 = vmul.f32 %v1615, %v1603
    %v1619 = vmul.f32 %v1615, %v1605
    %v1620 = vmul.f32 %v1615, %v1607
    %v1621 = vmul.f32 %v1615, %v1609
    %v1622 = vmul.f32 %v1615, %v1611
    %v1623 = vmul.f32 %v1615, %v1613
    %v1624 = vadd.f32 %v1554, %v1616
    %v1625 = vadd.f32 %v1555, %v1617
    %v1626 = vadd.f32 %v1556, %v1618
    %v1627 = vadd.f32 %v1557, %v1619
    %v1628 = vadd.f32 %v1558, %v1620
    %v1629 = vadd.f32 %v1559, %v1621
    %v1630 = vadd.f32 %v1560, %v1622
    %v1631 = vadd.f32 %v1561, %v1623
    %s1632 = sld [smem:[#allocation3 + $0x30]]
    %v1633 = vstv %s1632
    %v1634 = vmul.f32 %v1633, %v1599
    %v1635 = vmul.f32 %v1633, %v1601
    %v1636 = vmul.f32 %v1633, %v1603
    %v1637 = vmul.f32 %v1633, %v1605
    %v1638 = vmul.f32 %v1633, %v1607
    %v1639 = vmul.f32 %v1633, %v1609
    %v1640 = vmul.f32 %v1633, %v1611
    %v1641 = vmul.f32 %v1633, %v1613
    %v1642 = vadd.f32 %v1572, %v1634
    %v1643 = vadd.f32 %v1573, %v1635
    %v1644 = vadd.f32 %v1574, %v1636
    %v1645 = vadd.f32 %v1575, %v1637
    %v1646 = vadd.f32 %v1576, %v1638
    %v1647 = vadd.f32 %v1577, %v1639
    %v1648 = vadd.f32 %v1578, %v1640
    %v1649 = vadd.f32 %v1579, %v1641
    %s1650 = sld [smem:[#allocation3 + $0x49]]
    %v1651 = vstv %s1650
    %v1652 = vmul.f32 %v1651, %v1599
    %v1653 = vmul.f32 %v1651, %v1601
    %v1654 = vmul.f32 %v1651, %v1603
    %v1655 = vmul.f32 %v1651, %v1605
    %v1656 = vmul.f32 %v1651, %v1607
    %v1657 = vmul.f32 %v1651, %v1609
    %v1658 = vmul.f32 %v1651, %v1611
    %v1659 = vmul.f32 %v1651, %v1613
    %v1660 = vadd.f32 %v1590, %v1652
    %v1661 = vadd.f32 %v1591, %v1653
    %v1662 = vadd.f32 %v1592, %v1654
    %v1663 = vadd.f32 %v1593, %v1655
    %v1664 = vadd.f32 %v1594, %v1656
    %v1665 = vadd.f32 %v1595, %v1657
    %v1666 = vadd.f32 %v1596, %v1658
    %v1667 = vadd.f32 %v1597, %v1659
    %1668 = vrot.lane.b32.xlu0 %v1396, 126
    %v1669 = vpop.permute.xlu0 %1668
    %1670 = vrot.lane.b32.xlu0 %v1397, 126
    %v1671 = vpop.permute.xlu0 %1670
    %1672 = vrot.lane.b32.xlu0 %v1398, 126
    %v1673 = vpop.permute.xlu0 %1672
    %1674 = vrot.lane.b32.xlu0 %v1399, 126
    %v1675 = vpop.permute.xlu0 %1674
    %1676 = vrot.lane.b32.xlu0 %v1400, 126
    %v1677 = vpop.permute.xlu0 %1676
    %1678 = vrot.lane.b32.xlu0 %v1401, 126
    %v1679 = vpop.permute.xlu0 %1678
    %1680 = vrot.lane.b32.xlu0 %v1402, 126
    %v1681 = vpop.permute.xlu0 %1680
    %1682 = vrot.lane.b32.xlu0 %v1403, 126
    %v1683 = vpop.permute.xlu0 %1682
    %s1684 = sld [smem:[#allocation3 + $0x18]]
    %v1685 = vstv %s1684
    %v1686 = vmul.f32 %v1685, %v1669
    %v1687 = vmul.f32 %v1685, %v1671
    %v1688 = vmul.f32 %v1685, %v1673
    %v1689 = vmul.f32 %v1685, %v1675
    %v1690 = vmul.f32 %v1685, %v1677
    %v1691 = vmul.f32 %v1685, %v1679
    %v1692 = vmul.f32 %v1685, %v1681
    %v1693 = vmul.f32 %v1685, %v1683
    %v1694 = vadd.f32 %v1624, %v1686
    %v1695 = vadd.f32 %v1625, %v1687
    %v1696 = vadd.f32 %v1626, %v1688
    %v1697 = vadd.f32 %v1627, %v1689
    %v1698 = vadd.f32 %v1628, %v1690
    %v1699 = vadd.f32 %v1629, %v1691
    %v1700 = vadd.f32 %v1630, %v1692
    %v1701 = vadd.f32 %v1631, %v1693
    %s1702 = sld [smem:[#allocation3 + $0x31]]
    %v1703 = vstv %s1702
    %v1704 = vmul.f32 %v1703, %v1669
    %v1705 = vmul.f32 %v1703, %v1671
    %v1706 = vmul.f32 %v1703, %v1673
    %v1707 = vmul.f32 %v1703, %v1675
    %v1708 = vmul.f32 %v1703, %v1677
    %v1709 = vmul.f32 %v1703, %v1679
    %v1710 = vmul.f32 %v1703, %v1681
    %v1711 = vmul.f32 %v1703, %v1683
    %v1712 = vadd.f32 %v1642, %v1704
    %v1713 = vadd.f32 %v1643, %v1705
    %v1714 = vadd.f32 %v1644, %v1706
    %v1715 = vadd.f32 %v1645, %v1707
    %v1716 = vadd.f32 %v1646, %v1708
    %v1717 = vadd.f32 %v1647, %v1709
    %v1718 = vadd.f32 %v1648, %v1710
    %v1719 = vadd.f32 %v1649, %v1711
    %s1720 = sld [smem:[#allocation3 + $0x4a]]
    %v1721 = vstv %s1720
    %v1722 = vmul.f32 %v1721, %v1669
    %v1723 = vmul.f32 %v1721, %v1671
    %v1724 = vmul.f32 %v1721, %v1673
    %v1725 = vmul.f32 %v1721, %v1675
    %v1726 = vmul.f32 %v1721, %v1677
    %v1727 = vmul.f32 %v1721, %v1679
    %v1728 = vmul.f32 %v1721, %v1681
    %v1729 = vmul.f32 %v1721, %v1683
    %v1730 = vadd.f32 %v1660, %v1722
    %v1731 = vadd.f32 %v1661, %v1723
    %v1732 = vadd.f32 %v1662, %v1724
    %v1733 = vadd.f32 %v1663, %v1725
    %v1734 = vadd.f32 %v1664, %v1726
    %v1735 = vadd.f32 %v1665, %v1727
    %v1736 = vadd.f32 %v1666, %v1728
    %v1737 = vadd.f32 %v1667, %v1729
    %1738 = vst.msk [vmem:[#allocation6] sm:$0xff] %vm43, %v1694
    %1739 = vst.msk [vmem:[#allocation6 + $0x8] sm:$0xff] %vm43, %v1695
    %1740 = vst.msk [vmem:[#allocation6 + $0x10] sm:$0xff] %vm43, %v1696
    %1741 = vst.msk [vmem:[#allocation6 + $0x18] sm:$0xff] %vm43, %v1697
    %1742 = vst.msk [vmem:[#allocation6 + $0x20] sm:$0xff] %vm43, %v1698
    %1743 = vst.msk [vmem:[#allocation6 + $0x28] sm:$0xff] %vm43, %v1699
    %1744 = vst.msk [vmem:[#allocation6 + $0x30] sm:$0xff] %vm43, %v1700
    %1745 = vst.msk [vmem:[#allocation6 + $0x38] sm:$0xff] %vm43, %v1701
    %s1746 = scalar_lea.vmem [#allocation6], 64
    %1747 = vst.msk [vmem:[%s1746] sm:$0xff] %vm43, %v1712
    %1748 = vst.msk [vmem:[%s1746 + $0x8] sm:$0xff] %vm43, %v1713
    %1749 = vst.msk [vmem:[%s1746 + $0x10] sm:$0xff] %vm43, %v1714
    %1750 = vst.msk [vmem:[%s1746 + $0x18] sm:$0xff] %vm43, %v1715
    %1751 = vst.msk [vmem:[%s1746 + $0x20] sm:$0xff] %vm43, %v1716
    %1752 = vst.msk [vmem:[%s1746 + $0x28] sm:$0xff] %vm43, %v1717
    %1753 = vst.msk [vmem:[%s1746 + $0x30] sm:$0xff] %vm43, %v1718
    %1754 = vst.msk [vmem:[%s1746 + $0x38] sm:$0xff] %vm43, %v1719
    %s1755 = scalar_lea.vmem [#allocation6], 128
    %1756 = vst.msk [vmem:[%s1755] sm:$0xff] %vm43, %v1730
    %1757 = vst.msk [vmem:[%s1755 + $0x8] sm:$0xff] %vm43, %v1731
    %1758 = vst.msk [vmem:[%s1755 + $0x10] sm:$0xff] %vm43, %v1732
    %1759 = vst.msk [vmem:[%s1755 + $0x18] sm:$0xff] %vm43, %v1733
    %1760 = vst.msk [vmem:[%s1755 + $0x20] sm:$0xff] %vm43, %v1734
    %1761 = vst.msk [vmem:[%s1755 + $0x28] sm:$0xff] %vm43, %v1735
    %1762 = vst.msk [vmem:[%s1755 + $0x30] sm:$0xff] %vm43, %v1736
    %1763 = vst.msk [vmem:[%s1755 + $0x38] sm:$0xff] %vm43, %v1737
    %v1764 = vld [vmem:[#allocation2 + $0x6] sm:$0xff]
    %v1765 = vld [vmem:[#allocation2 + $0xe] sm:$0xff]
    %v1766 = vld [vmem:[#allocation2 + $0x16] sm:$0xff]
    %v1767 = vld [vmem:[#allocation2 + $0x1e] sm:$0xff]
    %v1768 = vld [vmem:[#allocation2 + $0x26] sm:$0xff]
    %v1769 = vld [vmem:[#allocation2 + $0x2e] sm:$0xff]
    %v1770 = vld [vmem:[#allocation2 + $0x36] sm:$0xff]
    %v1771 = vld [vmem:[#allocation2 + $0x3e] sm:$0xff]
    %1772 = vrot.lane.b32.xlu0 %v1764, 2
    %v1773 = vpop.permute.xlu0 %1772
    %1774 = vrot.lane.b32.xlu0 %v1765, 2
    %v1775 = vpop.permute.xlu0 %1774
    %1776 = vrot.lane.b32.xlu0 %v1766, 2
    %v1777 = vpop.permute.xlu0 %1776
    %1778 = vrot.lane.b32.xlu0 %v1767, 2
    %v1779 = vpop.permute.xlu0 %1778
    %1780 = vrot.lane.b32.xlu0 %v1768, 2
    %v1781 = vpop.permute.xlu0 %1780
    %1782 = vrot.lane.b32.xlu0 %v1769, 2
    %v1783 = vpop.permute.xlu0 %1782
    %1784 = vrot.lane.b32.xlu0 %v1770, 2
    %v1785 = vpop.permute.xlu0 %1784
    %1786 = vrot.lane.b32.xlu0 %v1771, 2
    %v1787 = vpop.permute.xlu0 %1786
    %s1788 = sld [smem:[#allocation3 + $0x4b]]
    %v1789 = vstv %s1788
    %v1790 = vmul.f32 %v1789, %v1773
    %v1791 = vmul.f32 %v1789, %v1775
    %v1792 = vmul.f32 %v1789, %v1777
    %v1793 = vmul.f32 %v1789, %v1779
    %v1794 = vmul.f32 %v1789, %v1781
    %v1795 = vmul.f32 %v1789, %v1783
    %v1796 = vmul.f32 %v1789, %v1785
    %v1797 = vmul.f32 %v1789, %v1787
    %s1798 = sld [smem:[#allocation3 + $0x64]]
    %v1799 = vstv %s1798
    %v1800 = vmul.f32 %v1799, %v1773
    %v1801 = vmul.f32 %v1799, %v1775
    %v1802 = vmul.f32 %v1799, %v1777
    %v1803 = vmul.f32 %v1799, %v1779
    %v1804 = vmul.f32 %v1799, %v1781
    %v1805 = vmul.f32 %v1799, %v1783
    %v1806 = vmul.f32 %v1799, %v1785
    %v1807 = vmul.f32 %v1799, %v1787
    %1808 = vrot.lane.b32.xlu0 %v1764, 1
    %v1809 = vpop.permute.xlu0 %1808
    %1810 = vrot.lane.b32.xlu0 %v1765, 1
    %v1811 = vpop.permute.xlu0 %1810
    %1812 = vrot.lane.b32.xlu0 %v1766, 1
    %v1813 = vpop.permute.xlu0 %1812
    %1814 = vrot.lane.b32.xlu0 %v1767, 1
    %v1815 = vpop.permute.xlu0 %1814
    %1816 = vrot.lane.b32.xlu0 %v1768, 1
    %v1817 = vpop.permute.xlu0 %1816
    %1818 = vrot.lane.b32.xlu0 %v1769, 1
    %v1819 = vpop.permute.xlu0 %1818
    %1820 = vrot.lane.b32.xlu0 %v1770, 1
    %v1821 = vpop.permute.xlu0 %1820
    %1822 = vrot.lane.b32.xlu0 %v1771, 1
    %v1823 = vpop.permute.xlu0 %1822
    %s1824 = sld [smem:[#allocation3 + $0x4c]]
    %v1825 = vstv %s1824
    %v1826 = vmul.f32 %v1825, %v1809
    %v1827 = vmul.f32 %v1825, %v1811
    %v1828 = vmul.f32 %v1825, %v1813
    %v1829 = vmul.f32 %v1825, %v1815
    %v1830 = vmul.f32 %v1825, %v1817
    %v1831 = vmul.f32 %v1825, %v1819
    %v1832 = vmul.f32 %v1825, %v1821
    %v1833 = vmul.f32 %v1825, %v1823
    %v1834 = vadd.f32 %v1790, %v1826
    %v1835 = vadd.f32 %v1791, %v1827
    %v1836 = vadd.f32 %v1792, %v1828
    %v1837 = vadd.f32 %v1793, %v1829
    %v1838 = vadd.f32 %v1794, %v1830
    %v1839 = vadd.f32 %v1795, %v1831
    %v1840 = vadd.f32 %v1796, %v1832
    %v1841 = vadd.f32 %v1797, %v1833
    %s1842 = sld [smem:[#allocation3 + $0x65]]
    %v1843 = vstv %s1842
    %v1844 = vmul.f32 %v1843, %v1809
    %v1845 = vmul.f32 %v1843, %v1811
    %v1846 = vmul.f32 %v1843, %v1813
    %v1847 = vmul.f32 %v1843, %v1815
    %v1848 = vmul.f32 %v1843, %v1817
    %v1849 = vmul.f32 %v1843, %v1819
    %v1850 = vmul.f32 %v1843, %v1821
    %v1851 = vmul.f32 %v1843, %v1823
    %v1852 = vadd.f32 %v1800, %v1844
    %v1853 = vadd.f32 %v1801, %v1845
    %v1854 = vadd.f32 %v1802, %v1846
    %v1855 = vadd.f32 %v1803, %v1847
    %v1856 = vadd.f32 %v1804, %v1848
    %v1857 = vadd.f32 %v1805, %v1849
    %v1858 = vadd.f32 %v1806, %v1850
    %v1859 = vadd.f32 %v1807, %v1851
    %s1860 = sld [smem:[#allocation3 + $0x4d]]
    %v1861 = vstv %s1860
    %v1862 = vmul.f32 %v1861, %v1764
    %v1863 = vmul.f32 %v1861, %v1765
    %v1864 = vmul.f32 %v1861, %v1766
    %v1865 = vmul.f32 %v1861, %v1767
    %v1866 = vmul.f32 %v1861, %v1768
    %v1867 = vmul.f32 %v1861, %v1769
    %v1868 = vmul.f32 %v1861, %v1770
    %v1869 = vmul.f32 %v1861, %v1771
    %v1870 = vadd.f32 %v1834, %v1862
    %v1871 = vadd.f32 %v1835, %v1863
    %v1872 = vadd.f32 %v1836, %v1864
    %v1873 = vadd.f32 %v1837, %v1865
    %v1874 = vadd.f32 %v1838, %v1866
    %v1875 = vadd.f32 %v1839, %v1867
    %v1876 = vadd.f32 %v1840, %v1868
    %v1877 = vadd.f32 %v1841, %v1869
    %s1878 = sld [smem:[#allocation3 + $0x66]]
    %v1879 = vstv %s1878
    %v1880 = vmul.f32 %v1879, %v1764
    %v1881 = vmul.f32 %v1879, %v1765
    %v1882 = vmul.f32 %v1879, %v1766
    %v1883 = vmul.f32 %v1879, %v1767
    %v1884 = vmul.f32 %v1879, %v1768
    %v1885 = vmul.f32 %v1879, %v1769
    %v1886 = vmul.f32 %v1879, %v1770
    %v1887 = vmul.f32 %v1879, %v1771
    %v1888 = vadd.f32 %v1852, %v1880
    %v1889 = vadd.f32 %v1853, %v1881
    %v1890 = vadd.f32 %v1854, %v1882
    %v1891 = vadd.f32 %v1855, %v1883
    %v1892 = vadd.f32 %v1856, %v1884
    %v1893 = vadd.f32 %v1857, %v1885
    %v1894 = vadd.f32 %v1858, %v1886
    %v1895 = vadd.f32 %v1859, %v1887
    %1896 = vrot.lane.b32.xlu0 %v1764, 127
    %v1897 = vpop.permute.xlu0 %1896
    %1898 = vrot.lane.b32.xlu0 %v1765, 127
    %v1899 = vpop.permute.xlu0 %1898
    %1900 = vrot.lane.b32.xlu0 %v1766, 127
    %v1901 = vpop.permute.xlu0 %1900
    %1902 = vrot.lane.b32.xlu0 %v1767, 127
    %v1903 = vpop.permute.xlu0 %1902
    %1904 = vrot.lane.b32.xlu0 %v1768, 127
    %v1905 = vpop.permute.xlu0 %1904
    %1906 = vrot.lane.b32.xlu0 %v1769, 127
    %v1907 = vpop.permute.xlu0 %1906
    %1908 = vrot.lane.b32.xlu0 %v1770, 127
    %v1909 = vpop.permute.xlu0 %1908
    %1910 = vrot.lane.b32.xlu0 %v1771, 127
    %v1911 = vpop.permute.xlu0 %1910
    %s1912 = sld [smem:[#allocation3 + $0x4e]]
    %v1913 = vstv %s1912
    %v1914 = vmul.f32 %v1913, %v1897
    %v1915 = vmul.f32 %v1913, %v1899
    %v1916 = vmul.f32 %v1913, %v1901
    %v1917 = vmul.f32 %v1913, %v1903
    %v1918 = vmul.f32 %v1913, %v1905
    %v1919 = vmul.f32 %v1913, %v1907
    %v1920 = vmul.f32 %v1913, %v1909
    %v1921 = vmul.f32 %v1913, %v1911
    %v1922 = vadd.f32 %v1870, %v1914
    %v1923 = vadd.f32 %v1871, %v1915
    %v1924 = vadd.f32 %v1872, %v1916
    %v1925 = vadd.f32 %v1873, %v1917
    %v1926 = vadd.f32 %v1874, %v1918
    %v1927 = vadd.f32 %v1875, %v1919
    %v1928 = vadd.f32 %v1876, %v1920
    %v1929 = vadd.f32 %v1877, %v1921
    %s1930 = sld [smem:[#allocation3 + $0x67]]
    %v1931 = vstv %s1930
    %v1932 = vmul.f32 %v1931, %v1897
    %v1933 = vmul.f32 %v1931, %v1899
    %v1934 = vmul.f32 %v1931, %v1901
    %v1935 = vmul.f32 %v1931, %v1903
    %v1936 = vmul.f32 %v1931, %v1905
    %v1937 = vmul.f32 %v1931, %v1907
    %v1938 = vmul.f32 %v1931, %v1909
    %v1939 = vmul.f32 %v1931, %v1911
    %v1940 = vadd.f32 %v1888, %v1932
    %v1941 = vadd.f32 %v1889, %v1933
    %v1942 = vadd.f32 %v1890, %v1934
    %v1943 = vadd.f32 %v1891, %v1935
    %v1944 = vadd.f32 %v1892, %v1936
    %v1945 = vadd.f32 %v1893, %v1937
    %v1946 = vadd.f32 %v1894, %v1938
    %v1947 = vadd.f32 %v1895, %v1939
    %1948 = vrot.lane.b32.xlu0 %v1764, 126
    %v1949 = vpop.permute.xlu0 %1948
    %1950 = vrot.lane.b32.xlu0 %v1765, 126
    %v1951 = vpop.permute.xlu0 %1950
    %1952 = vrot.lane.b32.xlu0 %v1766, 126
    %v1953 = vpop.permute.xlu0 %1952
    %1954 = vrot.lane.b32.xlu0 %v1767, 126
    %v1955 = vpop.permute.xlu0 %1954
    %1956 = vrot.lane.b32.xlu0 %v1768, 126
    %v1957 = vpop.permute.xlu0 %1956
    %1958 = vrot.lane.b32.xlu0 %v1769, 126
    %v1959 = vpop.permute.xlu0 %1958
    %1960 = vrot.lane.b32.xlu0 %v1770, 126
    %v1961 = vpop.permute.xlu0 %1960
    %1962 = vrot.lane.b32.xlu0 %v1771, 126
    %v1963 = vpop.permute.xlu0 %1962
    %s1964 = sld [smem:[#allocation3 + $0x4f]]
    %v1965 = vstv %s1964
    %v1966 = vmul.f32 %v1965, %v1949
    %v1967 = vmul.f32 %v1965, %v1951
    %v1968 = vmul.f32 %v1965, %v1953
    %v1969 = vmul.f32 %v1965, %v1955
    %v1970 = vmul.f32 %v1965, %v1957
    %v1971 = vmul.f32 %v1965, %v1959
    %v1972 = vmul.f32 %v1965, %v1961
    %v1973 = vmul.f32 %v1965, %v1963
    %v1974 = vadd.f32 %v1922, %v1966
    %v1975 = vadd.f32 %v1923, %v1967
    %v1976 = vadd.f32 %v1924, %v1968
    %v1977 = vadd.f32 %v1925, %v1969
    %v1978 = vadd.f32 %v1926, %v1970
    %v1979 = vadd.f32 %v1927, %v1971
    %v1980 = vadd.f32 %v1928, %v1972
    %v1981 = vadd.f32 %v1929, %v1973
    %s1982 = sld [smem:[#allocation3 + $0x68]]
    %v1983 = vstv %s1982
    %v1984 = vmul.f32 %v1983, %v1949
    %v1985 = vmul.f32 %v1983, %v1951
    %v1986 = vmul.f32 %v1983, %v1953
    %v1987 = vmul.f32 %v1983, %v1955
    %v1988 = vmul.f32 %v1983, %v1957
    %v1989 = vmul.f32 %v1983, %v1959
    %v1990 = vmul.f32 %v1983, %v1961
    %v1991 = vmul.f32 %v1983, %v1963
    %v1992 = vadd.f32 %v1940, %v1984
    %v1993 = vadd.f32 %v1941, %v1985
    %v1994 = vadd.f32 %v1942, %v1986
    %v1995 = vadd.f32 %v1943, %v1987
    %v1996 = vadd.f32 %v1944, %v1988
    %v1997 = vadd.f32 %v1945, %v1989
    %v1998 = vadd.f32 %v1946, %v1990
    %v1999 = vadd.f32 %v1947, %v1991
    %v2000 = vld [vmem:[#allocation2 + $0x7] sm:$0xff]
    %v2001 = vld [vmem:[#allocation2 + $0xf] sm:$0xff]
    %v2002 = vld [vmem:[#allocation2 + $0x17] sm:$0xff]
    %v2003 = vld [vmem:[#allocation2 + $0x1f] sm:$0xff]
    %v2004 = vld [vmem:[#allocation2 + $0x27] sm:$0xff]
    %v2005 = vld [vmem:[#allocation2 + $0x2f] sm:$0xff]
    %v2006 = vld [vmem:[#allocation2 + $0x37] sm:$0xff]
    %v2007 = vld [vmem:[#allocation2 + $0x3f] sm:$0xff]
    %2008 = vrot.lane.b32.xlu0 %v2000, 2
    %v2009 = vpop.permute.xlu0 %2008
    %2010 = vrot.lane.b32.xlu0 %v2001, 2
    %v2011 = vpop.permute.xlu0 %2010
    %2012 = vrot.lane.b32.xlu0 %v2002, 2
    %v2013 = vpop.permute.xlu0 %2012
    %2014 = vrot.lane.b32.xlu0 %v2003, 2
    %v2015 = vpop.permute.xlu0 %2014
    %2016 = vrot.lane.b32.xlu0 %v2004, 2
    %v2017 = vpop.permute.xlu0 %2016
    %2018 = vrot.lane.b32.xlu0 %v2005, 2
    %v2019 = vpop.permute.xlu0 %2018
    %2020 = vrot.lane.b32.xlu0 %v2006, 2
    %v2021 = vpop.permute.xlu0 %2020
    %2022 = vrot.lane.b32.xlu0 %v2007, 2
    %v2023 = vpop.permute.xlu0 %2022
    %s2024 = sld [smem:[#allocation3 + $0x50]]
    %v2025 = vstv %s2024
    %v2026 = vmul.f32 %v2025, %v2009
    %v2027 = vmul.f32 %v2025, %v2011
    %v2028 = vmul.f32 %v2025, %v2013
    %v2029 = vmul.f32 %v2025, %v2015
    %v2030 = vmul.f32 %v2025, %v2017
    %v2031 = vmul.f32 %v2025, %v2019
    %v2032 = vmul.f32 %v2025, %v2021
    %v2033 = vmul.f32 %v2025, %v2023
    %v2034 = vadd.f32 %v1974, %v2026
    %v2035 = vadd.f32 %v1975, %v2027
    %v2036 = vadd.f32 %v1976, %v2028
    %v2037 = vadd.f32 %v1977, %v2029
    %v2038 = vadd.f32 %v1978, %v2030
    %v2039 = vadd.f32 %v1979, %v2031
    %v2040 = vadd.f32 %v1980, %v2032
    %v2041 = vadd.f32 %v1981, %v2033
    %s2042 = sld [smem:[#allocation3 + $0x69]]
    %v2043 = vstv %s2042
    %v2044 = vmul.f32 %v2043, %v2009
    %v2045 = vmul.f32 %v2043, %v2011
    %v2046 = vmul.f32 %v2043, %v2013
    %v2047 = vmul.f32 %v2043, %v2015
    %v2048 = vmul.f32 %v2043, %v2017
    %v2049 = vmul.f32 %v2043, %v2019
    %v2050 = vmul.f32 %v2043, %v2021
    %v2051 = vmul.f32 %v2043, %v2023
    %v2052 = vadd.f32 %v1992, %v2044
    %v2053 = vadd.f32 %v1993, %v2045
    %v2054 = vadd.f32 %v1994, %v2046
    %v2055 = vadd.f32 %v1995, %v2047
    %v2056 = vadd.f32 %v1996, %v2048
    %v2057 = vadd.f32 %v1997, %v2049
    %v2058 = vadd.f32 %v1998, %v2050
    %v2059 = vadd.f32 %v1999, %v2051
    %2060 = vrot.lane.b32.xlu0 %v2000, 1
    %v2061 = vpop.permute.xlu0 %2060
    %2062 = vrot.lane.b32.xlu0 %v2001, 1
    %v2063 = vpop.permute.xlu0 %2062
    %2064 = vrot.lane.b32.xlu0 %v2002, 1
    %v2065 = vpop.permute.xlu0 %2064
    %2066 = vrot.lane.b32.xlu0 %v2003, 1
    %v2067 = vpop.permute.xlu0 %2066
    %2068 = vrot.lane.b32.xlu0 %v2004, 1
    %v2069 = vpop.permute.xlu0 %2068
    %2070 = vrot.lane.b32.xlu0 %v2005, 1
    %v2071 = vpop.permute.xlu0 %2070
    %2072 = vrot.lane.b32.xlu0 %v2006, 1
    %v2073 = vpop.permute.xlu0 %2072
    %2074 = vrot.lane.b32.xlu0 %v2007, 1
    %v2075 = vpop.permute.xlu0 %2074
    %s2076 = sld [smem:[#allocation3 + $0x51]]
    %v2077 = vstv %s2076
    %v2078 = vmul.f32 %v2077, %v2061
    %v2079 = vmul.f32 %v2077, %v2063
    %v2080 = vmul.f32 %v2077, %v2065
    %v2081 = vmul.f32 %v2077, %v2067
    %v2082 = vmul.f32 %v2077, %v2069
    %v2083 = vmul.f32 %v2077, %v2071
    %v2084 = vmul.f32 %v2077, %v2073
    %v2085 = vmul.f32 %v2077, %v2075
    %v2086 = vadd.f32 %v2034, %v2078
    %v2087 = vadd.f32 %v2035, %v2079
    %v2088 = vadd.f32 %v2036, %v2080
    %v2089 = vadd.f32 %v2037, %v2081
    %v2090 = vadd.f32 %v2038, %v2082
    %v2091 = vadd.f32 %v2039, %v2083
    %v2092 = vadd.f32 %v2040, %v2084
    %v2093 = vadd.f32 %v2041, %v2085
    %s2094 = sld [smem:[#allocation3 + $0x6a]]
    %v2095 = vstv %s2094
    %v2096 = vmul.f32 %v2095, %v2061
    %v2097 = vmul.f32 %v2095, %v2063
    %v2098 = vmul.f32 %v2095, %v2065
    %v2099 = vmul.f32 %v2095, %v2067
    %v2100 = vmul.f32 %v2095, %v2069
    %v2101 = vmul.f32 %v2095, %v2071
    %v2102 = vmul.f32 %v2095, %v2073
    %v2103 = vmul.f32 %v2095, %v2075
    %v2104 = vadd.f32 %v2052, %v2096
    %v2105 = vadd.f32 %v2053, %v2097
    %v2106 = vadd.f32 %v2054, %v2098
    %v2107 = vadd.f32 %v2055, %v2099
    %v2108 = vadd.f32 %v2056, %v2100
    %v2109 = vadd.f32 %v2057, %v2101
    %v2110 = vadd.f32 %v2058, %v2102
    %v2111 = vadd.f32 %v2059, %v2103
    %s2112 = sld [smem:[#allocation3 + $0x52]]
    %v2113 = vstv %s2112
    %v2114 = vmul.f32 %v2113, %v2000
    %v2115 = vmul.f32 %v2113, %v2001
    %v2116 = vmul.f32 %v2113, %v2002
    %v2117 = vmul.f32 %v2113, %v2003
    %v2118 = vmul.f32 %v2113, %v2004
    %v2119 = vmul.f32 %v2113, %v2005
    %v2120 = vmul.f32 %v2113, %v2006
    %v2121 = vmul.f32 %v2113, %v2007
    %v2122 = vadd.f32 %v2086, %v2114
    %v2123 = vadd.f32 %v2087, %v2115
    %v2124 = vadd.f32 %v2088, %v2116
    %v2125 = vadd.f32 %v2089, %v2117
    %v2126 = vadd.f32 %v2090, %v2118
    %v2127 = vadd.f32 %v2091, %v2119
    %v2128 = vadd.f32 %v2092, %v2120
    %v2129 = vadd.f32 %v2093, %v2121
    %s2130 = sld [smem:[#allocation3 + $0x6b]]
    %v2131 = vstv %s2130
    %v2132 = vmul.f32 %v2131, %v2000
    %v2133 = vmul.f32 %v2131, %v2001
    %v2134 = vmul.f32 %v2131, %v2002
    %v2135 = vmul.f32 %v2131, %v2003
    %v2136 = vmul.f32 %v2131, %v2004
    %v2137 = vmul.f32 %v2131, %v2005
    %v2138 = vmul.f32 %v2131, %v2006
    %v2139 = vmul.f32 %v2131, %v2007
    %v2140 = vadd.f32 %v2104, %v2132
    %v2141 = vadd.f32 %v2105, %v2133
    %v2142 = vadd.f32 %v2106, %v2134
    %v2143 = vadd.f32 %v2107, %v2135
    %v2144 = vadd.f32 %v2108, %v2136
    %v2145 = vadd.f32 %v2109, %v2137
    %v2146 = vadd.f32 %v2110, %v2138
    %v2147 = vadd.f32 %v2111, %v2139
    %2148 = vrot.lane.b32.xlu0 %v2000, 127
    %v2149 = vpop.permute.xlu0 %2148
    %2150 = vrot.lane.b32.xlu0 %v2001, 127
    %v2151 = vpop.permute.xlu0 %2150
    %2152 = vrot.lane.b32.xlu0 %v2002, 127
    %v2153 = vpop.permute.xlu0 %2152
    %2154 = vrot.lane.b32.xlu0 %v2003, 127
    %v2155 = vpop.permute.xlu0 %2154
    %2156 = vrot.lane.b32.xlu0 %v2004, 127
    %v2157 = vpop.permute.xlu0 %2156
    %2158 = vrot.lane.b32.xlu0 %v2005, 127
    %v2159 = vpop.permute.xlu0 %2158
    %2160 = vrot.lane.b32.xlu0 %v2006, 127
    %v2161 = vpop.permute.xlu0 %2160
    %2162 = vrot.lane.b32.xlu0 %v2007, 127
    %v2163 = vpop.permute.xlu0 %2162
    %s2164 = sld [smem:[#allocation3 + $0x53]]
    %v2165 = vstv %s2164
    %v2166 = vmul.f32 %v2165, %v2149
    %v2167 = vmul.f32 %v2165, %v2151
    %v2168 = vmul.f32 %v2165, %v2153
    %v2169 = vmul.f32 %v2165, %v2155
    %v2170 = vmul.f32 %v2165, %v2157
    %v2171 = vmul.f32 %v2165, %v2159
    %v2172 = vmul.f32 %v2165, %v2161
    %v2173 = vmul.f32 %v2165, %v2163
    %v2174 = vadd.f32 %v2122, %v2166
    %v2175 = vadd.f32 %v2123, %v2167
    %v2176 = vadd.f32 %v2124, %v2168
    %v2177 = vadd.f32 %v2125, %v2169
    %v2178 = vadd.f32 %v2126, %v2170
    %v2179 = vadd.f32 %v2127, %v2171
    %v2180 = vadd.f32 %v2128, %v2172
    %v2181 = vadd.f32 %v2129, %v2173
    %s2182 = sld [smem:[#allocation3 + $0x6c]]
    %v2183 = vstv %s2182
    %v2184 = vmul.f32 %v2183, %v2149
    %v2185 = vmul.f32 %v2183, %v2151
    %v2186 = vmul.f32 %v2183, %v2153
    %v2187 = vmul.f32 %v2183, %v2155
    %v2188 = vmul.f32 %v2183, %v2157
    %v2189 = vmul.f32 %v2183, %v2159
    %v2190 = vmul.f32 %v2183, %v2161
    %v2191 = vmul.f32 %v2183, %v2163
    %v2192 = vadd.f32 %v2140, %v2184
    %v2193 = vadd.f32 %v2141, %v2185
    %v2194 = vadd.f32 %v2142, %v2186
    %v2195 = vadd.f32 %v2143, %v2187
    %v2196 = vadd.f32 %v2144, %v2188
    %v2197 = vadd.f32 %v2145, %v2189
    %v2198 = vadd.f32 %v2146, %v2190
    %v2199 = vadd.f32 %v2147, %v2191
    %2200 = vrot.lane.b32.xlu0 %v2000, 126
    %v2201 = vpop.permute.xlu0 %2200
    %2202 = vrot.lane.b32.xlu0 %v2001, 126
    %v2203 = vpop.permute.xlu0 %2202
    %2204 = vrot.lane.b32.xlu0 %v2002, 126
    %v2205 = vpop.permute.xlu0 %2204
    %2206 = vrot.lane.b32.xlu0 %v2003, 126
    %v2207 = vpop.permute.xlu0 %2206
    %2208 = vrot.lane.b32.xlu0 %v2004, 126
    %v2209 = vpop.permute.xlu0 %2208
    %2210 = vrot.lane.b32.xlu0 %v2005, 126
    %v2211 = vpop.permute.xlu0 %2210
    %2212 = vrot.lane.b32.xlu0 %v2006, 126
    %v2213 = vpop.permute.xlu0 %2212
    %2214 = vrot.lane.b32.xlu0 %v2007, 126
    %v2215 = vpop.permute.xlu0 %2214
    %s2216 = sld [smem:[#allocation3 + $0x54]]
    %v2217 = vstv %s2216
    %v2218 = vmul.f32 %v2217, %v2201
    %v2219 = vmul.f32 %v2217, %v2203
    %v2220 = vmul.f32 %v2217, %v2205
    %v2221 = vmul.f32 %v2217, %v2207
    %v2222 = vmul.f32 %v2217, %v2209
    %v2223 = vmul.f32 %v2217, %v2211
    %v2224 = vmul.f32 %v2217, %v2213
    %v2225 = vmul.f32 %v2217, %v2215
    %v2226 = vadd.f32 %v2174, %v2218
    %v2227 = vadd.f32 %v2175, %v2219
    %v2228 = vadd.f32 %v2176, %v2220
    %v2229 = vadd.f32 %v2177, %v2221
    %v2230 = vadd.f32 %v2178, %v2222
    %v2231 = vadd.f32 %v2179, %v2223
    %v2232 = vadd.f32 %v2180, %v2224
    %v2233 = vadd.f32 %v2181, %v2225
    %s2234 = sld [smem:[#allocation3 + $0x6d]]
    %v2235 = vstv %s2234
    %v2236 = vmul.f32 %v2235, %v2201
    %v2237 = vmul.f32 %v2235, %v2203
    %v2238 = vmul.f32 %v2235, %v2205
    %v2239 = vmul.f32 %v2235, %v2207
    %v2240 = vmul.f32 %v2235, %v2209
    %v2241 = vmul.f32 %v2235, %v2211
    %v2242 = vmul.f32 %v2235, %v2213
    %v2243 = vmul.f32 %v2235, %v2215
    %v2244 = vadd.f32 %v2192, %v2236
    %v2245 = vadd.f32 %v2193, %v2237
    %v2246 = vadd.f32 %v2194, %v2238
    %v2247 = vadd.f32 %v2195, %v2239
    %v2248 = vadd.f32 %v2196, %v2240
    %v2249 = vadd.f32 %v2197, %v2241
    %v2250 = vadd.f32 %v2198, %v2242
    %v2251 = vadd.f32 %v2199, %v2243
    %v2252 = vld [vmem:[#allocation2 + $0x8] sm:$0xff]
    %v2253 = vld [vmem:[#allocation2 + $0x10] sm:$0xff]
    %v2254 = vld [vmem:[#allocation2 + $0x18] sm:$0xff]
    %v2255 = vld [vmem:[#allocation2 + $0x20] sm:$0xff]
    %v2256 = vld [vmem:[#allocation2 + $0x28] sm:$0xff]
    %v2257 = vld [vmem:[#allocation2 + $0x30] sm:$0xff]
    %v2258 = vld [vmem:[#allocation2 + $0x38] sm:$0xff]
    %v2259 = vld [vmem:[#allocation2 + $0x40] sm:$0xff]
    %2260 = vrot.lane.b32.xlu0 %v2252, 2
    %v2261 = vpop.permute.xlu0 %2260
    %2262 = vrot.lane.b32.xlu0 %v2253, 2
    %v2263 = vpop.permute.xlu0 %2262
    %2264 = vrot.lane.b32.xlu0 %v2254, 2
    %v2265 = vpop.permute.xlu0 %2264
    %2266 = vrot.lane.b32.xlu0 %v2255, 2
    %v2267 = vpop.permute.xlu0 %2266
    %2268 = vrot.lane.b32.xlu0 %v2256, 2
    %v2269 = vpop.permute.xlu0 %2268
    %2270 = vrot.lane.b32.xlu0 %v2257, 2
    %v2271 = vpop.permute.xlu0 %2270
    %2272 = vrot.lane.b32.xlu0 %v2258, 2
    %v2273 = vpop.permute.xlu0 %2272
    %2274 = vrot.lane.b32.xlu0 %v2259, 2
    %v2275 = vpop.permute.xlu0 %2274
    %s2276 = sld [smem:[#allocation3 + $0x55]]
    %v2277 = vstv %s2276
    %v2278 = vmul.f32 %v2277, %v2261
    %v2279 = vmul.f32 %v2277, %v2263
    %v2280 = vmul.f32 %v2277, %v2265
    %v2281 = vmul.f32 %v2277, %v2267
    %v2282 = vmul.f32 %v2277, %v2269
    %v2283 = vmul.f32 %v2277, %v2271
    %v2284 = vmul.f32 %v2277, %v2273
    %v2285 = vmul.f32 %v2277, %v2275
    %v2286 = vadd.f32 %v2226, %v2278
    %v2287 = vadd.f32 %v2227, %v2279
    %v2288 = vadd.f32 %v2228, %v2280
    %v2289 = vadd.f32 %v2229, %v2281
    %v2290 = vadd.f32 %v2230, %v2282
    %v2291 = vadd.f32 %v2231, %v2283
    %v2292 = vadd.f32 %v2232, %v2284
    %v2293 = vadd.f32 %v2233, %v2285
    %s2294 = sld [smem:[#allocation3 + $0x6e]]
    %v2295 = vstv %s2294
    %v2296 = vmul.f32 %v2295, %v2261
    %v2297 = vmul.f32 %v2295, %v2263
    %v2298 = vmul.f32 %v2295, %v2265
    %v2299 = vmul.f32 %v2295, %v2267
    %v2300 = vmul.f32 %v2295, %v2269
    %v2301 = vmul.f32 %v2295, %v2271
    %v2302 = vmul.f32 %v2295, %v2273
    %v2303 = vmul.f32 %v2295, %v2275
    %v2304 = vadd.f32 %v2244, %v2296
    %v2305 = vadd.f32 %v2245, %v2297
    %v2306 = vadd.f32 %v2246, %v2298
    %v2307 = vadd.f32 %v2247, %v2299
    %v2308 = vadd.f32 %v2248, %v2300
    %v2309 = vadd.f32 %v2249, %v2301
    %v2310 = vadd.f32 %v2250, %v2302
    %v2311 = vadd.f32 %v2251, %v2303
    %2312 = vrot.lane.b32.xlu0 %v2252, 1
    %v2313 = vpop.permute.xlu0 %2312
    %2314 = vrot.lane.b32.xlu0 %v2253, 1
    %v2315 = vpop.permute.xlu0 %2314
    %2316 = vrot.lane.b32.xlu0 %v2254, 1
    %v2317 = vpop.permute.xlu0 %2316
    %2318 = vrot.lane.b32.xlu0 %v2255, 1
    %v2319 = vpop.permute.xlu0 %2318
    %2320 = vrot.lane.b32.xlu0 %v2256, 1
    %v2321 = vpop.permute.xlu0 %2320
    %2322 = vrot.lane.b32.xlu0 %v2257, 1
    %v2323 = vpop.permute.xlu0 %2322
    %2324 = vrot.lane.b32.xlu0 %v2258, 1
    %v2325 = vpop.permute.xlu0 %2324
    %2326 = vrot.lane.b32.xlu0 %v2259, 1
    %v2327 = vpop.permute.xlu0 %2326
    %s2328 = sld [smem:[#allocation3 + $0x56]]
    %v2329 = vstv %s2328
    %v2330 = vmul.f32 %v2329, %v2313
    %v2331 = vmul.f32 %v2329, %v2315
    %v2332 = vmul.f32 %v2329, %v2317
    %v2333 = vmul.f32 %v2329, %v2319
    %v2334 = vmul.f32 %v2329, %v2321
    %v2335 = vmul.f32 %v2329, %v2323
    %v2336 = vmul.f32 %v2329, %v2325
    %v2337 = vmul.f32 %v2329, %v2327
    %v2338 = vadd.f32 %v2286, %v2330
    %v2339 = vadd.f32 %v2287, %v2331
    %v2340 = vadd.f32 %v2288, %v2332
    %v2341 = vadd.f32 %v2289, %v2333
    %v2342 = vadd.f32 %v2290, %v2334
    %v2343 = vadd.f32 %v2291, %v2335
    %v2344 = vadd.f32 %v2292, %v2336
    %v2345 = vadd.f32 %v2293, %v2337
    %s2346 = sld [smem:[#allocation3 + $0x6f]]
    %v2347 = vstv %s2346
    %v2348 = vmul.f32 %v2347, %v2313
    %v2349 = vmul.f32 %v2347, %v2315
    %v2350 = vmul.f32 %v2347, %v2317
    %v2351 = vmul.f32 %v2347, %v2319
    %v2352 = vmul.f32 %v2347, %v2321
    %v2353 = vmul.f32 %v2347, %v2323
    %v2354 = vmul.f32 %v2347, %v2325
    %v2355 = vmul.f32 %v2347, %v2327
    %v2356 = vadd.f32 %v2304, %v2348
    %v2357 = vadd.f32 %v2305, %v2349
    %v2358 = vadd.f32 %v2306, %v2350
    %v2359 = vadd.f32 %v2307, %v2351
    %v2360 = vadd.f32 %v2308, %v2352
    %v2361 = vadd.f32 %v2309, %v2353
    %v2362 = vadd.f32 %v2310, %v2354
    %v2363 = vadd.f32 %v2311, %v2355
    %s2364 = sld [smem:[#allocation3 + $0x57]]
    %v2365 = vstv %s2364
    %v2366 = vmul.f32 %v2365, %v2252
    %v2367 = vmul.f32 %v2365, %v2253
    %v2368 = vmul.f32 %v2365, %v2254
    %v2369 = vmul.f32 %v2365, %v2255
    %v2370 = vmul.f32 %v2365, %v2256
    %v2371 = vmul.f32 %v2365, %v2257
    %v2372 = vmul.f32 %v2365, %v2258
    %v2373 = vmul.f32 %v2365, %v2259
    %v2374 = vadd.f32 %v2338, %v2366
    %v2375 = vadd.f32 %v2339, %v2367
    %v2376 = vadd.f32 %v2340, %v2368
    %v2377 = vadd.f32 %v2341, %v2369
    %v2378 = vadd.f32 %v2342, %v2370
    %v2379 = vadd.f32 %v2343, %v2371
    %v2380 = vadd.f32 %v2344, %v2372
    %v2381 = vadd.f32 %v2345, %v2373
    %s2382 = sld [smem:[#allocation3 + $0x70]]
    %v2383 = vstv %s2382
    %v2384 = vmul.f32 %v2383, %v2252
    %v2385 = vmul.f32 %v2383, %v2253
    %v2386 = vmul.f32 %v2383, %v2254
    %v2387 = vmul.f32 %v2383, %v2255
    %v2388 = vmul.f32 %v2383, %v2256
    %v2389 = vmul.f32 %v2383, %v2257
    %v2390 = vmul.f32 %v2383, %v2258
    %v2391 = vmul.f32 %v2383, %v2259
    %v2392 = vadd.f32 %v2356, %v2384
    %v2393 = vadd.f32 %v2357, %v2385
    %v2394 = vadd.f32 %v2358, %v2386
    %v2395 = vadd.f32 %v2359, %v2387
    %v2396 = vadd.f32 %v2360, %v2388
    %v2397 = vadd.f32 %v2361, %v2389
    %v2398 = vadd.f32 %v2362, %v2390
    %v2399 = vadd.f32 %v2363, %v2391
    %2400 = vrot.lane.b32.xlu0 %v2252, 127
    %v2401 = vpop.permute.xlu0 %2400
    %2402 = vrot.lane.b32.xlu0 %v2253, 127
    %v2403 = vpop.permute.xlu0 %2402
    %2404 = vrot.lane.b32.xlu0 %v2254, 127
    %v2405 = vpop.permute.xlu0 %2404
    %2406 = vrot.lane.b32.xlu0 %v2255, 127
    %v2407 = vpop.permute.xlu0 %2406
    %2408 = vrot.lane.b32.xlu0 %v2256, 127
    %v2409 = vpop.permute.xlu0 %2408
    %2410 = vrot.lane.b32.xlu0 %v2257, 127
    %v2411 = vpop.permute.xlu0 %2410
    %2412 = vrot.lane.b32.xlu0 %v2258, 127
    %v2413 = vpop.permute.xlu0 %2412
    %2414 = vrot.lane.b32.xlu0 %v2259, 127
    %v2415 = vpop.permute.xlu0 %2414
    %s2416 = sld [smem:[#allocation3 + $0x58]]
    %v2417 = vstv %s2416
    %v2418 = vmul.f32 %v2417, %v2401
    %v2419 = vmul.f32 %v2417, %v2403
    %v2420 = vmul.f32 %v2417, %v2405
    %v2421 = vmul.f32 %v2417, %v2407
    %v2422 = vmul.f32 %v2417, %v2409
    %v2423 = vmul.f32 %v2417, %v2411
    %v2424 = vmul.f32 %v2417, %v2413
    %v2425 = vmul.f32 %v2417, %v2415
    %v2426 = vadd.f32 %v2374, %v2418
    %v2427 = vadd.f32 %v2375, %v2419
    %v2428 = vadd.f32 %v2376, %v2420
    %v2429 = vadd.f32 %v2377, %v2421
    %v2430 = vadd.f32 %v2378, %v2422
    %v2431 = vadd.f32 %v2379, %v2423
    %v2432 = vadd.f32 %v2380, %v2424
    %v2433 = vadd.f32 %v2381, %v2425
    %s2434 = sld [smem:[#allocation3 + $0x71]]
    %v2435 = vstv %s2434
    %v2436 = vmul.f32 %v2435, %v2401
    %v2437 = vmul.f32 %v2435, %v2403
    %v2438 = vmul.f32 %v2435, %v2405
    %v2439 = vmul.f32 %v2435, %v2407
    %v2440 = vmul.f32 %v2435, %v2409
    %v2441 = vmul.f32 %v2435, %v2411
    %v2442 = vmul.f32 %v2435, %v2413
    %v2443 = vmul.f32 %v2435, %v2415
    %v2444 = vadd.f32 %v2392, %v2436
    %v2445 = vadd.f32 %v2393, %v2437
    %v2446 = vadd.f32 %v2394, %v2438
    %v2447 = vadd.f32 %v2395, %v2439
    %v2448 = vadd.f32 %v2396, %v2440
    %v2449 = vadd.f32 %v2397, %v2441
    %v2450 = vadd.f32 %v2398, %v2442
    %v2451 = vadd.f32 %v2399, %v2443
    %2452 = vrot.lane.b32.xlu0 %v2252, 126
    %v2453 = vpop.permute.xlu0 %2452
    %2454 = vrot.lane.b32.xlu0 %v2253, 126
    %v2455 = vpop.permute.xlu0 %2454
    %2456 = vrot.lane.b32.xlu0 %v2254, 126
    %v2457 = vpop.permute.xlu0 %2456
    %2458 = vrot.lane.b32.xlu0 %v2255, 126
    %v2459 = vpop.permute.xlu0 %2458
    %2460 = vrot.lane.b32.xlu0 %v2256, 126
    %v2461 = vpop.permute.xlu0 %2460
    %2462 = vrot.lane.b32.xlu0 %v2257, 126
    %v2463 = vpop.permute.xlu0 %2462
    %2464 = vrot.lane.b32.xlu0 %v2258, 126
    %v2465 = vpop.permute.xlu0 %2464
    %2466 = vrot.lane.b32.xlu0 %v2259, 126
    %v2467 = vpop.permute.xlu0 %2466
    %s2468 = sld [smem:[#allocation3 + $0x59]]
    %v2469 = vstv %s2468
    %v2470 = vmul.f32 %v2469, %v2453
    %v2471 = vmul.f32 %v2469, %v2455
    %v2472 = vmul.f32 %v2469, %v2457
    %v2473 = vmul.f32 %v2469, %v2459
    %v2474 = vmul.f32 %v2469, %v2461
    %v2475 = vmul.f32 %v2469, %v2463
    %v2476 = vmul.f32 %v2469, %v2465
    %v2477 = vmul.f32 %v2469, %v2467
    %v2478 = vadd.f32 %v2426, %v2470
    %v2479 = vadd.f32 %v2427, %v2471
    %v2480 = vadd.f32 %v2428, %v2472
    %v2481 = vadd.f32 %v2429, %v2473
    %v2482 = vadd.f32 %v2430, %v2474
    %v2483 = vadd.f32 %v2431, %v2475
    %v2484 = vadd.f32 %v2432, %v2476
    %v2485 = vadd.f32 %v2433, %v2477
    %s2486 = sld [smem:[#allocation3 + $0x72]]
    %v2487 = vstv %s2486
    %v2488 = vmul.f32 %v2487, %v2453
    %v2489 = vmul.f32 %v2487, %v2455
    %v2490 = vmul.f32 %v2487, %v2457
    %v2491 = vmul.f32 %v2487, %v2459
    %v2492 = vmul.f32 %v2487, %v2461
    %v2493 = vmul.f32 %v2487, %v2463
    %v2494 = vmul.f32 %v2487, %v2465
    %v2495 = vmul.f32 %v2487, %v2467
    %v2496 = vadd.f32 %v2444, %v2488
    %v2497 = vadd.f32 %v2445, %v2489
    %v2498 = vadd.f32 %v2446, %v2490
    %v2499 = vadd.f32 %v2447, %v2491
    %v2500 = vadd.f32 %v2448, %v2492
    %v2501 = vadd.f32 %v2449, %v2493
    %v2502 = vadd.f32 %v2450, %v2494
    %v2503 = vadd.f32 %v2451, %v2495
    %v2504 = vld [vmem:[#allocation2 + $0x9] sm:$0xff]
    %v2505 = vld [vmem:[#allocation2 + $0x11] sm:$0xff]
    %v2506 = vld [vmem:[#allocation2 + $0x19] sm:$0xff]
    %v2507 = vld [vmem:[#allocation2 + $0x21] sm:$0xff]
    %v2508 = vld [vmem:[#allocation2 + $0x29] sm:$0xff]
    %v2509 = vld [vmem:[#allocation2 + $0x31] sm:$0xff]
    %v2510 = vld [vmem:[#allocation2 + $0x39] sm:$0xff]
    %v2511 = vld [vmem:[#allocation2 + $0x41] sm:$0xff]
    %2512 = vrot.lane.b32.xlu0 %v2504, 2
    %v2513 = vpop.permute.xlu0 %2512
    %2514 = vrot.lane.b32.xlu0 %v2505, 2
    %v2515 = vpop.permute.xlu0 %2514
    %2516 = vrot.lane.b32.xlu0 %v2506, 2
    %v2517 = vpop.permute.xlu0 %2516
    %2518 = vrot.lane.b32.xlu0 %v2507, 2
    %v2519 = vpop.permute.xlu0 %2518
    %2520 = vrot.lane.b32.xlu0 %v2508, 2
    %v2521 = vpop.permute.xlu0 %2520
    %2522 = vrot.lane.b32.xlu0 %v2509, 2
    %v2523 = vpop.permute.xlu0 %2522
    %2524 = vrot.lane.b32.xlu0 %v2510, 2
    %v2525 = vpop.permute.xlu0 %2524
    %2526 = vrot.lane.b32.xlu0 %v2511, 2
    %v2527 = vpop.permute.xlu0 %2526
    %s2528 = sld [smem:[#allocation3 + $0x5a]]
    %v2529 = vstv %s2528
    %v2530 = vmul.f32 %v2529, %v2513
    %v2531 = vmul.f32 %v2529, %v2515
    %v2532 = vmul.f32 %v2529, %v2517
    %v2533 = vmul.f32 %v2529, %v2519
    %v2534 = vmul.f32 %v2529, %v2521
    %v2535 = vmul.f32 %v2529, %v2523
    %v2536 = vmul.f32 %v2529, %v2525
    %v2537 = vmul.f32 %v2529, %v2527
    %v2538 = vadd.f32 %v2478, %v2530
    %v2539 = vadd.f32 %v2479, %v2531
    %v2540 = vadd.f32 %v2480, %v2532
    %v2541 = vadd.f32 %v2481, %v2533
    %v2542 = vadd.f32 %v2482, %v2534
    %v2543 = vadd.f32 %v2483, %v2535
    %v2544 = vadd.f32 %v2484, %v2536
    %v2545 = vadd.f32 %v2485, %v2537
    %s2546 = sld [smem:[#allocation3 + $0x73]]
    %v2547 = vstv %s2546
    %v2548 = vmul.f32 %v2547, %v2513
    %v2549 = vmul.f32 %v2547, %v2515
    %v2550 = vmul.f32 %v2547, %v2517
    %v2551 = vmul.f32 %v2547, %v2519
    %v2552 = vmul.f32 %v2547, %v2521
    %v2553 = vmul.f32 %v2547, %v2523
    %v2554 = vmul.f32 %v2547, %v2525
    %v2555 = vmul.f32 %v2547, %v2527
    %v2556 = vadd.f32 %v2496, %v2548
    %v2557 = vadd.f32 %v2497, %v2549
    %v2558 = vadd.f32 %v2498, %v2550
    %v2559 = vadd.f32 %v2499, %v2551
    %v2560 = vadd.f32 %v2500, %v2552
    %v2561 = vadd.f32 %v2501, %v2553
    %v2562 = vadd.f32 %v2502, %v2554
    %v2563 = vadd.f32 %v2503, %v2555
    %2564 = vrot.lane.b32.xlu0 %v2504, 1
    %v2565 = vpop.permute.xlu0 %2564
    %2566 = vrot.lane.b32.xlu0 %v2505, 1
    %v2567 = vpop.permute.xlu0 %2566
    %2568 = vrot.lane.b32.xlu0 %v2506, 1
    %v2569 = vpop.permute.xlu0 %2568
    %2570 = vrot.lane.b32.xlu0 %v2507, 1
    %v2571 = vpop.permute.xlu0 %2570
    %2572 = vrot.lane.b32.xlu0 %v2508, 1
    %v2573 = vpop.permute.xlu0 %2572
    %2574 = vrot.lane.b32.xlu0 %v2509, 1
    %v2575 = vpop.permute.xlu0 %2574
    %2576 = vrot.lane.b32.xlu0 %v2510, 1
    %v2577 = vpop.permute.xlu0 %2576
    %2578 = vrot.lane.b32.xlu0 %v2511, 1
    %v2579 = vpop.permute.xlu0 %2578
    %s2580 = sld [smem:[#allocation3 + $0x5b]]
    %v2581 = vstv %s2580
    %v2582 = vmul.f32 %v2581, %v2565
    %v2583 = vmul.f32 %v2581, %v2567
    %v2584 = vmul.f32 %v2581, %v2569
    %v2585 = vmul.f32 %v2581, %v2571
    %v2586 = vmul.f32 %v2581, %v2573
    %v2587 = vmul.f32 %v2581, %v2575
    %v2588 = vmul.f32 %v2581, %v2577
    %v2589 = vmul.f32 %v2581, %v2579
    %v2590 = vadd.f32 %v2538, %v2582
    %v2591 = vadd.f32 %v2539, %v2583
    %v2592 = vadd.f32 %v2540, %v2584
    %v2593 = vadd.f32 %v2541, %v2585
    %v2594 = vadd.f32 %v2542, %v2586
    %v2595 = vadd.f32 %v2543, %v2587
    %v2596 = vadd.f32 %v2544, %v2588
    %v2597 = vadd.f32 %v2545, %v2589
    %s2598 = sld [smem:[#allocation3 + $0x74]]
    %v2599 = vstv %s2598
    %v2600 = vmul.f32 %v2599, %v2565
    %v2601 = vmul.f32 %v2599, %v2567
    %v2602 = vmul.f32 %v2599, %v2569
    %v2603 = vmul.f32 %v2599, %v2571
    %v2604 = vmul.f32 %v2599, %v2573
    %v2605 = vmul.f32 %v2599, %v2575
    %v2606 = vmul.f32 %v2599, %v2577
    %v2607 = vmul.f32 %v2599, %v2579
    %v2608 = vadd.f32 %v2556, %v2600
    %v2609 = vadd.f32 %v2557, %v2601
    %v2610 = vadd.f32 %v2558, %v2602
    %v2611 = vadd.f32 %v2559, %v2603
    %v2612 = vadd.f32 %v2560, %v2604
    %v2613 = vadd.f32 %v2561, %v2605
    %v2614 = vadd.f32 %v2562, %v2606
    %v2615 = vadd.f32 %v2563, %v2607
    %s2616 = sld [smem:[#allocation3 + $0x5c]]
    %v2617 = vstv %s2616
    %v2618 = vmul.f32 %v2617, %v2504
    %v2619 = vmul.f32 %v2617, %v2505
    %v2620 = vmul.f32 %v2617, %v2506
    %v2621 = vmul.f32 %v2617, %v2507
    %v2622 = vmul.f32 %v2617, %v2508
    %v2623 = vmul.f32 %v2617, %v2509
    %v2624 = vmul.f32 %v2617, %v2510
    %v2625 = vmul.f32 %v2617, %v2511
    %v2626 = vadd.f32 %v2590, %v2618
    %v2627 = vadd.f32 %v2591, %v2619
    %v2628 = vadd.f32 %v2592, %v2620
    %v2629 = vadd.f32 %v2593, %v2621
    %v2630 = vadd.f32 %v2594, %v2622
    %v2631 = vadd.f32 %v2595, %v2623
    %v2632 = vadd.f32 %v2596, %v2624
    %v2633 = vadd.f32 %v2597, %v2625
    %s2634 = sld [smem:[#allocation3 + $0x75]]
    %v2635 = vstv %s2634
    %v2636 = vmul.f32 %v2635, %v2504
    %v2637 = vmul.f32 %v2635, %v2505
    %v2638 = vmul.f32 %v2635, %v2506
    %v2639 = vmul.f32 %v2635, %v2507
    %v2640 = vmul.f32 %v2635, %v2508
    %v2641 = vmul.f32 %v2635, %v2509
    %v2642 = vmul.f32 %v2635, %v2510
    %v2643 = vmul.f32 %v2635, %v2511
    %v2644 = vadd.f32 %v2608, %v2636
    %v2645 = vadd.f32 %v2609, %v2637
    %v2646 = vadd.f32 %v2610, %v2638
    %v2647 = vadd.f32 %v2611, %v2639
    %v2648 = vadd.f32 %v2612, %v2640
    %v2649 = vadd.f32 %v2613, %v2641
    %v2650 = vadd.f32 %v2614, %v2642
    %v2651 = vadd.f32 %v2615, %v2643
    %2652 = vrot.lane.b32.xlu0 %v2504, 127
    %v2653 = vpop.permute.xlu0 %2652
    %2654 = vrot.lane.b32.xlu0 %v2505, 127
    %v2655 = vpop.permute.xlu0 %2654
    %2656 = vrot.lane.b32.xlu0 %v2506, 127
    %v2657 = vpop.permute.xlu0 %2656
    %2658 = vrot.lane.b32.xlu0 %v2507, 127
    %v2659 = vpop.permute.xlu0 %2658
    %2660 = vrot.lane.b32.xlu0 %v2508, 127
    %v2661 = vpop.permute.xlu0 %2660
    %2662 = vrot.lane.b32.xlu0 %v2509, 127
    %v2663 = vpop.permute.xlu0 %2662
    %2664 = vrot.lane.b32.xlu0 %v2510, 127
    %v2665 = vpop.permute.xlu0 %2664
    %2666 = vrot.lane.b32.xlu0 %v2511, 127
    %v2667 = vpop.permute.xlu0 %2666
    %s2668 = sld [smem:[#allocation3 + $0x5d]]
    %v2669 = vstv %s2668
    %v2670 = vmul.f32 %v2669, %v2653
    %v2671 = vmul.f32 %v2669, %v2655
    %v2672 = vmul.f32 %v2669, %v2657
    %v2673 = vmul.f32 %v2669, %v2659
    %v2674 = vmul.f32 %v2669, %v2661
    %v2675 = vmul.f32 %v2669, %v2663
    %v2676 = vmul.f32 %v2669, %v2665
    %v2677 = vmul.f32 %v2669, %v2667
    %v2678 = vadd.f32 %v2626, %v2670
    %v2679 = vadd.f32 %v2627, %v2671
    %v2680 = vadd.f32 %v2628, %v2672
    %v2681 = vadd.f32 %v2629, %v2673
    %v2682 = vadd.f32 %v2630, %v2674
    %v2683 = vadd.f32 %v2631, %v2675
    %v2684 = vadd.f32 %v2632, %v2676
    %v2685 = vadd.f32 %v2633, %v2677
    %s2686 = sld [smem:[#allocation3 + $0x76]]
    %v2687 = vstv %s2686
    %v2688 = vmul.f32 %v2687, %v2653
    %v2689 = vmul.f32 %v2687, %v2655
    %v2690 = vmul.f32 %v2687, %v2657
    %v2691 = vmul.f32 %v2687, %v2659
    %v2692 = vmul.f32 %v2687, %v2661
    %v2693 = vmul.f32 %v2687, %v2663
    %v2694 = vmul.f32 %v2687, %v2665
    %v2695 = vmul.f32 %v2687, %v2667
    %v2696 = vadd.f32 %v2644, %v2688
    %v2697 = vadd.f32 %v2645, %v2689
    %v2698 = vadd.f32 %v2646, %v2690
    %v2699 = vadd.f32 %v2647, %v2691
    %v2700 = vadd.f32 %v2648, %v2692
    %v2701 = vadd.f32 %v2649, %v2693
    %v2702 = vadd.f32 %v2650, %v2694
    %v2703 = vadd.f32 %v2651, %v2695
    %2704 = vrot.lane.b32.xlu0 %v2504, 126
    %v2705 = vpop.permute.xlu0 %2704
    %2706 = vrot.lane.b32.xlu0 %v2505, 126
    %v2707 = vpop.permute.xlu0 %2706
    %2708 = vrot.lane.b32.xlu0 %v2506, 126
    %v2709 = vpop.permute.xlu0 %2708
    %2710 = vrot.lane.b32.xlu0 %v2507, 126
    %v2711 = vpop.permute.xlu0 %2710
    %2712 = vrot.lane.b32.xlu0 %v2508, 126
    %v2713 = vpop.permute.xlu0 %2712
    %2714 = vrot.lane.b32.xlu0 %v2509, 126
    %v2715 = vpop.permute.xlu0 %2714
    %2716 = vrot.lane.b32.xlu0 %v2510, 126
    %v2717 = vpop.permute.xlu0 %2716
    %2718 = vrot.lane.b32.xlu0 %v2511, 126
    %v2719 = vpop.permute.xlu0 %2718
    %s2720 = sld [smem:[#allocation3 + $0x5e]]
    %v2721 = vstv %s2720
    %v2722 = vmul.f32 %v2721, %v2705
    %v2723 = vmul.f32 %v2721, %v2707
    %v2724 = vmul.f32 %v2721, %v2709
    %v2725 = vmul.f32 %v2721, %v2711
    %v2726 = vmul.f32 %v2721, %v2713
    %v2727 = vmul.f32 %v2721, %v2715
    %v2728 = vmul.f32 %v2721, %v2717
    %v2729 = vmul.f32 %v2721, %v2719
    %v2730 = vadd.f32 %v2678, %v2722
    %v2731 = vadd.f32 %v2679, %v2723
    %v2732 = vadd.f32 %v2680, %v2724
    %v2733 = vadd.f32 %v2681, %v2725
    %v2734 = vadd.f32 %v2682, %v2726
    %v2735 = vadd.f32 %v2683, %v2727
    %v2736 = vadd.f32 %v2684, %v2728
    %v2737 = vadd.f32 %v2685, %v2729
    %s2738 = sld [smem:[#allocation3 + $0x77]]
    %v2739 = vstv %s2738
    %v2740 = vmul.f32 %v2739, %v2705
    %v2741 = vmul.f32 %v2739, %v2707
    %v2742 = vmul.f32 %v2739, %v2709
    %v2743 = vmul.f32 %v2739, %v2711
    %v2744 = vmul.f32 %v2739, %v2713
    %v2745 = vmul.f32 %v2739, %v2715
    %v2746 = vmul.f32 %v2739, %v2717
    %v2747 = vmul.f32 %v2739, %v2719
    %v2748 = vadd.f32 %v2696, %v2740
    %v2749 = vadd.f32 %v2697, %v2741
    %v2750 = vadd.f32 %v2698, %v2742
    %v2751 = vadd.f32 %v2699, %v2743
    %v2752 = vadd.f32 %v2700, %v2744
    %v2753 = vadd.f32 %v2701, %v2745
    %v2754 = vadd.f32 %v2702, %v2746
    %v2755 = vadd.f32 %v2703, %v2747
    %v2756 = vld [vmem:[#allocation2 + $0xa] sm:$0xff]
    %v2757 = vld [vmem:[#allocation2 + $0x12] sm:$0xff]
    %v2758 = vld [vmem:[#allocation2 + $0x1a] sm:$0xff]
    %v2759 = vld [vmem:[#allocation2 + $0x22] sm:$0xff]
    %v2760 = vld [vmem:[#allocation2 + $0x2a] sm:$0xff]
    %v2761 = vld [vmem:[#allocation2 + $0x32] sm:$0xff]
    %v2762 = vld [vmem:[#allocation2 + $0x3a] sm:$0xff]
    %v2763 = vld [vmem:[#allocation2 + $0x42] sm:$0xff]
    %2764 = vrot.lane.b32.xlu0 %v2756, 2
    %v2765 = vpop.permute.xlu0 %2764
    %2766 = vrot.lane.b32.xlu0 %v2757, 2
    %v2767 = vpop.permute.xlu0 %2766
    %2768 = vrot.lane.b32.xlu0 %v2758, 2
    %v2769 = vpop.permute.xlu0 %2768
    %2770 = vrot.lane.b32.xlu0 %v2759, 2
    %v2771 = vpop.permute.xlu0 %2770
    %2772 = vrot.lane.b32.xlu0 %v2760, 2
    %v2773 = vpop.permute.xlu0 %2772
    %2774 = vrot.lane.b32.xlu0 %v2761, 2
    %v2775 = vpop.permute.xlu0 %2774
    %2776 = vrot.lane.b32.xlu0 %v2762, 2
    %v2777 = vpop.permute.xlu0 %2776
    %2778 = vrot.lane.b32.xlu0 %v2763, 2
    %v2779 = vpop.permute.xlu0 %2778
    %s2780 = sld [smem:[#allocation3 + $0x5f]]
    %v2781 = vstv %s2780
    %v2782 = vmul.f32 %v2781, %v2765
    %v2783 = vmul.f32 %v2781, %v2767
    %v2784 = vmul.f32 %v2781, %v2769
    %v2785 = vmul.f32 %v2781, %v2771
    %v2786 = vmul.f32 %v2781, %v2773
    %v2787 = vmul.f32 %v2781, %v2775
    %v2788 = vmul.f32 %v2781, %v2777
    %v2789 = vmul.f32 %v2781, %v2779
    %v2790 = vadd.f32 %v2730, %v2782
    %v2791 = vadd.f32 %v2731, %v2783
    %v2792 = vadd.f32 %v2732, %v2784
    %v2793 = vadd.f32 %v2733, %v2785
    %v2794 = vadd.f32 %v2734, %v2786
    %v2795 = vadd.f32 %v2735, %v2787
    %v2796 = vadd.f32 %v2736, %v2788
    %v2797 = vadd.f32 %v2737, %v2789
    %s2798 = sld [smem:[#allocation3 + $0x78]]
    %v2799 = vstv %s2798
    %v2800 = vmul.f32 %v2799, %v2765
    %v2801 = vmul.f32 %v2799, %v2767
    %v2802 = vmul.f32 %v2799, %v2769
    %v2803 = vmul.f32 %v2799, %v2771
    %v2804 = vmul.f32 %v2799, %v2773
    %v2805 = vmul.f32 %v2799, %v2775
    %v2806 = vmul.f32 %v2799, %v2777
    %v2807 = vmul.f32 %v2799, %v2779
    %v2808 = vadd.f32 %v2748, %v2800
    %v2809 = vadd.f32 %v2749, %v2801
    %v2810 = vadd.f32 %v2750, %v2802
    %v2811 = vadd.f32 %v2751, %v2803
    %v2812 = vadd.f32 %v2752, %v2804
    %v2813 = vadd.f32 %v2753, %v2805
    %v2814 = vadd.f32 %v2754, %v2806
    %v2815 = vadd.f32 %v2755, %v2807
    %2816 = vrot.lane.b32.xlu0 %v2756, 1
    %v2817 = vpop.permute.xlu0 %2816
    %2818 = vrot.lane.b32.xlu0 %v2757, 1
    %v2819 = vpop.permute.xlu0 %2818
    %2820 = vrot.lane.b32.xlu0 %v2758, 1
    %v2821 = vpop.permute.xlu0 %2820
    %2822 = vrot.lane.b32.xlu0 %v2759, 1
    %v2823 = vpop.permute.xlu0 %2822
    %2824 = vrot.lane.b32.xlu0 %v2760, 1
    %v2825 = vpop.permute.xlu0 %2824
    %2826 = vrot.lane.b32.xlu0 %v2761, 1
    %v2827 = vpop.permute.xlu0 %2826
    %2828 = vrot.lane.b32.xlu0 %v2762, 1
    %v2829 = vpop.permute.xlu0 %2828
    %2830 = vrot.lane.b32.xlu0 %v2763, 1
    %v2831 = vpop.permute.xlu0 %2830
    %s2832 = sld [smem:[#allocation3 + $0x60]]
    %v2833 = vstv %s2832
    %v2834 = vmul.f32 %v2833, %v2817
    %v2835 = vmul.f32 %v2833, %v2819
    %v2836 = vmul.f32 %v2833, %v2821
    %v2837 = vmul.f32 %v2833, %v2823
    %v2838 = vmul.f32 %v2833, %v2825
    %v2839 = vmul.f32 %v2833, %v2827
    %v2840 = vmul.f32 %v2833, %v2829
    %v2841 = vmul.f32 %v2833, %v2831
    %v2842 = vadd.f32 %v2790, %v2834
    %v2843 = vadd.f32 %v2791, %v2835
    %v2844 = vadd.f32 %v2792, %v2836
    %v2845 = vadd.f32 %v2793, %v2837
    %v2846 = vadd.f32 %v2794, %v2838
    %v2847 = vadd.f32 %v2795, %v2839
    %v2848 = vadd.f32 %v2796, %v2840
    %v2849 = vadd.f32 %v2797, %v2841
    %s2850 = sld [smem:[#allocation3 + $0x79]]
    %v2851 = vstv %s2850
    %v2852 = vmul.f32 %v2851, %v2817
    %v2853 = vmul.f32 %v2851, %v2819
    %v2854 = vmul.f32 %v2851, %v2821
    %v2855 = vmul.f32 %v2851, %v2823
    %v2856 = vmul.f32 %v2851, %v2825
    %v2857 = vmul.f32 %v2851, %v2827
    %v2858 = vmul.f32 %v2851, %v2829
    %v2859 = vmul.f32 %v2851, %v2831
    %v2860 = vadd.f32 %v2808, %v2852
    %v2861 = vadd.f32 %v2809, %v2853
    %v2862 = vadd.f32 %v2810, %v2854
    %v2863 = vadd.f32 %v2811, %v2855
    %v2864 = vadd.f32 %v2812, %v2856
    %v2865 = vadd.f32 %v2813, %v2857
    %v2866 = vadd.f32 %v2814, %v2858
    %v2867 = vadd.f32 %v2815, %v2859
    %s2868 = sld [smem:[#allocation3 + $0x61]]
    %v2869 = vstv %s2868
    %v2870 = vmul.f32 %v2869, %v2756
    %v2871 = vmul.f32 %v2869, %v2757
    %v2872 = vmul.f32 %v2869, %v2758
    %v2873 = vmul.f32 %v2869, %v2759
    %v2874 = vmul.f32 %v2869, %v2760
    %v2875 = vmul.f32 %v2869, %v2761
    %v2876 = vmul.f32 %v2869, %v2762
    %v2877 = vmul.f32 %v2869, %v2763
    %v2878 = vadd.f32 %v2842, %v2870
    %v2879 = vadd.f32 %v2843, %v2871
    %v2880 = vadd.f32 %v2844, %v2872
    %v2881 = vadd.f32 %v2845, %v2873
    %v2882 = vadd.f32 %v2846, %v2874
    %v2883 = vadd.f32 %v2847, %v2875
    %v2884 = vadd.f32 %v2848, %v2876
    %v2885 = vadd.f32 %v2849, %v2877
    %s2886 = sld [smem:[#allocation3 + $0x7a]]
    %v2887 = vstv %s2886
    %v2888 = vmul.f32 %v2887, %v2756
    %v2889 = vmul.f32 %v2887, %v2757
    %v2890 = vmul.f32 %v2887, %v2758
    %v2891 = vmul.f32 %v2887, %v2759
    %v2892 = vmul.f32 %v2887, %v2760
    %v2893 = vmul.f32 %v2887, %v2761
    %v2894 = vmul.f32 %v2887, %v2762
    %v2895 = vmul.f32 %v2887, %v2763
    %v2896 = vadd.f32 %v2860, %v2888
    %v2897 = vadd.f32 %v2861, %v2889
    %v2898 = vadd.f32 %v2862, %v2890
    %v2899 = vadd.f32 %v2863, %v2891
    %v2900 = vadd.f32 %v2864, %v2892
    %v2901 = vadd.f32 %v2865, %v2893
    %v2902 = vadd.f32 %v2866, %v2894
    %v2903 = vadd.f32 %v2867, %v2895
    %2904 = vrot.lane.b32.xlu0 %v2756, 127
    %v2905 = vpop.permute.xlu0 %2904
    %2906 = vrot.lane.b32.xlu0 %v2757, 127
    %v2907 = vpop.permute.xlu0 %2906
    %2908 = vrot.lane.b32.xlu0 %v2758, 127
    %v2909 = vpop.permute.xlu0 %2908
    %2910 = vrot.lane.b32.xlu0 %v2759, 127
    %v2911 = vpop.permute.xlu0 %2910
    %2912 = vrot.lane.b32.xlu0 %v2760, 127
    %v2913 = vpop.permute.xlu0 %2912
    %2914 = vrot.lane.b32.xlu0 %v2761, 127
    %v2915 = vpop.permute.xlu0 %2914
    %2916 = vrot.lane.b32.xlu0 %v2762, 127
    %v2917 = vpop.permute.xlu0 %2916
    %2918 = vrot.lane.b32.xlu0 %v2763, 127
    %v2919 = vpop.permute.xlu0 %2918
    %s2920 = sld [smem:[#allocation3 + $0x62]]
    %v2921 = vstv %s2920
    %v2922 = vmul.f32 %v2921, %v2905
    %v2923 = vmul.f32 %v2921, %v2907
    %v2924 = vmul.f32 %v2921, %v2909
    %v2925 = vmul.f32 %v2921, %v2911
    %v2926 = vmul.f32 %v2921, %v2913
    %v2927 = vmul.f32 %v2921, %v2915
    %v2928 = vmul.f32 %v2921, %v2917
    %v2929 = vmul.f32 %v2921, %v2919
    %v2930 = vadd.f32 %v2878, %v2922
    %v2931 = vadd.f32 %v2879, %v2923
    %v2932 = vadd.f32 %v2880, %v2924
    %v2933 = vadd.f32 %v2881, %v2925
    %v2934 = vadd.f32 %v2882, %v2926
    %v2935 = vadd.f32 %v2883, %v2927
    %v2936 = vadd.f32 %v2884, %v2928
    %v2937 = vadd.f32 %v2885, %v2929
    %s2938 = sld [smem:[#allocation3 + $0x7b]]
    %v2939 = vstv %s2938
    %v2940 = vmul.f32 %v2939, %v2905
    %v2941 = vmul.f32 %v2939, %v2907
    %v2942 = vmul.f32 %v2939, %v2909
    %v2943 = vmul.f32 %v2939, %v2911
    %v2944 = vmul.f32 %v2939, %v2913
    %v2945 = vmul.f32 %v2939, %v2915
    %v2946 = vmul.f32 %v2939, %v2917
    %v2947 = vmul.f32 %v2939, %v2919
    %v2948 = vadd.f32 %v2896, %v2940
    %v2949 = vadd.f32 %v2897, %v2941
    %v2950 = vadd.f32 %v2898, %v2942
    %v2951 = vadd.f32 %v2899, %v2943
    %v2952 = vadd.f32 %v2900, %v2944
    %v2953 = vadd.f32 %v2901, %v2945
    %v2954 = vadd.f32 %v2902, %v2946
    %v2955 = vadd.f32 %v2903, %v2947
    %2956 = vrot.lane.b32.xlu0 %v2756, 126
    %v2957 = vpop.permute.xlu0 %2956
    %2958 = vrot.lane.b32.xlu0 %v2757, 126
    %v2959 = vpop.permute.xlu0 %2958
    %2960 = vrot.lane.b32.xlu0 %v2758, 126
    %v2961 = vpop.permute.xlu0 %2960
    %2962 = vrot.lane.b32.xlu0 %v2759, 126
    %v2963 = vpop.permute.xlu0 %2962
    %2964 = vrot.lane.b32.xlu0 %v2760, 126
    %v2965 = vpop.permute.xlu0 %2964
    %2966 = vrot.lane.b32.xlu0 %v2761, 126
    %v2967 = vpop.permute.xlu0 %2966
    %2968 = vrot.lane.b32.xlu0 %v2762, 126
    %v2969 = vpop.permute.xlu0 %2968
    %2970 = vrot.lane.b32.xlu0 %v2763, 126
    %v2971 = vpop.permute.xlu0 %2970
    %s2972 = sld [smem:[#allocation3 + $0x63]]
    %v2973 = vstv %s2972
    %v2974 = vmul.f32 %v2973, %v2957
    %v2975 = vmul.f32 %v2973, %v2959
    %v2976 = vmul.f32 %v2973, %v2961
    %v2977 = vmul.f32 %v2973, %v2963
    %v2978 = vmul.f32 %v2973, %v2965
    %v2979 = vmul.f32 %v2973, %v2967
    %v2980 = vmul.f32 %v2973, %v2969
    %v2981 = vmul.f32 %v2973, %v2971
    %v2982 = vadd.f32 %v2930, %v2974
    %v2983 = vadd.f32 %v2931, %v2975
    %v2984 = vadd.f32 %v2932, %v2976
    %v2985 = vadd.f32 %v2933, %v2977
    %v2986 = vadd.f32 %v2934, %v2978
    %v2987 = vadd.f32 %v2935, %v2979
    %v2988 = vadd.f32 %v2936, %v2980
    %v2989 = vadd.f32 %v2937, %v2981
    %s2990 = sld [smem:[#allocation3 + $0x7c]]
    %v2991 = vstv %s2990
    %v2992 = vmul.f32 %v2991, %v2957
    %v2993 = vmul.f32 %v2991, %v2959
    %v2994 = vmul.f32 %v2991, %v2961
    %v2995 = vmul.f32 %v2991, %v2963
    %v2996 = vmul.f32 %v2991, %v2965
    %v2997 = vmul.f32 %v2991, %v2967
    %v2998 = vmul.f32 %v2991, %v2969
    %v2999 = vmul.f32 %v2991, %v2971
    %v3000 = vadd.f32 %v2948, %v2992
    %v3001 = vadd.f32 %v2949, %v2993
    %v3002 = vadd.f32 %v2950, %v2994
    %v3003 = vadd.f32 %v2951, %v2995
    %v3004 = vadd.f32 %v2952, %v2996
    %v3005 = vadd.f32 %v2953, %v2997
    %v3006 = vadd.f32 %v2954, %v2998
    %v3007 = vadd.f32 %v2955, %v2999
    %s3008 = scalar_lea.vmem [#allocation6], 192
    %3009 = vst.msk [vmem:[%s3008] sm:$0xff] %vm43, %v2982
    %3010 = vst.msk [vmem:[%s3008 + $0x8] sm:$0xff] %vm43, %v2983
    %3011 = vst.msk [vmem:[%s3008 + $0x10] sm:$0xff] %vm43, %v2984
    %3012 = vst.msk [vmem:[%s3008 + $0x18] sm:$0xff] %vm43, %v2985
    %3013 = vst.msk [vmem:[%s3008 + $0x20] sm:$0xff] %vm43, %v2986
    %3014 = vst.msk [vmem:[%s3008 + $0x28] sm:$0xff] %vm43, %v2987
    %3015 = vst.msk [vmem:[%s3008 + $0x30] sm:$0xff] %vm43, %v2988
    %3016 = vst.msk [vmem:[%s3008 + $0x38] sm:$0xff] %vm43, %v2989
    %s3017 = scalar_lea.vmem [#allocation6], 256
    %3018 = vst.msk [vmem:[%s3017] sm:$0xff] %vm43, %v3000
    %3019 = vst.msk [vmem:[%s3017 + $0x8] sm:$0xff] %vm43, %v3001
    %3020 = vst.msk [vmem:[%s3017 + $0x10] sm:$0xff] %vm43, %v3002
    %3021 = vst.msk [vmem:[%s3017 + $0x18] sm:$0xff] %vm43, %v3003
    %3022 = vst.msk [vmem:[%s3017 + $0x20] sm:$0xff] %vm43, %v3004
    %3023 = vst.msk [vmem:[%s3017 + $0x28] sm:$0xff] %vm43, %v3005
    %3024 = vst.msk [vmem:[%s3017 + $0x30] sm:$0xff] %vm43, %v3006
    %3025 = vst.msk [vmem:[%s3017 + $0x38] sm:$0xff] %vm43, %v3007
    // Predicated region
    $region14: #{conv_minus_x.1} parent=1 // pred_check
      _
    $region15: #{conv_minus_x.1} parent=1 // pred_check_branch
      %3027 = sbr.rel (0) target = $region17
    $region16: #{conv_minus_x.1} parent=1 // pred_region
      %s3029 = ssub.s32 5120, 5120
      %3030 = vsyncadd [#allocation4], %s3029
      %s3031 = sshll.u32 [#allocation6], 4
      %s3032 = int_to_ptr.vmem [resolvable:$true] %s3031
      %3037 = dma.vmem_to_hbm [thread:$0]  %s3032, 5120, %s2, [#allocation4], 128, 128, 8
    $region17: #{conv_minus_x.1} parent=1 // pred_fallthru
      _
    // Predicated region
    $region18: #{conv_minus_x.1} parent=1 // pred_check
      _
    $region19: #{conv_minus_x.1} parent=1 // pred_check_branch
      %3039 = sbr.rel (0) target = $region21
    $region20: #{conv_minus_x.1} parent=1 // pred_region
      %3040 = dma.done [#allocation4], 5120
    $region21: #{conv_minus_x.1} parent=1 // pred_fallthru
      _
    %3041 = vsyncpa [#allocation4], 1
    %3042 = vsyncpa [#allocation5], 1

</llo_original>
